<compile_context>
chip_gen: v5e
topology: v5e:2x2
jax: 0.10.0
libtpu: 0.0.40
codegen_flags: <defaults>
</compile_context>

<pallas_src>
import jax
import jax.numpy as jnp
from jax.experimental import pallas as pl
from jax.experimental.pallas import tpu as pltpu

BN_EPS = 1e-5
HEAD_W = 128                 # lane-padded width of the packed class/ss head
K_TILES = 4                  # fc1_*_1 output-feature tiles (pipelining depth)
K_TILE = 1024 // K_TILES     # 256


# ----------------------------------------------------------------------------
# Fused kernel: grid = (stream in {rgb, flow}, k feature-tile of fc1_*_1 out).
#   per (s, k):  h_k = relu(x_s @ w1[:, k]) ; BN1 ; acc += h_bn @ w2[k, :]
#   at k == last: mid[s] = BN2(relu(acc + b2))          (VMEM-resident output)
#   at (s == 1, k == last): self-sup + class heads from the resident mids,
#     packed lane-dense into a [n_dom, B, 128] output.
# ----------------------------------------------------------------------------
def fused_kernel(x_ref, w1_ref, b1_ref, w2_ref, b2_ref,
                 bn1_s_ref, bn1_b_ref, bn2_s_ref, bn2_b_ref,
                 wa1_ref, ba1_ref, wa2_ref, wb_ref, bh_ref,
                 mid_ref, heads_ref, acc_ref):
    s = pl.program_id(0)                 # 0 = rgb, 1 = flow
    k = pl.program_id(1)                 # feature tile of fc1_*_1 output
    n_k = pl.num_programs(1)
    n_dom = bn1_s_ref.shape[1]           # static: 1 (single) or 2 (src+trg)
    B = x_ref.shape[1]

    @pl.when(k == 0)
    def _():
        acc_ref[...] = jnp.zeros_like(acc_ref)

    # fc1_*_1 tile:  (B, 1024) @ (1024, K_TILE)  -> relu (BN comes after relu)
    h = jnp.dot(x_ref[0], w1_ref[0], preferred_element_type=jnp.float32)
    h = jnp.maximum(h + b1_ref[0], 0.0)                       # (B, K_TILE) f32

    # BN1 per domain, domains row-stacked so w2's tile is pushed to MXU once.
    h_bn = jnp.concatenate(
        [h * bn1_s_ref[0, d] + bn1_b_ref[0, d] for d in range(n_dom)], axis=0)
    acc_ref[...] += jnp.dot(h_bn.astype(jnp.bfloat16), w2_ref[0],
                            preferred_element_type=jnp.float32)

    # Finalize this stream: relu + BN2, write the VMEM-resident mid output.
    @pl.when(k == n_k - 1)
    def _():
        m = jnp.maximum(acc_ref[...] + b2_ref[0], 0.0)        # (n_dom*B, 512)
        m = m.reshape(n_dom, B, 512) * bn2_s_ref[0] + bn2_b_ref[0]
        mid_ref[s] = m

    # Head: runs once, after both streams' mids are resident in VMEM.
    @pl.when(jnp.logical_and(s == 1, k == n_k - 1))
    def _():
        mr = mid_ref[0].reshape(n_dom * B, 512).astype(jnp.bfloat16)  # rgb
        mf = mid_ref[1].reshape(n_dom * B, 512).astype(jnp.bfloat16)  # flow

        # concat-free fc2_a_1: concat(mid_rgb, mid_flow) @ Wa1 == split matmuls
        mss = (jnp.dot(mr, wa1_ref[0], preferred_element_type=jnp.float32)
               + jnp.dot(mf, wa1_ref[1], preferred_element_type=jnp.float32)
               + ba1_ref[...])
        mss = jnp.maximum(mss, 0.0)          # cols 100: stay exactly zero

        heads = (jnp.dot(mss.astype(jnp.bfloat16), wa2_ref[...],
                         preferred_element_type=jnp.float32)
                 + jnp.dot(mr, wb_ref[0], preferred_element_type=jnp.float32)
                 + jnp.dot(mf, wb_ref[1], preferred_element_type=jnp.float32)
                 + bh_ref[...])
        heads_ref[...] = heads.reshape(n_dom, B, HEAD_W)


# ----------------------------------------------------------------------------
# Parameter construction (deterministic, synthetic) + packing
# ----------------------------------------------------------------------------
def _linear_params(key, in_f, out_f):
    kw, kb = jax.random.split(key)
    w_t = jax.random.normal(kw, (in_f, out_f), jnp.float32) * 0.02  # [in, out]
    b = jax.random.normal(kb, (1, out_f), jnp.float32) * 0.02
    return w_t, b


def _bn_params(key, feat):
    kg, kb, km, kv = jax.random.split(key, 4)
    gamma = 1.0 + 0.1 * jax.random.normal(kg, (feat,), jnp.float32)
    beta = 0.1 * jax.random.normal(kb, (feat,), jnp.float32)
    mean = 0.1 * jax.random.normal(km, (feat,), jnp.float32)
    var = 1.0 + 0.1 * jax.random.uniform(kv, (feat,), jnp.float32)
    scale = gamma / jnp.sqrt(var + BN_EPS)
    shift = beta - mean * scale
    return scale.reshape(1, feat), shift.reshape(1, feat)


def make_params(seed=0):
    keys = jax.random.split(jax.random.PRNGKey(seed), 16)
    p = {}
    p["fc1_rgb_1"] = _linear_params(keys[0], 1024, 1024)
    p["fc1_rgb_2"] = _linear_params(keys[1], 1024, 512)
    p["fc1_flow_1"] = _linear_params(keys[2], 1024, 1024)
    p["fc1_flow_2"] = _linear_params(keys[3], 1024, 512)
    p["fc2_a_1"] = _linear_params(keys[4], 1024, 100)
    p["fc2_a_2"] = _linear_params(keys[5], 100, 2)
    p["fc2_b_rgb"] = _linear_params(keys[6], 512, 8)
    p["fc2_b_flow"] = _linear_params(keys[7], 512, 8)
    p["bn1_src_rgb"] = _bn_params(keys[8], 1024)
    p["bn1_src_flow"] = _bn_params(keys[9], 1024)
    p["bn1_trg_rgb"] = _bn_params(keys[10], 1024)
    p["bn1_trg_flow"] = _bn_params(keys[11], 1024)
    p["bn2_src_rgb"] = _bn_params(keys[12], 512)
    p["bn2_src_flow"] = _bn_params(keys[13], 512)
    p["bn2_trg_rgb"] = _bn_params(keys[14], 512)
    p["bn2_trg_flow"] = _bn_params(keys[15], 512)
    return p


def pack_params(raw):
    """Pack raw params: stacked per-stream bf16 weights, lane-padded head
    weights, stacked folded BN scale/shift."""
    # TODO(synk): optional weight compression (int8 on v5e/v6e, fp8 on v7x)
    # with scales folded into b1/BN1 would cut ~35% of HBM bytes, but is a
    # numerics change requiring explicit accuracy sign-off.
    bf = jnp.bfloat16

    w1 = jnp.stack([raw["fc1_rgb_1"][0], raw["fc1_flow_1"][0]]).astype(bf)   # (2,1024,1024)
    b1 = jnp.stack([raw["fc1_rgb_1"][1], raw["fc1_flow_1"][1]])              # (2,1,1024) f32
    w2 = jnp.stack([raw["fc1_rgb_2"][0], raw["fc1_flow_2"][0]]).astype(bf)   # (2,1024,512)
    b2 = jnp.stack([raw["fc1_rgb_2"][1], raw["fc1_flow_2"][1]])              # (2,1,512) f32

    # fc2_a_1: split 1024-in into rgb/flow halves, pad 100 out -> 128 lanes.
    wa1, ba1 = raw["fc2_a_1"]
    wa1_pad = jnp.zeros((1024, HEAD_W), jnp.float32).at[:, :100].set(wa1)
    wa1_split = jnp.stack([wa1_pad[:512], wa1_pad[512:]]).astype(bf)         # (2,512,128)
    ba1_pad = jnp.zeros((1, HEAD_W), jnp.float32).at[:, :100].set(ba1)

    # fc2_a_2: (100,2) -> (128,128); result lands in output cols 8:10.
    wa2, ba2 = raw["fc2_a_2"]
    wa2_pad = jnp.zeros((HEAD_W, HEAD_W), jnp.float32).at[:100, 8:10].set(wa2).astype(bf)

    # fc2_b_*: (512,8) -> (512,128); result lands in output cols 0:8.
    wbr, bbr = raw["fc2_b_rgb"]
    wbf, bbf = raw["fc2_b_flow"]
    wb_pad = (jnp.zeros((2, 512, HEAD_W), jnp.float32)
              .at[0, :, :8].set(wbr)
              .at[1, :, :8].set(wbf)).astype(bf)
    bh = (jnp.zeros((1, HEAD_W), jnp.float32)
          .at[:, :8].set(bbr + bbf)
          .at[:, 8:10].set(ba2))

    # BN folded scale/shift stacked as [stream(2), domain(2: src,trg), 1, F].
    def bn_stack(prefix, feat):
        arr_s = jnp.zeros((2, 2, 1, feat), jnp.float32)
        arr_b = jnp.zeros((2, 2, 1, feat), jnp.float32)
        for si, stream in enumerate(("rgb", "flow")):
            for di, dom in enumerate(("src", "trg")):
                sc, sh = raw[f"{prefix}_{dom}_{stream}"]
                arr_s = arr_s.at[si, di, 0].set(sc[0])
                arr_b = arr_b.at[si, di, 0].set(sh[0])
        return arr_s, arr_b

    bn1_s, bn1_b = bn_stack("bn1", 1024)
    bn2_s, bn2_b = bn_stack("bn2", 512)

    return dict(w1=w1, b1=b1, w2=w2, b2=b2,
                wa1=wa1_split, ba1=ba1_pad, wa2=wa2_pad, wb=wb_pad, bh=bh,
                bn1_s=bn1_s, bn1_b=bn1_b, bn2_s=bn2_s, bn2_b=bn2_b)


# ----------------------------------------------------------------------------
# pallas_call wrapper (single fused launch)
# ----------------------------------------------------------------------------
def _nbytes(*arrs):
    return int(sum(a.size * a.dtype.itemsize for a in arrs))


def _fused_call(packed, x, bn1_s, bn1_b, bn2_s, bn2_b):
    B = x.shape[1]
    n_dom = bn1_s.shape[1]
    # TODO(synk): if B grows beyond ~512, add a leading "parallel" B-tile grid
    # axis so x/mid/acc blocks stay bounded on v7x's 64 MiB VMEM.

    args = (x, packed["w1"], packed["b1"], packed["w2"], packed["b2"],
            bn1_s, bn1_b, bn2_s, bn2_b,
            packed["wa1"], packed["ba1"], packed["wa2"], packed["wb"],
            packed["bh"])

    in_specs = [
        pl.BlockSpec((1, B, 1024), lambda s, k: (s, 0, 0)),              # x (bf16)
        pl.BlockSpec((1, 1024, K_TILE), lambda s, k: (s, 0, k)),         # w1 tile
        pl.BlockSpec((1, 1, K_TILE), lambda s, k: (s, 0, k)),            # b1 tile
        pl.BlockSpec((1, K_TILE, 512), lambda s, k: (s, k, 0)),          # w2 tile
        pl.BlockSpec((1, 1, 512), lambda s, k: (s, 0, 0)),               # b2
        pl.BlockSpec((1, n_dom, 1, K_TILE), lambda s, k: (s, 0, 0, k)),  # bn1 scale
        pl.BlockSpec((1, n_dom, 1, K_TILE), lambda s, k: (s, 0, 0, k)),  # bn1 shift
        pl.BlockSpec((1, n_dom, 1, 512), lambda s, k: (s, 0, 0, 0)),     # bn2 scale
        pl.BlockSpec((1, n_dom, 1, 512), lambda s, k: (s, 0, 0, 0)),     # bn2 shift
        pl.BlockSpec((2, 512, HEAD_W), lambda s, k: (0, 0, 0)),          # wa1 (rgb/flow)
        pl.BlockSpec((1, HEAD_W), lambda s, k: (0, 0)),                  # ba1
        pl.BlockSpec((HEAD_W, HEAD_W), lambda s, k: (0, 0)),             # wa2
        pl.BlockSpec((2, 512, HEAD_W), lambda s, k: (0, 0, 0)),          # wb (rgb/flow)
        pl.BlockSpec((1, HEAD_W), lambda s, k: (0, 0)),                  # bh
    ]
    out_specs = [
        # mid stays VMEM-resident across the whole grid (constant block idx).
        pl.BlockSpec((2, n_dom, B, 512), lambda s, k: (0, 0, 0, 0)),
        pl.BlockSpec((n_dom, B, HEAD_W), lambda s, k: (0, 0, 0)),
    ]
    out_shape = (jax.ShapeDtypeStruct((2, n_dom, B, 512), jnp.float32),
                 jax.ShapeDtypeStruct((n_dom, B, HEAD_W), jnp.float32))

    flops = int(2 * (2 * B * 1024 * 1024)                        # fc1_*_1
                + 2 * (2 * n_dom * B * 1024 * 512)               # fc1_*_2
                + 2 * n_dom * B * (4 * 512 + HEAD_W) * HEAD_W)   # heads
    out_bytes = 2 * n_dom * B * 512 * 4 + n_dom * B * HEAD_W * 4
    cost = pl.CostEstimate(flops=flops, transcendentals=0,
                           bytes_accessed=_nbytes(*args) + out_bytes)

    return pl.pallas_call(
        fused_kernel,
        out_shape=out_shape,
        grid=(2, K_TILES),            # (stream, feature-tile); reduction last
        in_specs=in_specs,
        out_specs=out_specs,
        scratch_shapes=[pltpu.VMEM((n_dom * B, 512), jnp.float32)],
        compiler_params=pltpu.CompilerParams(
            # mid/heads are resident across both axes -> both "arbitrary".
            dimension_semantics=("arbitrary", "arbitrary"),
            vmem_limit_bytes=32 << 20),   # fits v7x's 64 MiB physical VMEM
        cost_estimate=cost,
    )(*args)


def _unpack_domain(mid, heads, d):
    # dropout is identity in eval mode  # TODO(synk): training-mode dropout
    mid_rgb = mid[0, d]
    mid_flow = mid[1, d]
    class_logits = heads[d, :, 0:8]
    ss_logits = heads[d, :, 8:10]
    return mid_rgb, mid_flow, class_logits, ss_logits


def net_forward(packed, x_rgb, x_flow, is_target: bool):
    """Original interface: single BN domain selected by is_target."""
    d = 1 if is_target else 0
    x = jnp.stack([x_rgb, x_flow], axis=0).astype(jnp.bfloat16)   # (2, B, 1024)
    mid, heads = _fused_call(
        packed, x,
        packed["bn1_s"][:, d:d + 1], packed["bn1_b"][:, d:d + 1],
        packed["bn2_s"][:, d:d + 1], packed["bn2_b"][:, d:d + 1])
    return _unpack_domain(mid, heads, 0)


def net_forward_both(packed, x_rgb, x_flow):
    """Fused src+trg forward: the (HBM-bound) weights are streamed once and
    both BN domains are evaluated in the same pass."""
    x = jnp.stack([x_rgb, x_flow], axis=0).astype(jnp.bfloat16)
    mid, heads = _fused_call(packed, x,
                             packed["bn1_s"], packed["bn1_b"],
                             packed["bn2_s"], packed["bn2_b"])
    return _unpack_domain(mid, heads, 0), _unpack_domain(mid, heads, 1)


# ----------------------------------------------------------------------------
# Pure-JAX reference (same eval-mode, bf16-weight semantics)
# ----------------------------------------------------------------------------
def net_reference(raw, x_rgb, x_flow, is_target: bool):
    tag = "trg" if is_target else "src"
    bf = jnp.bfloat16

    def lin(name, x):
        w, b = raw[name]
        return jnp.dot(x.astype(bf), w.astype(bf),
                       preferred_element_type=jnp.float32) + b

    def bn(name, x):
        s, sh = raw[name]
        return x * s + sh

    h_rgb = bn(f"bn1_{tag}_rgb", jnp.maximum(lin("fc1_rgb_1", x_rgb), 0.0))
    h_flow = bn(f"bn1_{tag}_flow", jnp.maximum(lin("fc1_flow_1", x_flow), 0.0))
    mid_rgb = bn(f"bn2_{tag}_rgb", jnp.maximum(lin("fc1_rgb_2", h_rgb), 0.0))
    mid_flow = bn(f"bn2_{tag}_flow", jnp.maximum(lin("fc1_flow_2", h_flow), 0.0))
    concat = jnp.concatenate([mid_rgb, mid_flow], axis=-1)
    mid_ss = jnp.maximum(lin("fc2_a_1", concat), 0.0)
    ss_logits = lin("fc2_a_2", mid_ss)
    class_logits = lin("fc2_b_rgb", mid_rgb) + lin("fc2_b_flow", mid_flow)
    return mid_rgb, mid_flow, class_logits, ss_logits


if __name__ == "__main__":
    B = 16   # small batch; feature dims (1024/512) are fixed by the module
    key = jax.random.PRNGKey(0)
    k_rgb, k_flow = jax.random.split(key)
    x_rgb = jax.random.normal(k_rgb, (B, 1024), jnp.float32)
    x_flow = jax.random.normal(k_flow, (B, 1024), jnp.float32)

    raw = make_params(seed=0)
    packed = pack_params(raw)

    # Fused src+trg forward: one pass over the weights for both domains.
    src_out, trg_out = net_forward_both(packed, x_rgb, x_flow)
    src_out = jax.block_until_ready(src_out)
    trg_out = jax.block_until_ready(trg_out)

    for is_target, outs in ((False, src_out), (True, trg_out)):
        refs = net_reference(raw, x_rgb, x_flow, is_target)
        for o, r in zip(outs, refs):
            assert o.shape == r.shape and o.dtype == r.dtype
            assert jnp.allclose(o, r, atol=1e-2, rtol=1e-2), "mismatch vs reference"

    # Also exercise the original single-domain interface.
    outs = jax.block_until_ready(net_forward(packed, x_rgb, x_flow, True))
    refs = net_reference(raw, x_rgb, x_flow, True)
    for o, r in zip(outs, refs):
        assert o.shape == r.shape and o.dtype == r.dtype
        assert jnp.allclose(o, r, atol=1e-2, rtol=1e-2), "mismatch vs reference"

    print("KERNEL_OK")
</pallas_src>

<mosaic_0001>
module attributes {stable_mosaic.version = 11 : i64} {
  func.func @fused_kernel(%arg0: i32, %arg1: i32, %arg2: memref<1x16x1024xbf16, #tpu.memory_space<vmem>>, %arg3: memref<1x1024x256xbf16, #tpu.memory_space<vmem>>, %arg4: memref<1x1x256xf32, #tpu.memory_space<vmem>>, %arg5: memref<1x256x512xbf16, #tpu.memory_space<vmem>>, %arg6: memref<1x1x512xf32, #tpu.memory_space<vmem>>, %arg7: memref<1x2x1x256xf32, #tpu.memory_space<vmem>>, %arg8: memref<1x2x1x256xf32, #tpu.memory_space<vmem>>, %arg9: memref<1x2x1x512xf32, #tpu.memory_space<vmem>>, %arg10: memref<1x2x1x512xf32, #tpu.memory_space<vmem>>, %arg11: memref<2x512x128xbf16, #tpu.memory_space<vmem>>, %arg12: memref<1x128xf32, #tpu.memory_space<vmem>>, %arg13: memref<128x128xbf16, #tpu.memory_space<vmem>>, %arg14: memref<2x512x128xbf16, #tpu.memory_space<vmem>>, %arg15: memref<1x128xf32, #tpu.memory_space<vmem>>, %arg16: memref<2x2x16x512xf32, #tpu.memory_space<vmem>>, %arg17: memref<2x16x128xf32, #tpu.memory_space<vmem>>, %arg18: memref<32x512xf32, #tpu.memory_space<vmem>>) attributes {dimension_semantics = [#tpu.dimension_semantics<arbitrary>, #tpu.dimension_semantics<arbitrary>], iteration_bounds = array<i64: 2, 4>, scalar_prefetch = 0 : i64, scratch_operands = 1 : i64, tpu.core_type = #tpu.core_type<tc>, window_params = [{transform_indices = @transform_0, window_bounds = array<i64: 1, 16, 1024>}, {transform_indices = @transform_1, window_bounds = array<i64: 1, 1024, 256>}, {transform_indices = @transform_2, window_bounds = array<i64: 1, 1, 256>}, {transform_indices = @transform_3, window_bounds = array<i64: 1, 256, 512>}, {transform_indices = @transform_4, window_bounds = array<i64: 1, 1, 512>}, {transform_indices = @transform_5, window_bounds = array<i64: 1, 2, 1, 256>}, {transform_indices = @transform_6, window_bounds = array<i64: 1, 2, 1, 256>}, {transform_indices = @transform_7, window_bounds = array<i64: 1, 2, 1, 512>}, {transform_indices = @transform_8, window_bounds = array<i64: 1, 2, 1, 512>}, {pipeline_mode = #tpu.pipeline_mode<synchronous>, transform_indices = @transform_9, window_bounds = array<i64: 2, 512, 128>}, {pipeline_mode = #tpu.pipeline_mode<synchronous>, transform_indices = @transform_10, window_bounds = array<i64: 1, 128>}, {pipeline_mode = #tpu.pipeline_mode<synchronous>, transform_indices = @transform_11, window_bounds = array<i64: 128, 128>}, {pipeline_mode = #tpu.pipeline_mode<synchronous>, transform_indices = @transform_12, window_bounds = array<i64: 2, 512, 128>}, {pipeline_mode = #tpu.pipeline_mode<synchronous>, transform_indices = @transform_13, window_bounds = array<i64: 1, 128>}, {pipeline_mode = #tpu.pipeline_mode<synchronous>, transform_indices = @transform_14, window_bounds = array<i64: 2, 2, 16, 512>}, {pipeline_mode = #tpu.pipeline_mode<synchronous>, transform_indices = @transform_15, window_bounds = array<i64: 2, 16, 128>}]} {
    %c0_i32 = arith.constant 0 : i32
    %0 = arith.cmpi eq, %arg1, %c0_i32 : i32
    %1 = arith.extui %0 : i1 to i32
    %c0_i32_0 = arith.constant 0 : i32
    %2 = arith.cmpi ne, %1, %c0_i32_0 : i32
    scf.if %2 {
      %cst_36 = arith.constant 0.000000e+00 : f32
      %46 = vector.broadcast %cst_36 : f32 to vector<32x512xf32>
      %c0_37 = arith.constant 0 : index
      %c0_38 = arith.constant 0 : index
      %47 = vector.load %arg18[%c0_37, %c0_38] : memref<32x512xf32, #tpu.memory_space<vmem>>, vector<32x512xf32>
      tpu.vector_store %arg18[%c0_37, %c0_38], %46 {strides = array<i32>} : memref<32x512xf32, #tpu.memory_space<vmem>>, vector<32x512xf32>,
    } else {
    }
    %c0 = arith.constant 0 : index
    %c0_1 = arith.constant 0 : index
    %c0_2 = arith.constant 0 : index
    %3 = vector.load %arg2[%c0, %c0_1, %c0_2] : memref<1x16x1024xbf16, #tpu.memory_space<vmem>>, vector<1x16x1024xbf16>
    %4 = vector.shape_cast %3 : vector<1x16x1024xbf16> to vector<16x1024xbf16>
    %c0_3 = arith.constant 0 : index
    %c0_4 = arith.constant 0 : index
    %c0_5 = arith.constant 0 : index
    %5 = vector.load %arg3[%c0_3, %c0_4, %c0_5] : memref<1x1024x256xbf16, #tpu.memory_space<vmem>>, vector<1x1024x256xbf16>
    %6 = vector.shape_cast %5 : vector<1x1024x256xbf16> to vector<1024x256xbf16>
    %cst = arith.constant dense<0.000000e+00> : vector<16x256xf32>
    %7 = tpu.matmul %4, %6, %cst {dimension_numbers = #tpu.dot_dimension_numbers<[1], [0], [0], [1], [0, 0, 1, 1], [], []>} : vector<16x1024xbf16>, vector<1024x256xbf16>, vector<16x256xf32> -> vector<16x256xf32>
    %c0_6 = arith.constant 0 : index
    %c0_7 = arith.constant 0 : index
    %c0_8 = arith.constant 0 : index
    %8 = vector.load %arg4[%c0_6, %c0_7, %c0_8] : memref<1x1x256xf32, #tpu.memory_space<vmem>>, vector<1x1x256xf32>
    %9 = vector.shape_cast %8 : vector<1x1x256xf32> to vector<1x256xf32>
    %10 = vector.broadcast %9 : vector<1x256xf32> to vector<16x256xf32>
    %11 = arith.addf %7, %10 : vector<16x256xf32>
    %cst_9 = arith.constant 0.000000e+00 : f32
    %12 = vector.broadcast %cst_9 : f32 to vector<16x256xf32>
    %13 = arith.maximumf %11, %12 : vector<16x256xf32>
    %c0_10 = arith.constant 0 : index
    %c0_11 = arith.constant 0 : index
    %c0_12 = arith.constant 0 : index
    %c0_13 = arith.constant 0 : index
    %14 = vector.load %arg7[%c0_10, %c0_11, %c0_12, %c0_13] : memref<1x2x1x256xf32, #tpu.memory_space<vmem>>, vector<1x1x1x256xf32>
    %15 = vector.shape_cast %14 : vector<1x1x1x256xf32> to vector<1x256xf32>
    %16 = vector.broadcast %15 : vector<1x256xf32> to vector<16x256xf32>
    %17 = arith.mulf %13, %16 : vector<16x256xf32>
    %c0_14 = arith.constant 0 : index
    %c0_15 = arith.constant 0 : index
    %c0_16 = arith.constant 0 : index
    %c0_17 = arith.constant 0 : index
    %18 = vector.load %arg8[%c0_14, %c0_15, %c0_16, %c0_17] : memref<1x2x1x256xf32, #tpu.memory_space<vmem>>, vector<1x1x1x256xf32>
    %19 = vector.shape_cast %18 : vector<1x1x1x256xf32> to vector<1x256xf32>
    %20 = vector.broadcast %19 : vector<1x256xf32> to vector<16x256xf32>
    %21 = arith.addf %17, %20 : vector<16x256xf32>
    %c0_18 = arith.constant 0 : index
    %c1 = arith.constant 1 : index
    %c0_19 = arith.constant 0 : index
    %c0_20 = arith.constant 0 : index
    %22 = vector.load %arg7[%c0_18, %c1, %c0_19, %c0_20] : memref<1x2x1x256xf32, #tpu.memory_space<vmem>>, vector<1x1x1x256xf32>
    %23 = vector.shape_cast %22 : vector<1x1x1x256xf32> to vector<1x256xf32>
    %24 = vector.broadcast %23 : vector<1x256xf32> to vector<16x256xf32>
    %25 = arith.mulf %13, %24 : vector<16x256xf32>
    %c0_21 = arith.constant 0 : index
    %c1_22 = arith.constant 1 : index
    %c0_23 = arith.constant 0 : index
    %c0_24 = arith.constant 0 : index
    %26 = vector.load %arg8[%c0_21, %c1_22, %c0_23, %c0_24] : memref<1x2x1x256xf32, #tpu.memory_space<vmem>>, vector<1x1x1x256xf32>
    %27 = vector.shape_cast %26 : vector<1x1x1x256xf32> to vector<1x256xf32>
    %28 = vector.broadcast %27 : vector<1x256xf32> to vector<16x256xf32>
    %29 = arith.addf %25, %28 : vector<16x256xf32>
    %30 = tpu.concatenate %21, %29 in 0 : vector<16x256xf32>, vector<16x256xf32> -> vector<32x256xf32>
    %c0_25 = arith.constant 0 : index
    %c0_26 = arith.constant 0 : index
    %31 = vector.load %arg18[%c0_25, %c0_26] : memref<32x512xf32, #tpu.memory_space<vmem>>, vector<32x512xf32>
    %32 = arith.truncf %30 : vector<32x256xf32> to vector<32x256xbf16>
    %c0_27 = arith.constant 0 : index
    %c0_28 = arith.constant 0 : index
    %c0_29 = arith.constant 0 : index
    %33 = vector.load %arg5[%c0_27, %c0_28, %c0_29] : memref<1x256x512xbf16, #tpu.memory_space<vmem>>, vector<1x256x512xbf16>
    %34 = vector.shape_cast %33 : vector<1x256x512xbf16> to vector<256x512xbf16>
    %cst_30 = arith.constant dense<0.000000e+00> : vector<32x512xf32>
    %35 = tpu.matmul %32, %34, %cst_30 {dimension_numbers = #tpu.dot_dimension_numbers<[1], [0], [0], [1], [0, 0, 1, 1], [], []>} : vector<32x256xbf16>, vector<256x512xbf16>, vector<32x512xf32> -> vector<32x512xf32>
    %36 = arith.addf %31, %35 : vector<32x512xf32>
    %c0_31 = arith.constant 0 : index
    %c0_32 = arith.constant 0 : index
    %37 = vector.load %arg18[%c0_31, %c0_32] : memref<32x512xf32, #tpu.memory_space<vmem>>, vector<32x512xf32>
    tpu.vector_store %arg18[%c0_31, %c0_32], %36 {strides = array<i32>} : memref<32x512xf32, #tpu.memory_space<vmem>>, vector<32x512xf32>,
    %c3_i32 = arith.constant 3 : i32
    %38 = arith.cmpi eq, %arg1, %c3_i32 : i32
    %39 = arith.extui %38 : i1 to i32
    %c0_i32_33 = arith.constant 0 : i32
    %40 = arith.cmpi ne, %39, %c0_i32_33 : i32
    scf.if %40 {
      %c0_36 = arith.constant 0 : index
      %c0_37 = arith.constant 0 : index
      %46 = vector.load %arg18[%c0_36, %c0_37] : memref<32x512xf32, #tpu.memory_space<vmem>>, vector<32x512xf32>
      %c0_38 = arith.constant 0 : index
      %c0_39 = arith.constant 0 : index
      %c0_40 = arith.constant 0 : index
      %47 = vector.load %arg6[%c0_38, %c0_39, %c0_40] : memref<1x1x512xf32, #tpu.memory_space<vmem>>, vector<1x1x512xf32>
      %48 = vector.shape_cast %47 : vector<1x1x512xf32> to vector<1x512xf32>
      %49 = vector.broadcast %48 : vector<1x512xf32> to vector<32x512xf32>
      %50 = arith.addf %46, %49 : vector<32x512xf32>
      %cst_41 = arith.constant 0.000000e+00 : f32
      %51 = vector.broadcast %cst_41 : f32 to vector<32x512xf32>
      %52 = arith.maximumf %50, %51 : vector<32x512xf32>
      %53 = vector.shape_cast %52 : vector<32x512xf32> to vector<2x16x512xf32>
      %c0_42 = arith.constant 0 : index
      %c0_43 = arith.constant 0 : index
      %c0_44 = arith.constant 0 : index
      %c0_45 = arith.constant 0 : index
      %54 = vector.load %arg9[%c0_42, %c0_43, %c0_44, %c0_45] : memref<1x2x1x512xf32, #tpu.memory_space<vmem>>, vector<1x2x1x512xf32>
      %55 = vector.shape_cast %54 : vector<1x2x1x512xf32> to vector<2x1x512xf32>
      %56 = vector.broadcast %55 : vector<2x1x512xf32> to vector<2x16x512xf32>
      %57 = arith.mulf %53, %56 : vector<2x16x512xf32>
      %c0_46 = arith.constant 0 : index
      %c0_47 = arith.constant 0 : index
      %c0_48 = arith.constant 0 : index
      %c0_49 = arith.constant 0 : index
      %58 = vector.load %arg10[%c0_46, %c0_47, %c0_48, %c0_49] : memref<1x2x1x512xf32, #tpu.memory_space<vmem>>, vector<1x2x1x512xf32>
      %59 = vector.shape_cast %58 : vector<1x2x1x512xf32> to vector<2x1x512xf32>
      %60 = vector.broadcast %59 : vector<2x1x512xf32> to vector<2x16x512xf32>
      %61 = arith.addf %57, %60 : vector<2x16x512xf32>
      %62 = arith.index_cast %arg0 : i32 to index
      %c0_50 = arith.constant 0 : index
      %c0_51 = arith.constant 0 : index
      %c0_52 = arith.constant 0 : index
      %63 = vector.load %arg16[%62, %c0_50, %c0_51, %c0_52] : memref<2x2x16x512xf32, #tpu.memory_space<vmem>>, vector<1x2x16x512xf32>
      %64 = vector.shape_cast %63 : vector<1x2x16x512xf32> to vector<2x16x512xf32>
      %65 = vector.shape_cast %61 : vector<2x16x512xf32> to vector<1x2x16x512xf32>
      tpu.vector_store %arg16[%62, %c0_50, %c0_51, %c0_52], %65 {strides = array<i32>} : memref<2x2x16x512xf32, #tpu.memory_space<vmem>>, vector<1x2x16x512xf32>,
    } else {
    }
    %c1_i32 = arith.constant 1 : i32
    %41 = arith.cmpi eq, %arg0, %c1_i32 : i32
    %c3_i32_34 = arith.constant 3 : i32
    %42 = arith.cmpi eq, %arg1, %c3_i32_34 : i32
    %43 = arith.andi %41, %42 : i1
    %44 = arith.extui %43 : i1 to i32
    %c0_i32_35 = arith.constant 0 : i32
    %45 = arith.cmpi ne, %44, %c0_i32_35 : i32
    scf.if %45 {
      %c0_36 = arith.constant 0 : index
      %c0_37 = arith.constant 0 : index
      %c0_38 = arith.constant 0 : index
      %c0_39 = arith.constant 0 : index
      %46 = vector.load %arg16[%c0_36, %c0_37, %c0_38, %c0_39] : memref<2x2x16x512xf32, #tpu.memory_space<vmem>>, vector<1x2x16x512xf32>
      %47 = vector.shape_cast %46 : vector<1x2x16x512xf32> to vector<2x16x512xf32>
      %48 = vector.shape_cast %47 : vector<2x16x512xf32> to vector<32x512xf32>
      %49 = arith.truncf %48 : vector<32x512xf32> to vector<32x512xbf16>
      %c1_40 = arith.constant 1 : index
      %c0_41 = arith.constant 0 : index
      %c0_42 = arith.constant 0 : index
      %c0_43 = arith.constant 0 : index
      %50 = vector.load %arg16[%c1_40, %c0_41, %c0_42, %c0_43] : memref<2x2x16x512xf32, #tpu.memory_space<vmem>>, vector<1x2x16x512xf32>
      %51 = vector.shape_cast %50 : vector<1x2x16x512xf32> to vector<2x16x512xf32>
      %52 = vector.shape_cast %51 : vector<2x16x512xf32> to vector<32x512xf32>
      %53 = arith.truncf %52 : vector<32x512xf32> to vector<32x512xbf16>
      %c0_44 = arith.constant 0 : index
      %c0_45 = arith.constant 0 : index
      %c0_46 = arith.constant 0 : index
      %54 = vector.load %arg11[%c0_44, %c0_45, %c0_46] : memref<2x512x128xbf16, #tpu.memory_space<vmem>>, vector<1x512x128xbf16>
      %55 = vector.shape_cast %54 : vector<1x512x128xbf16> to vector<512x128xbf16>
      %cst_47 = arith.constant dense<0.000000e+00> : vector<32x128xf32>
      %56 = tpu.matmul %49, %55, %cst_47 {dimension_numbers = #tpu.dot_dimension_numbers<[1], [0], [0], [1], [0, 0, 1, 1], [], []>} : vector<32x512xbf16>, vector<512x128xbf16>, vector<32x128xf32> -> vector<32x128xf32>
      %c1_48 = arith.constant 1 : index
      %c0_49 = arith.constant 0 : index
      %c0_50 = arith.constant 0 : index
      %57 = vector.load %arg11[%c1_48, %c0_49, %c0_50] : memref<2x512x128xbf16, #tpu.memory_space<vmem>>, vector<1x512x128xbf16>
      %58 = vector.shape_cast %57 : vector<1x512x128xbf16> to vector<512x128xbf16>
      %cst_51 = arith.constant dense<0.000000e+00> : vector<32x128xf32>
      %59 = tpu.matmul %53, %58, %cst_51 {dimension_numbers = #tpu.dot_dimension_numbers<[1], [0], [0], [1], [0, 0, 1, 1], [], []>} : vector<32x512xbf16>, vector<512x128xbf16>, vector<32x128xf32> -> vector<32x128xf32>
      %60 = arith.addf %56, %59 : vector<32x128xf32>
      %c0_52 = arith.constant 0 : index
      %c0_53 = arith.constant 0 : index
      %61 = vector.load %arg12[%c0_52, %c0_53] : memref<1x128xf32, #tpu.memory_space<vmem>>, vector<1x128xf32>
      %62 = vector.broadcast %61 : vector<1x128xf32> to vector<32x128xf32>
      %63 = arith.addf %60, %62 : vector<32x128xf32>
      %cst_54 = arith.constant 0.000000e+00 : f32
      %64 = vector.broadcast %cst_54 : f32 to vector<32x128xf32>
      %65 = arith.maximumf %63, %64 : vector<32x128xf32>
      %66 = arith.truncf %65 : vector<32x128xf32> to vector<32x128xbf16>
      %c0_55 = arith.constant 0 : index
      %c0_56 = arith.constant 0 : index
      %67 = vector.load %arg13[%c0_55, %c0_56] : memref<128x128xbf16, #tpu.memory_space<vmem>>, vector<128x128xbf16>
      %cst_57 = arith.constant dense<0.000000e+00> : vector<32x128xf32>
      %68 = tpu.matmul %66, %67, %cst_57 {dimension_numbers = #tpu.dot_dimension_numbers<[1], [0], [0], [1], [0, 0, 1, 1], [], []>} : vector<32x128xbf16>, vector<128x128xbf16>, vector<32x128xf32> -> vector<32x128xf32>
      %c0_58 = arith.constant 0 : index
      %c0_59 = arith.constant 0 : index
      %c0_60 = arith.constant 0 : index
      %69 = vector.load %arg14[%c0_58, %c0_59, %c0_60] : memref<2x512x128xbf16, #tpu.memory_space<vmem>>, vector<1x512x128xbf16>
      %70 = vector.shape_cast %69 : vector<1x512x128xbf16> to vector<512x128xbf16>
      %cst_61 = arith.constant dense<0.000000e+00> : vector<32x128xf32>
      %71 = tpu.matmul %49, %70, %cst_61 {dimension_numbers = #tpu.dot_dimension_numbers<[1], [0], [0], [1], [0, 0, 1, 1], [], []>} : vector<32x512xbf16>, vector<512x128xbf16>, vector<32x128xf32> -> vector<32x128xf32>
      %72 = arith.addf %68, %71 : vector<32x128xf32>
      %c1_62 = arith.constant 1 : index
      %c0_63 = arith.constant 0 : index
      %c0_64 = arith.constant 0 : index
      %73 = vector.load %arg14[%c1_62, %c0_63, %c0_64] : memref<2x512x128xbf16, #tpu.memory_space<vmem>>, vector<1x512x128xbf16>
      %74 = vector.shape_cast %73 : vector<1x512x128xbf16> to vector<512x128xbf16>
      %cst_65 = arith.constant dense<0.000000e+00> : vector<32x128xf32>
      %75 = tpu.matmul %53, %74, %cst_65 {dimension_numbers = #tpu.dot_dimension_numbers<[1], [0], [0], [1], [0, 0, 1, 1], [], []>} : vector<32x512xbf16>, vector<512x128xbf16>, vector<32x128xf32> -> vector<32x128xf32>
      %76 = arith.addf %72, %75 : vector<32x128xf32>
      %c0_66 = arith.constant 0 : index
      %c0_67 = arith.constant 0 : index
      %77 = vector.load %arg15[%c0_66, %c0_67] : memref<1x128xf32, #tpu.memory_space<vmem>>, vector<1x128xf32>
      %78 = vector.broadcast %77 : vector<1x128xf32> to vector<32x128xf32>
      %79 = arith.addf %76, %78 : vector<32x128xf32>
      %80 = vector.shape_cast %79 : vector<32x128xf32> to vector<2x16x128xf32>
      %c0_68 = arith.constant 0 : index
      %c0_69 = arith.constant 0 : index
      %c0_70 = arith.constant 0 : index
      %81 = vector.load %arg17[%c0_68, %c0_69, %c0_70] : memref<2x16x128xf32, #tpu.memory_space<vmem>>, vector<2x16x128xf32>
      tpu.vector_store %arg17[%c0_68, %c0_69, %c0_70], %80 {strides = array<i32>} : memref<2x16x128xf32, #tpu.memory_space<vmem>>, vector<2x16x128xf32>,
    } else {
    }
    return
  }
  func.func @transform_0(%arg0: i32, %arg1: i32) -> (i32, i32, i32) {
    %c0_i32 = arith.constant 0 : i32
    %c0_i32_0 = arith.constant 0 : i32
    %c0_i32_1 = arith.constant 0 : i32
    return %arg0, %c0_i32, %c0_i32_0 : i32, i32, i32
  }
  func.func @transform_1(%arg0: i32, %arg1: i32) -> (i32, i32, i32) {
    %c0_i32 = arith.constant 0 : i32
    %c0_i32_0 = arith.constant 0 : i32
    return %arg0, %c0_i32, %arg1 : i32, i32, i32
  }
  func.func @transform_2(%arg0: i32, %arg1: i32) -> (i32, i32, i32) {
    %c0_i32 = arith.constant 0 : i32
    %c0_i32_0 = arith.constant 0 : i32
    return %arg0, %c0_i32, %arg1 : i32, i32, i32
  }
  func.func @transform_3(%arg0: i32, %arg1: i32) -> (i32, i32, i32) {
    %c0_i32 = arith.constant 0 : i32
    %c0_i32_0 = arith.constant 0 : i32
    return %arg0, %arg1, %c0_i32 : i32, i32, i32
  }
  func.func @transform_4(%arg0: i32, %arg1: i32) -> (i32, i32, i32) {
    %c0_i32 = arith.constant 0 : i32
    %c0_i32_0 = arith.constant 0 : i32
    %c0_i32_1 = arith.constant 0 : i32
    return %arg0, %c0_i32, %c0_i32_0 : i32, i32, i32
  }
  func.func @transform_5(%arg0: i32, %arg1: i32) -> (i32, i32, i32, i32) {
    %c0_i32 = arith.constant 0 : i32
    %c0_i32_0 = arith.constant 0 : i32
    %c0_i32_1 = arith.constant 0 : i32
    return %arg0, %c0_i32, %c0_i32_0, %arg1 : i32, i32, i32, i32
  }
  func.func @transform_6(%arg0: i32, %arg1: i32) -> (i32, i32, i32, i32) {
    %c0_i32 = arith.constant 0 : i32
    %c0_i32_0 = arith.constant 0 : i32
    %c0_i32_1 = arith.constant 0 : i32
    return %arg0, %c0_i32, %c0_i32_0, %arg1 : i32, i32, i32, i32
  }
  func.func @transform_7(%arg0: i32, %arg1: i32) -> (i32, i32, i32, i32) {
    %c0_i32 = arith.constant 0 : i32
    %c0_i32_0 = arith.constant 0 : i32
    %c0_i32_1 = arith.constant 0 : i32
    %c0_i32_2 = arith.constant 0 : i32
    return %arg0, %c0_i32, %c0_i32_0, %c0_i32_1 : i32, i32, i32, i32
  }
  func.func @transform_8(%arg0: i32, %arg1: i32) -> (i32, i32, i32, i32) {
    %c0_i32 = arith.constant 0 : i32
    %c0_i32_0 = arith.constant 0 : i32
    %c0_i32_1 = arith.constant 0 : i32
    %c0_i32_2 = arith.constant 0 : i32
    return %arg0, %c0_i32, %c0_i32_0, %c0_i32_1 : i32, i32, i32, i32
  }
  func.func @transform_9(%arg0: i32, %arg1: i32) -> (i32, i32, i32) {
    %c0_i32 = arith.constant 0 : i32
    %c0_i32_0 = arith.constant 0 : i32
    %c0_i32_1 = arith.constant 0 : i32
    %c0_i32_2 = arith.constant 0 : i32
    return %c0_i32, %c0_i32_0, %c0_i32_1 : i32, i32, i32
  }
  func.func @transform_10(%arg0: i32, %arg1: i32) -> (i32, i32) {
    %c0_i32 = arith.constant 0 : i32
    %c0_i32_0 = arith.constant 0 : i32
    %c0_i32_1 = arith.constant 0 : i32
    return %c0_i32, %c0_i32_0 : i32, i32
  }
  func.func @transform_11(%arg0: i32, %arg1: i32) -> (i32, i32) {
    %c0_i32 = arith.constant 0 : i32
    %c0_i32_0 = arith.constant 0 : i32
    %c0_i32_1 = arith.constant 0 : i32
    return %c0_i32, %c0_i32_0 : i32, i32
  }
  func.func @transform_12(%arg0: i32, %arg1: i32) -> (i32, i32, i32) {
    %c0_i32 = arith.constant 0 : i32
    %c0_i32_0 = arith.constant 0 : i32
    %c0_i32_1 = arith.constant 0 : i32
    %c0_i32_2 = arith.constant 0 : i32
    return %c0_i32, %c0_i32_0, %c0_i32_1 : i32, i32, i32
  }
  func.func @transform_13(%arg0: i32, %arg1: i32) -> (i32, i32) {
    %c0_i32 = arith.constant 0 : i32
    %c0_i32_0 = arith.constant 0 : i32
    %c0_i32_1 = arith.constant 0 : i32
    return %c0_i32, %c0_i32_0 : i32, i32
  }
  func.func @transform_14(%arg0: i32, %arg1: i32) -> (i32, i32, i32, i32) {
    %c0_i32 = arith.constant 0 : i32
    %c0_i32_0 = arith.constant 0 : i32
    %c0_i32_1 = arith.constant 0 : i32
    %c0_i32_2 = arith.constant 0 : i32
    %c0_i32_3 = arith.constant 0 : i32
    return %c0_i32, %c0_i32_0, %c0_i32_1, %c0_i32_2 : i32, i32, i32, i32
  }
  func.func @transform_15(%arg0: i32, %arg1: i32) -> (i32, i32, i32) {
    %c0_i32 = arith.constant 0 : i32
    %c0_i32_0 = arith.constant 0 : i32
    %c0_i32_1 = arith.constant 0 : i32
    %c0_i32_2 = arith.constant 0 : i32
    return %c0_i32, %c0_i32_0, %c0_i32_1 : i32, i32, i32
  }
}

</mosaic_0001>

<llo_original>
// kernel: tpu_custom_call.1
$region0: #{tpu_custom_call.1}
  #allocation0 [shape = 'u32[]', space=smem, size = 0x4, offset = 0x4, fixed_abs, tag = 'smem constant byte address 0x4 - core index']
  #allocation1 [shape = 'u32[72,128]{1,0:T(1,128)}', space=vmem, size = 0x9000, scoped, tag = 'internal scratch']
  #allocation2 [shape = 'f32[32,512]{1,0:T(8,128)}', space=vmem, size = 0x10000, scoped, tag = 'scratch operand']
  %s0 = inlined_call_operand.hbm [shape: bf16[2,16,1024], index: 0, kind: input, shape index: {}]
  %s1 = inlined_call_operand.hbm [shape: bf16[2,1024,1024], index: 1, kind: input, shape index: {}]
  %s2 = inlined_call_operand.hbm [shape: f32[2,1,1024], index: 2, kind: input, shape index: {}]
  %s3 = inlined_call_operand.hbm [shape: bf16[2,1024,512], index: 3, kind: input, shape index: {}]
  %s4 = inlined_call_operand.hbm [shape: f32[2,1,512], index: 4, kind: input, shape index: {}]
  %s5 = inlined_call_operand.hbm [shape: f32[2,2,1,1024], index: 5, kind: input, shape index: {}]
  %s6 = inlined_call_operand.hbm [shape: f32[2,2,1,1024], index: 6, kind: input, shape index: {}]
  %s7 = inlined_call_operand.hbm [shape: f32[2,2,1,512], index: 7, kind: input, shape index: {}]
  %s8 = inlined_call_operand.hbm [shape: f32[2,2,1,512], index: 8, kind: input, shape index: {}]
  %s9 = inlined_call_operand.hbm [shape: bf16[2,512,128], index: 9, kind: input, shape index: {}]
  %s10 = inlined_call_operand.hbm [shape: f32[1,128], index: 10, kind: input, shape index: {}]
  %s11 = inlined_call_operand.hbm [shape: bf16[128,128], index: 11, kind: input, shape index: {}]
  %s12 = inlined_call_operand.hbm [shape: bf16[2,512,128], index: 12, kind: input, shape index: {}]
  %s13 = inlined_call_operand.hbm [shape: f32[1,128], index: 13, kind: input, shape index: {}]
  %s14 = inlined_call_operand.hbm [shape: f32[2,2,16,512], index: 14, kind: output, shape index: {0}]
  %s15 = inlined_call_operand.hbm [shape: f32[2,16,128], index: 15, kind: output, shape index: {1}]
  %16 = xla_tuple %s14, %s15
  %s17 = sld [smem:[#allocation0]]
  $region165: #{tpu_custom_call.1} parent=0
    _
  %s19 = ssub.s32 1, %s17
  %s20 = scalar_select 0, %s19, %s17
  $region1: #{tpu_custom_call.1} parent=0
    #allocation3 [shape = 'u8[65536]{0}', space=vmem, size = 0x10000, scoped, tag = 'input window, operand 0']
    #allocation4 [shape = 's32[2]{0}', space=sflag, size = 0x8, scoped, tag = 'scoped memory for tpu_custom_call.1']
    #allocation5 [shape = 's32[2]{0}', space=sflag, size = 0x8, scoped, tag = 'scoped memory for tpu_custom_call.1']
    #allocation6 [shape = 'u8[1048576]{0}', space=vmem, size = 0x100000, scoped, tag = 'input window, operand 1']
    #allocation7 [shape = 's32[2]{0}', space=sflag, size = 0x8, scoped, tag = 'scoped memory for tpu_custom_call.1']
    #allocation8 [shape = 'u8[2048]{0}', space=vmem, size = 0x800, scoped, tag = 'input window, operand 2']
    #allocation9 [shape = 'u8[524288]{0}', space=vmem, size = 0x80000, scoped, tag = 'input window, operand 3']
    #allocation10 [shape = 's32[2]{0}', space=sflag, size = 0x8, scoped, tag = 'scoped memory for tpu_custom_call.1']
    #allocation11 [shape = 'u8[4096]{0}', space=vmem, size = 0x1000, scoped, tag = 'input window, operand 4']
    #allocation12 [shape = 'u8[4096]{0}', space=vmem, size = 0x1000, scoped, tag = 'input window, operand 5']
    #allocation13 [shape = 's32[2]{0}', space=sflag, size = 0x8, scoped, tag = 'scoped memory for tpu_custom_call.1']
    #allocation14 [shape = 'u8[4096]{0}', space=vmem, size = 0x1000, scoped, tag = 'input window, operand 6']
    #allocation15 [shape = 'u8[8192]{0}', space=vmem, size = 0x2000, scoped, tag = 'input window, operand 7']
    #allocation16 [shape = 's32[2]{0}', space=sflag, size = 0x8, scoped, tag = 'scoped memory for tpu_custom_call.1']
    #allocation17 [shape = 'u8[8192]{0}', space=vmem, size = 0x2000, scoped, tag = 'input window, operand 8']
    #allocation18 [shape = 'u8[262144]{0}', space=vmem, size = 0x40000, scoped, tag = 'input window, operand 9, single buffered']
    #allocation19 [shape = 's32[1]{0}', space=sflag, size = 0x4, scoped, tag = 'scoped memory for tpu_custom_call.1']
    #allocation20 [shape = 'u8[512]{0}', space=vmem, size = 0x400, scoped, tag = 'input window, operand 10, single buffered']
    #allocation21 [shape = 'u8[32768]{0}', space=vmem, size = 0x8000, scoped, tag = 'input window, operand 11, single buffered']
    #allocation22 [shape = 's32[1]{0}', space=sflag, size = 0x4, scoped, tag = 'scoped memory for tpu_custom_call.1']
    #allocation23 [shape = 'u8[262144]{0}', space=vmem, size = 0x40000, scoped, tag = 'input window, operand 12, single buffered']
    #allocation24 [shape = 'u8[512]{0}', space=vmem, size = 0x400, scoped, tag = 'input window, operand 13, single buffered']
    #allocation25 [shape = 's32[1]{0}', space=sflag, size = 0x4, scoped, tag = 'scoped memory for tpu_custom_call.1']
    #allocation26 [shape = 'u8[131072]{0}', space=vmem, size = 0x20000, scoped, tag = 'output window, operand 0, single buffered']
    #allocation27 [shape = 'u8[16384]{0}', space=vmem, size = 0x4000, scoped, tag = 'output window, operand 1, single buffered']
    #allocation28 [shape = 's32[1]{0}', space=sflag, size = 0x4, scoped, tag = 'scoped memory for tpu_custom_call.1']
    %21 = vsyncpa [#allocation4], 0
    %s22 = scalar_lea.sflag [#allocation4], 1
    %23 = vsyncpa %s22, 0
    %24 = vsyncpa [#allocation7], 0
    %s25 = scalar_lea.sflag [#allocation7], 1
    %26 = vsyncpa %s25, 0
    %27 = vsyncpa [#allocation10], 0
    %s28 = scalar_lea.sflag [#allocation10], 1
    %29 = vsyncpa %s28, 0
    %30 = vsyncpa [#allocation13], 0
    %s31 = scalar_lea.sflag [#allocation13], 1
    %32 = vsyncpa %s31, 0
    %33 = vsyncpa [#allocation16], 0
    %s34 = scalar_lea.sflag [#allocation16], 1
    %35 = vsyncpa %s34, 0
    %36 = vsyncpa [#allocation19], 0
    %37 = vsyncpa [#allocation22], 0
    %38 = vsyncpa [#allocation25], 0
    %39 = vsyncpa [#allocation5], 0
    %40 = vsyncpa [#allocation28], 0
    loop: start=0, step=1, limit=10
    $region2: #{tpu_custom_call.1} parent=1 // loop_pre_header
      _
    $region3: #{tpu_custom_call.1} parent=1 // loop_header
      %s42 = sphi 0, %s46
      %p43 = scmp.ge.s32.totalorder %s42, 10
      %s49 = sphi 0, %s61
      %s50 = sphi 0, %s57
      %s51 = sphi 0, %s49
      %s52 = sphi 0, %s50
      %s53 = sphi 0, %s51
      %s54 = sphi 0, %s52
      %s64 = sphi 0, %s66
      %s67 = sphi 0, %s64
      %s68 = sphi 0, %s67
      %s84 = sphi 0, %s68
      %s92 = sphi 0, %s94
      %s95 = sphi 0, %s92
      %s96 = sphi 0, %s95
      %s112 = sphi 0, %s96
      %s120 = sphi 0, %s122
      %s123 = sphi 0, %s120
      %s124 = sphi 0, %s123
      %s140 = sphi 0, %s124
      %s148 = sphi 0, %s150
      %s151 = sphi 0, %s148
      %s152 = sphi 0, %s151
      %s168 = sphi 0, %s152
      %s174 = sphi 0, %s176
      %s177 = sphi 0, %s174
      %s178 = sphi 0, %s177
      %s194 = sphi 0, %s178
      %s202 = sphi 0, %s204
      %s205 = sphi 0, %s202
      %s206 = sphi 0, %s205
      %s222 = sphi 0, %s206
      %s230 = sphi 0, %s232
      %s233 = sphi 0, %s230
      %s234 = sphi 0, %s233
      %s250 = sphi 0, %s234
      %s256 = sphi 0, %s258
      %s259 = sphi 0, %s256
      %s260 = sphi 0, %s259
      %s276 = sphi 0, %s260
      %s282 = sphi 0, %s284
      %s285 = sphi 0, %s282
      %s286 = sphi 0, %s285
      %s302 = sphi 0, %s286
      %s306 = sphi 0, %s306
      %s308 = sphi 0, %s306
      %s309 = sphi 0, %s308
      %s323 = sphi 0, %s309
      %s327 = sphi 0, %s327
      %s329 = sphi 0, %s327
      %s330 = sphi 0, %s329
      %s344 = sphi 0, %s330
      %s348 = sphi 0, %s348
      %s350 = sphi 0, %s348
      %s351 = sphi 0, %s350
      %s365 = sphi 0, %s351
      %s369 = sphi 0, %s369
      %s371 = sphi 0, %s369
      %s372 = sphi 0, %s371
      %s386 = sphi 0, %s372
      %s390 = sphi 0, %s390
      %s392 = sphi 0, %s390
      %s393 = sphi 0, %s392
      %s407 = sphi 0, %s393
      %s411 = sphi 0, %s411
      %s413 = sphi 0, %s411
      %s414 = sphi 0, %s413
      %s428 = sphi 0, %s414
      %s432 = sphi 0, %s432
      %s434 = sphi 0, %s432
      %s435 = sphi 0, %s434
      %s449 = sphi 0, %s435
    $region4: #{tpu_custom_call.1} parent=1 // loop_header_branch
      %45 = sbr.rel (%p43) target = $region8
    $region5: #{tpu_custom_call.1} parent=1 // loop_body
      %s47 = ssub.s32 %s42, 1
      %s48 = ssub.s32 %s42, 2
      %s55 = sadd.s32 1, %s50
      %p56 = scmp.ge.s32.totalorder %s55, 4
      %s57 = scalar_select %p56, 0, %s55
      %s58 = sadd.s32 1, %s49
      %s59 = scalar_select %p56, %s58, %s49
      %p60 = scmp.ge.s32.totalorder %s59, 2
      %s61 = scalar_select %p60, 0, %s59
      %s62 = ssub.s32 %s49, %s61
      %p63 = scmp.eq.s32.totalorder %s62, 0
      %s65 = sadd.s32 %s64, 1
      %s66 = scalar_select %p63, %s64, %s65
      %p69 = pneg %p63
      %p70 = scmp.eq.s32.totalorder %s42, 7
      %p71 = por %p69, %p70
      %p72 = scmp.ne.s32.totalorder %s64, %s67
      %p73 = scmp.eq.s32.totalorder %s42, 0
      %p74 = por %p72, %p73
      %p75 = scmp.ne.s32.totalorder %s64, %s67
      %p76 = scmp.eq.s32.totalorder %s47, 7
      %p77 = por %p75, %p76
      %p78 = scmp.ne.s32.totalorder %s67, %s68
      %p79 = scmp.eq.s32.totalorder %s47, 0
      %p80 = por %p78, %p79
      %p81 = scmp.ne.s32.totalorder %s67, %s68
      %p82 = scmp.eq.s32.totalorder %s48, 7
      %p83 = por %p81, %p82
      %p85 = scmp.ne.s32.totalorder %s68, %s84
      %p86 = scmp.eq.s32.totalorder %s48, 0
      %p87 = por %p85, %p86
      %s88 = ssub.s32 %s49, %s61
      %s89 = ssub.s32 %s50, %s57
      %s90 = sor.u32 %s88, %s89
      %p91 = scmp.eq.s32.totalorder %s90, 0
      %s93 = sadd.s32 %s92, 1
      %s94 = scalar_select %p91, %s92, %s93
      %p97 = pneg %p91
      %p98 = scmp.eq.s32.totalorder %s42, 7
      %p99 = por %p97, %p98
      %p100 = scmp.ne.s32.totalorder %s92, %s95
      %p101 = scmp.eq.s32.totalorder %s42, 0
      %p102 = por %p100, %p101
      %p103 = scmp.ne.s32.totalorder %s92, %s95
      %p104 = scmp.eq.s32.totalorder %s47, 7
      %p105 = por %p103, %p104
      %p106 = scmp.ne.s32.totalorder %s95, %s96
      %p107 = scmp.eq.s32.totalorder %s47, 0
      %p108 = por %p106, %p107
      %p109 = scmp.ne.s32.totalorder %s95, %s96
      %p110 = scmp.eq.s32.totalorder %s48, 7
      %p111 = por %p109, %p110
      %p113 = scmp.ne.s32.totalorder %s96, %s112
      %p114 = scmp.eq.s32.totalorder %s48, 0
      %p115 = por %p113, %p114
      %s116 = ssub.s32 %s49, %s61
      %s117 = ssub.s32 %s50, %s57
      %s118 = sor.u32 %s116, %s117
      %p119 = scmp.eq.s32.totalorder %s118, 0
      %s121 = sadd.s32 %s120, 1
      %s122 = scalar_select %p119, %s120, %s121
      %p125 = pneg %p119
      %p126 = scmp.eq.s32.totalorder %s42, 7
      %p127 = por %p125, %p126
      %p128 = scmp.ne.s32.totalorder %s120, %s123
      %p129 = scmp.eq.s32.totalorder %s42, 0
      %p130 = por %p128, %p129
      %p131 = scmp.ne.s32.totalorder %s120, %s123
      %p132 = scmp.eq.s32.totalorder %s47, 7
      %p133 = por %p131, %p132
      %p134 = scmp.ne.s32.totalorder %s123, %s124
      %p135 = scmp.eq.s32.totalorder %s47, 0
      %p136 = por %p134, %p135
      %p137 = scmp.ne.s32.totalorder %s123, %s124
      %p138 = scmp.eq.s32.totalorder %s48, 7
      %p139 = por %p137, %p138
      %p141 = scmp.ne.s32.totalorder %s124, %s140
      %p142 = scmp.eq.s32.totalorder %s48, 0
      %p143 = por %p141, %p142
      %s144 = ssub.s32 %s49, %s61
      %s145 = ssub.s32 %s50, %s57
      %s146 = sor.u32 %s144, %s145
      %p147 = scmp.eq.s32.totalorder %s146, 0
      %s149 = sadd.s32 %s148, 1
      %s150 = scalar_select %p147, %s148, %s149
      %p153 = pneg %p147
      %p154 = scmp.eq.s32.totalorder %s42, 7
      %p155 = por %p153, %p154
      %p156 = scmp.ne.s32.totalorder %s148, %s151
      %p157 = scmp.eq.s32.totalorder %s42, 0
      %p158 = por %p156, %p157
      %p159 = scmp.ne.s32.totalorder %s148, %s151
      %p160 = scmp.eq.s32.totalorder %s47, 7
      %p161 = por %p159, %p160
      %p162 = scmp.ne.s32.totalorder %s151, %s152
      %p163 = scmp.eq.s32.totalorder %s47, 0
      %p164 = por %p162, %p163
      %p165 = scmp.ne.s32.totalorder %s151, %s152
      %p166 = scmp.eq.s32.totalorder %s48, 7
      %p167 = por %p165, %p166
      %p169 = scmp.ne.s32.totalorder %s152, %s168
      %p170 = scmp.eq.s32.totalorder %s48, 0
      %p171 = por %p169, %p170
      %s172 = ssub.s32 %s49, %s61
      %p173 = scmp.eq.s32.totalorder %s172, 0
      %s175 = sadd.s32 %s174, 1
      %s176 = scalar_select %p173, %s174, %s175
      %p179 = pneg %p173
      %p180 = scmp.eq.s32.totalorder %s42, 7
      %p181 = por %p179, %p180
      %p182 = scmp.ne.s32.totalorder %s174, %s177
      %p183 = scmp.eq.s32.totalorder %s42, 0
      %p184 = por %p182, %p183
      %p185 = scmp.ne.s32.totalorder %s174, %s177
      %p186 = scmp.eq.s32.totalorder %s47, 7
      %p187 = por %p185, %p186
      %p188 = scmp.ne.s32.totalorder %s177, %s178
      %p189 = scmp.eq.s32.totalorder %s47, 0
      %p190 = por %p188, %p189
      %p191 = scmp.ne.s32.totalorder %s177, %s178
      %p192 = scmp.eq.s32.totalorder %s48, 7
      %p193 = por %p191, %p192
      %p195 = scmp.ne.s32.totalorder %s178, %s194
      %p196 = scmp.eq.s32.totalorder %s48, 0
      %p197 = por %p195, %p196
      %s198 = ssub.s32 %s49, %s61
      %s199 = ssub.s32 %s50, %s57
      %s200 = sor.u32 %s198, %s199
      %p201 = scmp.eq.s32.totalorder %s200, 0
      %s203 = sadd.s32 %s202, 1
      %s204 = scalar_select %p201, %s202, %s203
      %p207 = pneg %p201
      %p208 = scmp.eq.s32.totalorder %s42, 7
      %p209 = por %p207, %p208
      %p210 = scmp.ne.s32.totalorder %s202, %s205
      %p211 = scmp.eq.s32.totalorder %s42, 0
      %p212 = por %p210, %p211
      %p213 = scmp.ne.s32.totalorder %s202, %s205
      %p214 = scmp.eq.s32.totalorder %s47, 7
      %p215 = por %p213, %p214
      %p216 = scmp.ne.s32.totalorder %s205, %s206
      %p217 = scmp.eq.s32.totalorder %s47, 0
      %p218 = por %p216, %p217
      %p219 = scmp.ne.s32.totalorder %s205, %s206
      %p220 = scmp.eq.s32.totalorder %s48, 7
      %p221 = por %p219, %p220
      %p223 = scmp.ne.s32.totalorder %s206, %s222
      %p224 = scmp.eq.s32.totalorder %s48, 0
      %p225 = por %p223, %p224
      %s226 = ssub.s32 %s49, %s61
      %s227 = ssub.s32 %s50, %s57
      %s228 = sor.u32 %s226, %s227
      %p229 = scmp.eq.s32.totalorder %s228, 0
      %s231 = sadd.s32 %s230, 1
      %s232 = scalar_select %p229, %s230, %s231
      %p235 = pneg %p229
      %p236 = scmp.eq.s32.totalorder %s42, 7
      %p237 = por %p235, %p236
      %p238 = scmp.ne.s32.totalorder %s230, %s233
      %p239 = scmp.eq.s32.totalorder %s42, 0
      %p240 = por %p238, %p239
      %p241 = scmp.ne.s32.totalorder %s230, %s233
      %p242 = scmp.eq.s32.totalorder %s47, 7
      %p243 = por %p241, %p242
      %p244 = scmp.ne.s32.totalorder %s233, %s234
      %p245 = scmp.eq.s32.totalorder %s47, 0
      %p246 = por %p244, %p245
      %p247 = scmp.ne.s32.totalorder %s233, %s234
      %p248 = scmp.eq.s32.totalorder %s48, 7
      %p249 = por %p247, %p248
      %p251 = scmp.ne.s32.totalorder %s234, %s250
      %p252 = scmp.eq.s32.totalorder %s48, 0
      %p253 = por %p251, %p252
      %s254 = ssub.s32 %s49, %s61
      %p255 = scmp.eq.s32.totalorder %s254, 0
      %s257 = sadd.s32 %s256, 1
      %s258 = scalar_select %p255, %s256, %s257
      %p261 = pneg %p255
      %p262 = scmp.eq.s32.totalorder %s42, 7
      %p263 = por %p261, %p262
      %p264 = scmp.ne.s32.totalorder %s256, %s259
      %p265 = scmp.eq.s32.totalorder %s42, 0
      %p266 = por %p264, %p265
      %p267 = scmp.ne.s32.totalorder %s256, %s259
      %p268 = scmp.eq.s32.totalorder %s47, 7
      %p269 = por %p267, %p268
      %p270 = scmp.ne.s32.totalorder %s259, %s260
      %p271 = scmp.eq.s32.totalorder %s47, 0
      %p272 = por %p270, %p271
      %p273 = scmp.ne.s32.totalorder %s259, %s260
      %p274 = scmp.eq.s32.totalorder %s48, 7
      %p275 = por %p273, %p274
      %p277 = scmp.ne.s32.totalorder %s260, %s276
      %p278 = scmp.eq.s32.totalorder %s48, 0
      %p279 = por %p277, %p278
      %s280 = ssub.s32 %s49, %s61
      %p281 = scmp.eq.s32.totalorder %s280, 0
      %s283 = sadd.s32 %s282, 1
      %s284 = scalar_select %p281, %s282, %s283
      %p287 = pneg %p281
      %p288 = scmp.eq.s32.totalorder %s42, 7
      %p289 = por %p287, %p288
      %p290 = scmp.ne.s32.totalorder %s282, %s285
      %p291 = scmp.eq.s32.totalorder %s42, 0
      %p292 = por %p290, %p291
      %p293 = scmp.ne.s32.totalorder %s282, %s285
      %p294 = scmp.eq.s32.totalorder %s47, 7
      %p295 = por %p293, %p294
      %p296 = scmp.ne.s32.totalorder %s285, %s286
      %p297 = scmp.eq.s32.totalorder %s47, 0
      %p298 = por %p296, %p297
      %p299 = scmp.ne.s32.totalorder %s285, %s286
      %p300 = scmp.eq.s32.totalorder %s48, 7
      %p301 = por %p299, %p300
      %p303 = scmp.ne.s32.totalorder %s286, %s302
      %p304 = scmp.eq.s32.totalorder %s48, 0
      %p305 = por %p303, %p304
      %s307 = sadd.s32 %s306, 1
      %p310 = scmp.eq.s32.totalorder %s42, 7
      %p311 = scmp.ne.s32.totalorder %s306, %s308
      %p312 = scmp.eq.s32.totalorder %s42, 0
      %p313 = por %p311, %p312
      %p314 = scmp.ne.s32.totalorder %s306, %s308
      %p315 = scmp.eq.s32.totalorder %s47, 7
      %p316 = por %p314, %p315
      %p317 = scmp.ne.s32.totalorder %s308, %s309
      %p318 = scmp.eq.s32.totalorder %s47, 0
      %p319 = por %p317, %p318
      %p320 = scmp.ne.s32.totalorder %s308, %s309
      %p321 = scmp.eq.s32.totalorder %s48, 7
      %p322 = por %p320, %p321
      %p324 = scmp.ne.s32.totalorder %s309, %s323
      %p325 = scmp.eq.s32.totalorder %s48, 0
      %p326 = por %p324, %p325
      %s328 = sadd.s32 %s327, 1
      %p331 = scmp.eq.s32.totalorder %s42, 7
      %p332 = scmp.ne.s32.totalorder %s327, %s329
      %p333 = scmp.eq.s32.totalorder %s42, 0
      %p334 = por %p332, %p333
      %p335 = scmp.ne.s32.totalorder %s327, %s329
      %p336 = scmp.eq.s32.totalorder %s47, 7
      %p337 = por %p335, %p336
      %p338 = scmp.ne.s32.totalorder %s329, %s330
      %p339 = scmp.eq.s32.totalorder %s47, 0
      %p340 = por %p338, %p339
      %p341 = scmp.ne.s32.totalorder %s329, %s330
      %p342 = scmp.eq.s32.totalorder %s48, 7
      %p343 = por %p341, %p342
      %p345 = scmp.ne.s32.totalorder %s330, %s344
      %p346 = scmp.eq.s32.totalorder %s48, 0
      %p347 = por %p345, %p346
      %s349 = sadd.s32 %s348, 1
      %p352 = scmp.eq.s32.totalorder %s42, 7
      %p353 = scmp.ne.s32.totalorder %s348, %s350
      %p354 = scmp.eq.s32.totalorder %s42, 0
      %p355 = por %p353, %p354
      %p356 = scmp.ne.s32.totalorder %s348, %s350
      %p357 = scmp.eq.s32.totalorder %s47, 7
      %p358 = por %p356, %p357
      %p359 = scmp.ne.s32.totalorder %s350, %s351
      %p360 = scmp.eq.s32.totalorder %s47, 0
      %p361 = por %p359, %p360
      %p362 = scmp.ne.s32.totalorder %s350, %s351
      %p363 = scmp.eq.s32.totalorder %s48, 7
      %p364 = por %p362, %p363
      %p366 = scmp.ne.s32.totalorder %s351, %s365
      %p367 = scmp.eq.s32.totalorder %s48, 0
      %p368 = por %p366, %p367
      %s370 = sadd.s32 %s369, 1
      %p373 = scmp.eq.s32.totalorder %s42, 7
      %p374 = scmp.ne.s32.totalorder %s369, %s371
      %p375 = scmp.eq.s32.totalorder %s42, 0
      %p376 = por %p374, %p375
      %p377 = scmp.ne.s32.totalorder %s369, %s371
      %p378 = scmp.eq.s32.totalorder %s47, 7
      %p379 = por %p377, %p378
      %p380 = scmp.ne.s32.totalorder %s371, %s372
      %p381 = scmp.eq.s32.totalorder %s47, 0
      %p382 = por %p380, %p381
      %p383 = scmp.ne.s32.totalorder %s371, %s372
      %p384 = scmp.eq.s32.totalorder %s48, 7
      %p385 = por %p383, %p384
      %p387 = scmp.ne.s32.totalorder %s372, %s386
      %p388 = scmp.eq.s32.totalorder %s48, 0
      %p389 = por %p387, %p388
      %s391 = sadd.s32 %s390, 1
      %p394 = scmp.eq.s32.totalorder %s42, 7
      %p395 = scmp.ne.s32.totalorder %s390, %s392
      %p396 = scmp.eq.s32.totalorder %s42, 0
      %p397 = por %p395, %p396
      %p398 = scmp.ne.s32.totalorder %s390, %s392
      %p399 = scmp.eq.s32.totalorder %s47, 7
      %p400 = por %p398, %p399
      %p401 = scmp.ne.s32.totalorder %s392, %s393
      %p402 = scmp.eq.s32.totalorder %s47, 0
      %p403 = por %p401, %p402
      %p404 = scmp.ne.s32.totalorder %s392, %s393
      %p405 = scmp.eq.s32.totalorder %s48, 7
      %p406 = por %p404, %p405
      %p408 = scmp.ne.s32.totalorder %s393, %s407
      %p409 = scmp.eq.s32.totalorder %s48, 0
      %p410 = por %p408, %p409
      %s412 = sadd.s32 %s411, 1
      %p415 = scmp.eq.s32.totalorder %s42, 7
      %p416 = scmp.ne.s32.totalorder %s411, %s413
      %p417 = scmp.eq.s32.totalorder %s42, 0
      %p418 = por %p416, %p417
      %p419 = scmp.ne.s32.totalorder %s411, %s413
      %p420 = scmp.eq.s32.totalorder %s47, 7
      %p421 = por %p419, %p420
      %p422 = scmp.ne.s32.totalorder %s413, %s414
      %p423 = scmp.eq.s32.totalorder %s47, 0
      %p424 = por %p422, %p423
      %p425 = scmp.ne.s32.totalorder %s413, %s414
      %p426 = scmp.eq.s32.totalorder %s48, 7
      %p427 = por %p425, %p426
      %p429 = scmp.ne.s32.totalorder %s414, %s428
      %p430 = scmp.eq.s32.totalorder %s48, 0
      %p431 = por %p429, %p430
      %s433 = sadd.s32 %s432, 1
      %p436 = scmp.eq.s32.totalorder %s42, 7
      %p437 = scmp.ne.s32.totalorder %s432, %s434
      %p438 = scmp.eq.s32.totalorder %s42, 0
      %p439 = por %p437, %p438
      %p440 = scmp.ne.s32.totalorder %s432, %s434
      %p441 = scmp.eq.s32.totalorder %s47, 7
      %p442 = por %p440, %p441
      %p443 = scmp.ne.s32.totalorder %s434, %s435
      %p444 = scmp.eq.s32.totalorder %s47, 0
      %p445 = por %p443, %p444
      %p446 = scmp.ne.s32.totalorder %s434, %s435
      %p447 = scmp.eq.s32.totalorder %s48, 7
      %p448 = por %p446, %p447
      %p450 = scmp.ne.s32.totalorder %s435, %s449
      %p451 = scmp.eq.s32.totalorder %s48, 0
      %p452 = por %p450, %p451
      %p453 = scmp.le.s32.totalorder 1, %s42
      %p454 = scmp.lt.s32.totalorder %s42, 9
      %p455 = pnand %p453, %p454
      %p456 = pneg %p455
      // Predicated region
      $region9: #{tpu_custom_call.1} parent=5 // pred_check
        _
      $region10: #{tpu_custom_call.1} parent=5 // pred_check_branch
        %458 = sbr.rel (%p455) target = $region12
      $region11: #{tpu_custom_call.1} parent=5 // pred_region
        %s459 = ssub.s32 %s42, 1
        // Predicated region
        $region13: #{tpu_custom_call.1} parent=11 // pred_check
          %p460 = pneg %p319
        $region14: #{tpu_custom_call.1} parent=11 // pred_check_branch
          %462 = sbr.rel (%p460) target = $region16
        $region15: #{tpu_custom_call.1} parent=11 // pred_region
          %464 = vsyncadd [#allocation19], 0
          %s465 = sshll.u32 %s9, 4
          %s466 = int_to_ptr.hbm [resolvable:$true] %s465
          %s467 = sshll.u32 [#allocation18], 4
          %s468 = int_to_ptr.vmem [resolvable:$true] %s467
          %473 = dma.hbm_to_vmem [thread:$0]  %s466, 8192, %s468, [#allocation19], 64, 64, 4
        $region16: #{tpu_custom_call.1} parent=11 // pred_fallthru
          _
        // Predicated region
        $region17: #{tpu_custom_call.1} parent=11 // pred_check
          %p474 = pneg %p340
        $region18: #{tpu_custom_call.1} parent=11 // pred_check_branch
          %476 = sbr.rel (%p474) target = $region20
        $region19: #{tpu_custom_call.1} parent=11 // pred_region
          %478 = vsyncadd [#allocation19], 0
          %s480 = sshll.u32 %s10, 4
          %s481 = int_to_ptr.hbm [resolvable:$true] %s480
          %s482 = sshll.u32 [#allocation20], 4
          %s483 = int_to_ptr.vmem [resolvable:$true] %s482
          %485 = dma.hbm_to_vmem [thread:$0]  %s481, 16, %s483, [#allocation19]
        $region20: #{tpu_custom_call.1} parent=11 // pred_fallthru
          _
        // Predicated region
        $region21: #{tpu_custom_call.1} parent=11 // pred_check
          %p486 = pneg %p361
        $region22: #{tpu_custom_call.1} parent=11 // pred_check_branch
          %488 = sbr.rel (%p486) target = $region24
        $region23: #{tpu_custom_call.1} parent=11 // pred_region
          %490 = vsyncadd [#allocation22], 0
          %s491 = sshll.u32 %s11, 4
          %s492 = int_to_ptr.hbm [resolvable:$true] %s491
          %s493 = sshll.u32 [#allocation21], 4
          %s494 = int_to_ptr.vmem [resolvable:$true] %s493
          %499 = dma.hbm_to_vmem [thread:$0]  %s492, 1024, %s494, [#allocation22], 64, 64, 4
        $region24: #{tpu_custom_call.1} parent=11 // pred_fallthru
          _
        // Predicated region
        $region25: #{tpu_custom_call.1} parent=11 // pred_check
          %p500 = pneg %p382
        $region26: #{tpu_custom_call.1} parent=11 // pred_check_branch
          %502 = sbr.rel (%p500) target = $region28
        $region27: #{tpu_custom_call.1} parent=11 // pred_region
          %504 = vsyncadd [#allocation22], 0
          %s505 = sshll.u32 %s12, 4
          %s506 = int_to_ptr.hbm [resolvable:$true] %s505
          %s507 = sshll.u32 [#allocation23], 4
          %s508 = int_to_ptr.vmem [resolvable:$true] %s507
          %513 = dma.hbm_to_vmem [thread:$0]  %s506, 8192, %s508, [#allocation22], 64, 64, 4
        $region28: #{tpu_custom_call.1} parent=11 // pred_fallthru
          _
        // Predicated region
        $region29: #{tpu_custom_call.1} parent=11 // pred_check
          %p514 = pneg %p403
        $region30: #{tpu_custom_call.1} parent=11 // pred_check_branch
          %516 = sbr.rel (%p514) target = $region32
        $region31: #{tpu_custom_call.1} parent=11 // pred_region
          %518 = vsyncadd [#allocation25], 0
          %s520 = sshll.u32 %s13, 4
          %s521 = int_to_ptr.hbm [resolvable:$true] %s520
          %s522 = sshll.u32 [#allocation24], 4
          %s523 = int_to_ptr.vmem [resolvable:$true] %s522
          %525 = dma.hbm_to_vmem [thread:$0]  %s521, 16, %s523, [#allocation25]
        $region32: #{tpu_custom_call.1} parent=11 // pred_fallthru
          _
      $region12: #{tpu_custom_call.1} parent=5 // pred_fallthru
        _
      %p526 = scmp.lt.s32.totalorder %s42, 8
      // Predicated region
      $region33: #{tpu_custom_call.1} parent=5 // pred_check
        %p527 = pneg %p526
      $region34: #{tpu_custom_call.1} parent=5 // pred_check_branch
        %529 = sbr.rel (%p527) target = $region36
      $region35: #{tpu_custom_call.1} parent=5 // pred_region
        // Predicated region
        $region37: #{tpu_custom_call.1} parent=35 // pred_check
          %p530 = pneg %p74
        $region38: #{tpu_custom_call.1} parent=35 // pred_check_branch
          %532 = sbr.rel (%p530) target = $region40
        $region39: #{tpu_custom_call.1} parent=35 // pred_region
          %s533 = sand.u32 %s64, 1
          %s534 = scalar_lea.sflag [#allocation4], %s533
          %s535 = sand.u32 %s64, 1
          %s536 = smul.addr %s535, 64
          %s537 = scalar_lea.vmem [#allocation3], %s536
          %539 = vsyncadd %s534, 0
          %s540 = smul.addr %s49, 16
          %s541 = smul.addr %s540, 4
          %s542 = scalar_lea.hbm %s0, %s541
          %s543 = sshll.u32 %s542, 4
          %s544 = int_to_ptr.hbm [resolvable:$true] %s543
          %s545 = sshll.u32 %s537, 4
          %s546 = int_to_ptr.vmem [resolvable:$true] %s545
          %551 = dma.hbm_to_vmem [thread:$0]  %s544, 1024, %s546, %s534, 512, 512, 32
        $region40: #{tpu_custom_call.1} parent=35 // pred_fallthru
          _
        // Predicated region
        $region41: #{tpu_custom_call.1} parent=35 // pred_check
          %p552 = pneg %p102
        $region42: #{tpu_custom_call.1} parent=35 // pred_check_branch
          %554 = sbr.rel (%p552) target = $region44
        $region43: #{tpu_custom_call.1} parent=35 // pred_region
          %s555 = sand.u32 %s42, 1
          %s556 = scalar_lea.sflag [#allocation7], %s555
          %s557 = sand.u32 %s92, 1
          %s558 = smul.addr %s557, 1024
          %s559 = scalar_lea.vmem [#allocation6], %s558
          %s560 = smul.u32 2, %s50
          %562 = vsyncadd %s556, 0
          %s563 = smul.addr %s49, 1024
          %s564 = sadd.s32 %s560, %s563
          %s565 = smul.addr %s564, 4
          %s566 = scalar_lea.hbm %s1, %s565
          %s567 = sshll.u32 %s566, 4
          %s568 = int_to_ptr.hbm [resolvable:$true] %s567
          %s569 = sshll.u32 %s559, 4
          %s570 = int_to_ptr.vmem [resolvable:$true] %s569
          %575 = dma.hbm_to_vmem [thread:$0]  %s568, 16384, %s570, %s556, 512, 128, 8
        $region44: #{tpu_custom_call.1} parent=35 // pred_fallthru
          _
        // Predicated region
        $region45: #{tpu_custom_call.1} parent=35 // pred_check
          %p576 = pneg %p130
        $region46: #{tpu_custom_call.1} parent=35 // pred_check_branch
          %578 = sbr.rel (%p576) target = $region48
        $region47: #{tpu_custom_call.1} parent=35 // pred_region
          %s579 = sand.u32 %s42, 1
          %s580 = scalar_lea.sflag [#allocation7], %s579
          %s581 = sand.u32 %s120, 1
          %s582 = smul.addr %s581, 2
          %s583 = scalar_lea.vmem [#allocation8], %s582
          %s584 = smul.u32 2, %s50
          %586 = vsyncadd %s580, 0
          %s587 = smul.addr %s49, 8
          %s588 = sadd.s32 %s584, %s587
          %s589 = scalar_lea.hbm %s2, %s588
          %s591 = sshll.u32 %s589, 4
          %s592 = int_to_ptr.hbm [resolvable:$true] %s591
          %s593 = sshll.u32 %s583, 4
          %s594 = int_to_ptr.vmem [resolvable:$true] %s593
          %596 = dma.hbm_to_vmem [thread:$0]  %s592, 32, %s594, %s580
        $region48: #{tpu_custom_call.1} parent=35 // pred_fallthru
          _
        // Predicated region
        $region49: #{tpu_custom_call.1} parent=35 // pred_check
          %p597 = pneg %p158
        $region50: #{tpu_custom_call.1} parent=35 // pred_check_branch
          %599 = sbr.rel (%p597) target = $region52
        $region51: #{tpu_custom_call.1} parent=35 // pred_region
          %s600 = sand.u32 %s42, 1
          %s601 = scalar_lea.sflag [#allocation10], %s600
          %s602 = sand.u32 %s148, 1
          %s603 = smul.addr %s602, 512
          %s604 = scalar_lea.vmem [#allocation9], %s603
          %s605 = smul.u32 32, %s50
          %607 = vsyncadd %s601, 0
          %s608 = smul.addr %s605, 4
          %s609 = smul.addr %s49, 512
          %s610 = sadd.s32 %s608, %s609
          %s611 = smul.addr %s610, 4
          %s612 = scalar_lea.hbm %s3, %s611
          %s613 = sshll.u32 %s612, 4
          %s614 = int_to_ptr.hbm [resolvable:$true] %s613
          %s615 = sshll.u32 %s604, 4
          %s616 = int_to_ptr.vmem [resolvable:$true] %s615
          %621 = dma.hbm_to_vmem [thread:$0]  %s614, 8192, %s616, %s601, 256, 256, 16
        $region52: #{tpu_custom_call.1} parent=35 // pred_fallthru
          _
        // Predicated region
        $region53: #{tpu_custom_call.1} parent=35 // pred_check
          %p622 = pneg %p184
        $region54: #{tpu_custom_call.1} parent=35 // pred_check_branch
          %624 = sbr.rel (%p622) target = $region56
        $region55: #{tpu_custom_call.1} parent=35 // pred_region
          %s625 = sand.u32 %s42, 1
          %s626 = scalar_lea.sflag [#allocation10], %s625
          %s627 = sand.u32 %s174, 1
          %s628 = smul.addr %s627, 4
          %s629 = scalar_lea.vmem [#allocation11], %s628
          %631 = vsyncadd %s626, 0
          %s632 = smul.addr %s49, 4
          %s633 = scalar_lea.hbm %s4, %s632
          %s635 = sshll.u32 %s633, 4
          %s636 = int_to_ptr.hbm [resolvable:$true] %s635
          %s637 = sshll.u32 %s629, 4
          %s638 = int_to_ptr.vmem [resolvable:$true] %s637
          %640 = dma.hbm_to_vmem [thread:$0]  %s636, 64, %s638, %s626
        $region56: #{tpu_custom_call.1} parent=35 // pred_fallthru
          _
        // Predicated region
        $region57: #{tpu_custom_call.1} parent=35 // pred_check
          %p641 = pneg %p212
        $region58: #{tpu_custom_call.1} parent=35 // pred_check_branch
          %643 = sbr.rel (%p641) target = $region60
        $region59: #{tpu_custom_call.1} parent=35 // pred_region
          %s644 = sand.u32 %s42, 1
          %s645 = scalar_lea.sflag [#allocation13], %s644
          %s646 = sand.u32 %s202, 1
          %s647 = smul.addr %s646, 4
          %s648 = scalar_lea.vmem [#allocation12], %s647
          %s649 = smul.u32 2, %s50
          %651 = vsyncadd %s645, 0
          %s652 = smul.addr %s49, 16
          %s653 = sadd.s32 %s649, %s652
          %s654 = scalar_lea.hbm %s5, %s653
          %s655 = sshll.u32 %s654, 4
          %s656 = int_to_ptr.hbm [resolvable:$true] %s655
          %s657 = sshll.u32 %s648, 4
          %s658 = int_to_ptr.vmem [resolvable:$true] %s657
          %663 = dma.hbm_to_vmem [thread:$0]  %s656, 64, %s658, %s645, 128, 32, 2
        $region60: #{tpu_custom_call.1} parent=35 // pred_fallthru
          _
        // Predicated region
        $region61: #{tpu_custom_call.1} parent=35 // pred_check
          %p664 = pneg %p240
        $region62: #{tpu_custom_call.1} parent=35 // pred_check_branch
          %666 = sbr.rel (%p664) target = $region64
        $region63: #{tpu_custom_call.1} parent=35 // pred_region
          %s667 = sand.u32 %s42, 1
          %s668 = scalar_lea.sflag [#allocation13], %s667
          %s669 = sand.u32 %s230, 1
          %s670 = smul.addr %s669, 4
          %s671 = scalar_lea.vmem [#allocation14], %s670
          %s672 = smul.u32 2, %s50
          %674 = vsyncadd %s668, 0
          %s675 = smul.addr %s49, 16
          %s676 = sadd.s32 %s672, %s675
          %s677 = scalar_lea.hbm %s6, %s676
          %s678 = sshll.u32 %s677, 4
          %s679 = int_to_ptr.hbm [resolvable:$true] %s678
          %s680 = sshll.u32 %s671, 4
          %s681 = int_to_ptr.vmem [resolvable:$true] %s680
          %686 = dma.hbm_to_vmem [thread:$0]  %s679, 64, %s681, %s668, 128, 32, 2
        $region64: #{tpu_custom_call.1} parent=35 // pred_fallthru
          _
        // Predicated region
        $region65: #{tpu_custom_call.1} parent=35 // pred_check
          %p687 = pneg %p266
        $region66: #{tpu_custom_call.1} parent=35 // pred_check_branch
          %689 = sbr.rel (%p687) target = $region68
        $region67: #{tpu_custom_call.1} parent=35 // pred_region
          %s690 = sand.u32 %s42, 1
          %s691 = scalar_lea.sflag [#allocation16], %s690
          %s692 = sand.u32 %s256, 1
          %s693 = smul.addr %s692, 8
          %s694 = scalar_lea.vmem [#allocation15], %s693
          %696 = vsyncadd %s691, 0
          %s697 = smul.addr %s49, 8
          %s698 = scalar_lea.hbm %s7, %s697
          %s699 = sshll.u32 %s698, 4
          %s700 = int_to_ptr.hbm [resolvable:$true] %s699
          %s701 = sshll.u32 %s694, 4
          %s702 = int_to_ptr.vmem [resolvable:$true] %s701
          %707 = dma.hbm_to_vmem [thread:$0]  %s700, 128, %s702, %s691, 64, 64, 4
        $region68: #{tpu_custom_call.1} parent=35 // pred_fallthru
          _
        // Predicated region
        $region69: #{tpu_custom_call.1} parent=35 // pred_check
          %p708 = pneg %p292
        $region70: #{tpu_custom_call.1} parent=35 // pred_check_branch
          %710 = sbr.rel (%p708) target = $region72
        $region71: #{tpu_custom_call.1} parent=35 // pred_region
          %s711 = sand.u32 %s42, 1
          %s712 = scalar_lea.sflag [#allocation16], %s711
          %s713 = sand.u32 %s282, 1
          %s714 = smul.addr %s713, 8
          %s715 = scalar_lea.vmem [#allocation17], %s714
          %717 = vsyncadd %s712, 0
          %s718 = smul.addr %s49, 8
          %s719 = scalar_lea.hbm %s8, %s718
          %s720 = sshll.u32 %s719, 4
          %s721 = int_to_ptr.hbm [resolvable:$true] %s720
          %s722 = sshll.u32 %s715, 4
          %s723 = int_to_ptr.vmem [resolvable:$true] %s722
          %728 = dma.hbm_to_vmem [thread:$0]  %s721, 128, %s723, %s712, 64, 64, 4
        $region72: #{tpu_custom_call.1} parent=35 // pred_fallthru
          _
      $region36: #{tpu_custom_call.1} parent=5 // pred_fallthru
        _
      %p729 = scmp.le.s32.totalorder 1, %s42
      %p730 = scmp.lt.s32.totalorder %s42, 9
      %p731 = pnand %p729, %p730
      %p732 = pneg %p731
      // Predicated region
      $region73: #{tpu_custom_call.1} parent=5 // pred_check
        _
      $region74: #{tpu_custom_call.1} parent=5 // pred_check_branch
        %734 = sbr.rel (%p731) target = $region76
      $region75: #{tpu_custom_call.1} parent=5 // pred_region
        %s735 = ssub.s32 %s42, 1
        %s736 = sand.u32 %s67, 1
        %s737 = scalar_lea.sflag [#allocation4], %s736
        %s738 = sand.u32 %s67, 1
        %s739 = smul.addr %s738, 64
        %s740 = scalar_lea.vmem [#allocation3], %s739
        // Predicated region
        $region77: #{tpu_custom_call.1} parent=75 // pred_check
          %p741 = pneg %p80
        $region78: #{tpu_custom_call.1} parent=75 // pred_check_branch
          %743 = sbr.rel (%p741) target = $region80
        $region79: #{tpu_custom_call.1} parent=75 // pred_region
          %745 = dma.done %s737, 1024
        $region80: #{tpu_custom_call.1} parent=75 // pred_fallthru
          _
        %s746 = sand.u32 %s47, 1
        %s747 = scalar_lea.sflag [#allocation7], %s746
        %s748 = sand.u32 %s95, 1
        %s749 = smul.addr %s748, 1024
        %s750 = scalar_lea.vmem [#allocation6], %s749
        // Predicated region
        $region81: #{tpu_custom_call.1} parent=75 // pred_check
          %p751 = pneg %p108
        $region82: #{tpu_custom_call.1} parent=75 // pred_check_branch
          %753 = sbr.rel (%p751) target = $region84
        $region83: #{tpu_custom_call.1} parent=75 // pred_region
          %755 = dma.done %s747, 16384
        $region84: #{tpu_custom_call.1} parent=75 // pred_fallthru
          _
        %s756 = sand.u32 %s47, 1
        %s757 = scalar_lea.sflag [#allocation7], %s756
        %s758 = sand.u32 %s123, 1
        %s759 = smul.addr %s758, 2
        %s760 = scalar_lea.vmem [#allocation8], %s759
        // Predicated region
        $region85: #{tpu_custom_call.1} parent=75 // pred_check
          %p761 = pneg %p136
        $region86: #{tpu_custom_call.1} parent=75 // pred_check_branch
          %763 = sbr.rel (%p761) target = $region88
        $region87: #{tpu_custom_call.1} parent=75 // pred_region
          %765 = dma.done %s757, 32
        $region88: #{tpu_custom_call.1} parent=75 // pred_fallthru
          _
        %s766 = sand.u32 %s47, 1
        %s767 = scalar_lea.sflag [#allocation10], %s766
        %s768 = sand.u32 %s151, 1
        %s769 = smul.addr %s768, 512
        %s770 = scalar_lea.vmem [#allocation9], %s769
        // Predicated region
        $region89: #{tpu_custom_call.1} parent=75 // pred_check
          %p771 = pneg %p164
        $region90: #{tpu_custom_call.1} parent=75 // pred_check_branch
          %773 = sbr.rel (%p771) target = $region92
        $region91: #{tpu_custom_call.1} parent=75 // pred_region
          %775 = dma.done %s767, 8192
        $region92: #{tpu_custom_call.1} parent=75 // pred_fallthru
          _
        %s776 = sand.u32 %s47, 1
        %s777 = scalar_lea.sflag [#allocation10], %s776
        %s778 = sand.u32 %s177, 1
        %s779 = smul.addr %s778, 4
        %s780 = scalar_lea.vmem [#allocation11], %s779
        // Predicated region
        $region93: #{tpu_custom_call.1} parent=75 // pred_check
          %p781 = pneg %p190
        $region94: #{tpu_custom_call.1} parent=75 // pred_check_branch
          %783 = sbr.rel (%p781) target = $region96
        $region95: #{tpu_custom_call.1} parent=75 // pred_region
          %785 = dma.done %s777, 64
        $region96: #{tpu_custom_call.1} parent=75 // pred_fallthru
          _
        %s786 = sand.u32 %s47, 1
        %s787 = scalar_lea.sflag [#allocation13], %s786
        %s788 = sand.u32 %s205, 1
        %s789 = smul.addr %s788, 4
        %s790 = scalar_lea.vmem [#allocation12], %s789
        // Predicated region
        $region97: #{tpu_custom_call.1} parent=75 // pred_check
          %p791 = pneg %p218
        $region98: #{tpu_custom_call.1} parent=75 // pred_check_branch
          %793 = sbr.rel (%p791) target = $region100
        $region99: #{tpu_custom_call.1} parent=75 // pred_region
          %795 = dma.done %s787, 64
        $region100: #{tpu_custom_call.1} parent=75 // pred_fallthru
          _
        %s796 = sand.u32 %s47, 1
        %s797 = scalar_lea.sflag [#allocation13], %s796
        %s798 = sand.u32 %s233, 1
        %s799 = smul.addr %s798, 4
        %s800 = scalar_lea.vmem [#allocation14], %s799
        // Predicated region
        $region101: #{tpu_custom_call.1} parent=75 // pred_check
          %p801 = pneg %p246
        $region102: #{tpu_custom_call.1} parent=75 // pred_check_branch
          %803 = sbr.rel (%p801) target = $region104
        $region103: #{tpu_custom_call.1} parent=75 // pred_region
          %805 = dma.done %s797, 64
        $region104: #{tpu_custom_call.1} parent=75 // pred_fallthru
          _
        %s806 = sand.u32 %s47, 1
        %s807 = scalar_lea.sflag [#allocation16], %s806
        %s808 = sand.u32 %s259, 1
        %s809 = smul.addr %s808, 8
        %s810 = scalar_lea.vmem [#allocation15], %s809
        // Predicated region
        $region105: #{tpu_custom_call.1} parent=75 // pred_check
          %p811 = pneg %p272
        $region106: #{tpu_custom_call.1} parent=75 // pred_check_branch
          %813 = sbr.rel (%p811) target = $region108
        $region107: #{tpu_custom_call.1} parent=75 // pred_region
          %815 = dma.done %s807, 128
        $region108: #{tpu_custom_call.1} parent=75 // pred_fallthru
          _
        %s816 = sand.u32 %s47, 1
        %s817 = scalar_lea.sflag [#allocation16], %s816
        %s818 = sand.u32 %s285, 1
        %s819 = smul.addr %s818, 8
        %s820 = scalar_lea.vmem [#allocation17], %s819
        // Predicated region
        $region109: #{tpu_custom_call.1} parent=75 // pred_check
          %p821 = pneg %p298
        $region110: #{tpu_custom_call.1} parent=75 // pred_check_branch
          %823 = sbr.rel (%p821) target = $region112
        $region111: #{tpu_custom_call.1} parent=75 // pred_region
          %825 = dma.done %s817, 128
        $region112: #{tpu_custom_call.1} parent=75 // pred_fallthru
          _
        // Predicated region
        $region113: #{tpu_custom_call.1} parent=75 // pred_check
          %p826 = pneg %p319
        $region114: #{tpu_custom_call.1} parent=75 // pred_check_branch
          %828 = sbr.rel (%p826) target = $region116
        $region115: #{tpu_custom_call.1} parent=75 // pred_region
          %830 = dma.done [#allocation19], 8192
        $region116: #{tpu_custom_call.1} parent=75 // pred_fallthru
          _
        // Predicated region
        $region117: #{tpu_custom_call.1} parent=75 // pred_check
          %p831 = pneg %p340
        $region118: #{tpu_custom_call.1} parent=75 // pred_check_branch
          %833 = sbr.rel (%p831) target = $region120
        $region119: #{tpu_custom_call.1} parent=75 // pred_region
          %835 = dma.done [#allocation19], 16
        $region120: #{tpu_custom_call.1} parent=75 // pred_fallthru
          _
        // Predicated region
        $region121: #{tpu_custom_call.1} parent=75 // pred_check
          %p836 = pneg %p361
        $region122: #{tpu_custom_call.1} parent=75 // pred_check_branch
          %838 = sbr.rel (%p836) target = $region124
        $region123: #{tpu_custom_call.1} parent=75 // pred_region
          %840 = dma.done [#allocation22], 1024
        $region124: #{tpu_custom_call.1} parent=75 // pred_fallthru
          _
        // Predicated region
        $region125: #{tpu_custom_call.1} parent=75 // pred_check
          %p841 = pneg %p382
        $region126: #{tpu_custom_call.1} parent=75 // pred_check_branch
          %843 = sbr.rel (%p841) target = $region128
        $region127: #{tpu_custom_call.1} parent=75 // pred_region
          %845 = dma.done [#allocation22], 8192
        $region128: #{tpu_custom_call.1} parent=75 // pred_fallthru
          _
        // Predicated region
        $region129: #{tpu_custom_call.1} parent=75 // pred_check
          %p846 = pneg %p403
        $region130: #{tpu_custom_call.1} parent=75 // pred_check_branch
          %848 = sbr.rel (%p846) target = $region132
        $region131: #{tpu_custom_call.1} parent=75 // pred_region
          %850 = dma.done [#allocation25], 16
        $region132: #{tpu_custom_call.1} parent=75 // pred_fallthru
          _
        %s851 = sand.u32 %s67, 1
        %s852 = scalar_lea.sflag [#allocation4], %s851
        %s853 = sand.u32 %s67, 1
        %s854 = smul.addr %s853, 64
        %s855 = scalar_lea.vmem [#allocation3], %s854
        %p856 = pneg %p80
        %p857 = pneg %p77
        %s858 = sand.u32 %s47, 1
        %s859 = scalar_lea.sflag [#allocation7], %s858
        %s860 = sand.u32 %s95, 1
        %s861 = smul.addr %s860, 1024
        %s862 = scalar_lea.vmem [#allocation6], %s861
        %p863 = pneg %p108
        %p864 = pneg %p105
        %s865 = sand.u32 %s47, 1
        %s866 = scalar_lea.sflag [#allocation7], %s865
        %s867 = sand.u32 %s123, 1
        %s868 = smul.addr %s867, 2
        %s869 = scalar_lea.vmem [#allocation8], %s868
        %p870 = pneg %p136
        %p871 = pneg %p133
        %s872 = sand.u32 %s47, 1
        %s873 = scalar_lea.sflag [#allocation10], %s872
        %s874 = sand.u32 %s151, 1
        %s875 = smul.addr %s874, 512
        %s876 = scalar_lea.vmem [#allocation9], %s875
        %p877 = pneg %p164
        %p878 = pneg %p161
        %s879 = sand.u32 %s47, 1
        %s880 = scalar_lea.sflag [#allocation10], %s879
        %s881 = sand.u32 %s177, 1
        %s882 = smul.addr %s881, 4
        %s883 = scalar_lea.vmem [#allocation11], %s882
        %p884 = pneg %p190
        %p885 = pneg %p187
        %s886 = sand.u32 %s47, 1
        %s887 = scalar_lea.sflag [#allocation13], %s886
        %s888 = sand.u32 %s205, 1
        %s889 = smul.addr %s888, 4
        %s890 = scalar_lea.vmem [#allocation12], %s889
        %p891 = pneg %p218
        %p892 = pneg %p215
        %s893 = sand.u32 %s47, 1
        %s894 = scalar_lea.sflag [#allocation13], %s893
        %s895 = sand.u32 %s233, 1
        %s896 = smul.addr %s895, 4
        %s897 = scalar_lea.vmem [#allocation14], %s896
        %p898 = pneg %p246
        %p899 = pneg %p243
        %s900 = sand.u32 %s47, 1
        %s901 = scalar_lea.sflag [#allocation16], %s900
        %s902 = sand.u32 %s259, 1
        %s903 = smul.addr %s902, 8
        %s904 = scalar_lea.vmem [#allocation15], %s903
        %p905 = pneg %p272
        %p906 = pneg %p269
        %s907 = sand.u32 %s47, 1
        %s908 = scalar_lea.sflag [#allocation16], %s907
        %s909 = sand.u32 %s285, 1
        %s910 = smul.addr %s909, 8
        %s911 = scalar_lea.vmem [#allocation17], %s910
        %p912 = pneg %p298
        %p913 = pneg %p295
        %p914 = pneg %p319
        %p915 = pneg %p316
        %p916 = pneg %p340
        %p917 = pneg %p337
        %p918 = pneg %p361
        %p919 = pneg %p358
        %p920 = pneg %p382
        %p921 = pneg %p379
        %p922 = pneg %p403
        %p923 = pneg %p400
        %p924 = pneg %p424
        %p925 = pneg %p421
        %p926 = pneg %p445
        %p927 = pneg %p442
        %s928 = smul.u32 2, %s52
        %s929 = smul.u32 2, %s52
        %s930 = smul.u32 32, %s52
        %s931 = smul.u32 2, %s52
        %s932 = smul.u32 2, %s52
        %p933 = scmp.eq.s32.totalorder %s52, 0
        // Predicated region
        $region133: #{tpu_custom_call.1} parent=75 // pred_check
          %p934 = pneg %p933
        $region134: #{tpu_custom_call.1} parent=75 // pred_check_branch
          %936 = sbr.rel (%p934) target = $region136
        $region135: #{tpu_custom_call.1} parent=75 // pred_region
          %937 = vst [vmem:[#allocation2] sm:$0xff] 0.0
          %938 = vst [vmem:[#allocation2 + $0x8] sm:$0xff] 0.0
          %939 = vst [vmem:[#allocation2 + $0x10] sm:$0xff] 0.0
          %940 = vst [vmem:[#allocation2 + $0x18] sm:$0xff] 0.0
          %941 = vst [vmem:[#allocation2 + $0x20] sm:$0xff] 0.0
          %942 = vst [vmem:[#allocation2 + $0x28] sm:$0xff] 0.0
          %943 = vst [vmem:[#allocation2 + $0x30] sm:$0xff] 0.0
          %944 = vst [vmem:[#allocation2 + $0x38] sm:$0xff] 0.0
          %945 = vst [vmem:[#allocation2 + $0x40] sm:$0xff] 0.0
          %946 = vst [vmem:[#allocation2 + $0x48] sm:$0xff] 0.0
          %947 = vst [vmem:[#allocation2 + $0x50] sm:$0xff] 0.0
          %948 = vst [vmem:[#allocation2 + $0x58] sm:$0xff] 0.0
          %949 = vst [vmem:[#allocation2 + $0x60] sm:$0xff] 0.0
          %950 = vst [vmem:[#allocation2 + $0x68] sm:$0xff] 0.0
          %951 = vst [vmem:[#allocation2 + $0x70] sm:$0xff] 0.0
          %952 = vst [vmem:[#allocation2 + $0x78] sm:$0xff] 0.0
        $region136: #{tpu_custom_call.1} parent=75 // pred_fallthru
          _
        %v953 = vld [vmem:[%s740] sm:$0xff]
        %v954 = vld [vmem:[%s740 + $0x8] sm:$0xff]
        %v955 = vld [vmem:[%s740 + $0x10] sm:$0xff]
        %v956 = vld [vmem:[%s740 + $0x18] sm:$0xff]
        %v957 = vld [vmem:[%s740 + $0x20] sm:$0xff]
        %v958 = vld [vmem:[%s740 + $0x28] sm:$0xff]
        %v959 = vld [vmem:[%s740 + $0x30] sm:$0xff]
        %v960 = vld [vmem:[%s740 + $0x38] sm:$0xff]
        %v961 = vld [vmem:[%s750] sm:$0xff]
        %v962 = vld [vmem:[%s750 + $0x8] sm:$0xff]
        %v963 = vld [vmem:[%s750 + $0x10] sm:$0xff]
        %v964 = vld [vmem:[%s750 + $0x18] sm:$0xff]
        %v965 = vld [vmem:[%s750 + $0x20] sm:$0xff]
        %v966 = vld [vmem:[%s750 + $0x28] sm:$0xff]
        %v967 = vld [vmem:[%s750 + $0x30] sm:$0xff]
        %v968 = vld [vmem:[%s750 + $0x38] sm:$0xff]
        %v969 = vld [vmem:[%s750 + $0x40] sm:$0xff]
        %v970 = vld [vmem:[%s750 + $0x48] sm:$0xff]
        %v971 = vld [vmem:[%s750 + $0x50] sm:$0xff]
        %v972 = vld [vmem:[%s750 + $0x58] sm:$0xff]
        %v973 = vld [vmem:[%s750 + $0x60] sm:$0xff]
        %v974 = vld [vmem:[%s750 + $0x68] sm:$0xff]
        %v975 = vld [vmem:[%s750 + $0x70] sm:$0xff]
        %v976 = vld [vmem:[%s750 + $0x78] sm:$0xff]
        %v977 = vld [vmem:[%s750 + $0x80] sm:$0xff]
        %v978 = vld [vmem:[%s750 + $0x88] sm:$0xff]
        %v979 = vld [vmem:[%s750 + $0x90] sm:$0xff]
        %v980 = vld [vmem:[%s750 + $0x98] sm:$0xff]
        %v981 = vld [vmem:[%s750 + $0xa0] sm:$0xff]
        %v982 = vld [vmem:[%s750 + $0xa8] sm:$0xff]
        %v983 = vld [vmem:[%s750 + $0xb0] sm:$0xff]
        %v984 = vld [vmem:[%s750 + $0xb8] sm:$0xff]
        %v985 = vld [vmem:[%s750 + $0xc0] sm:$0xff]
        %v986 = vld [vmem:[%s750 + $0xc8] sm:$0xff]
        %v987 = vld [vmem:[%s750 + $0xd0] sm:$0xff]
        %v988 = vld [vmem:[%s750 + $0xd8] sm:$0xff]
        %v989 = vld [vmem:[%s750 + $0xe0] sm:$0xff]
        %v990 = vld [vmem:[%s750 + $0xe8] sm:$0xff]
        %v991 = vld [vmem:[%s750 + $0xf0] sm:$0xff]
        %v992 = vld [vmem:[%s750 + $0xf8] sm:$0xff]
        %v993 = vld [vmem:[%s750 + $0x100] sm:$0xff]
        %v994 = vld [vmem:[%s750 + $0x108] sm:$0xff]
        %v995 = vld [vmem:[%s750 + $0x110] sm:$0xff]
        %v996 = vld [vmem:[%s750 + $0x118] sm:$0xff]
        %v997 = vld [vmem:[%s750 + $0x120] sm:$0xff]
        %v998 = vld [vmem:[%s750 + $0x128] sm:$0xff]
        %v999 = vld [vmem:[%s750 + $0x130] sm:$0xff]
        %v1000 = vld [vmem:[%s750 + $0x138] sm:$0xff]
        %v1001 = vld [vmem:[%s750 + $0x140] sm:$0xff]
        %v1002 = vld [vmem:[%s750 + $0x148] sm:$0xff]
        %v1003 = vld [vmem:[%s750 + $0x150] sm:$0xff]
        %v1004 = vld [vmem:[%s750 + $0x158] sm:$0xff]
        %v1005 = vld [vmem:[%s750 + $0x160] sm:$0xff]
        %v1006 = vld [vmem:[%s750 + $0x168] sm:$0xff]
        %v1007 = vld [vmem:[%s750 + $0x170] sm:$0xff]
        %v1008 = vld [vmem:[%s750 + $0x178] sm:$0xff]
        %v1009 = vld [vmem:[%s750 + $0x180] sm:$0xff]
        %v1010 = vld [vmem:[%s750 + $0x188] sm:$0xff]
        %v1011 = vld [vmem:[%s750 + $0x190] sm:$0xff]
        %v1012 = vld [vmem:[%s750 + $0x198] sm:$0xff]
        %v1013 = vld [vmem:[%s750 + $0x1a0] sm:$0xff]
        %v1014 = vld [vmem:[%s750 + $0x1a8] sm:$0xff]
        %v1015 = vld [vmem:[%s750 + $0x1b0] sm:$0xff]
        %v1016 = vld [vmem:[%s750 + $0x1b8] sm:$0xff]
        %v1017 = vld [vmem:[%s750 + $0x1c0] sm:$0xff]
        %v1018 = vld [vmem:[%s750 + $0x1c8] sm:$0xff]
        %v1019 = vld [vmem:[%s750 + $0x1d0] sm:$0xff]
        %v1020 = vld [vmem:[%s750 + $0x1d8] sm:$0xff]
        %v1021 = vld [vmem:[%s750 + $0x1e0] sm:$0xff]
        %v1022 = vld [vmem:[%s750 + $0x1e8] sm:$0xff]
        %v1023 = vld [vmem:[%s750 + $0x1f0] sm:$0xff]
        %v1024 = vld [vmem:[%s750 + $0x1f8] sm:$0xff]
        %v1025 = vld [vmem:[%s750 + $0x200] sm:$0xff]
        %v1026 = vld [vmem:[%s750 + $0x208] sm:$0xff]
        %v1027 = vld [vmem:[%s750 + $0x210] sm:$0xff]
        %v1028 = vld [vmem:[%s750 + $0x218] sm:$0xff]
        %v1029 = vld [vmem:[%s750 + $0x220] sm:$0xff]
        %v1030 = vld [vmem:[%s750 + $0x228] sm:$0xff]
        %v1031 = vld [vmem:[%s750 + $0x230] sm:$0xff]
        %v1032 = vld [vmem:[%s750 + $0x238] sm:$0xff]
        %v1033 = vld [vmem:[%s750 + $0x240] sm:$0xff]
        %v1034 = vld [vmem:[%s750 + $0x248] sm:$0xff]
        %v1035 = vld [vmem:[%s750 + $0x250] sm:$0xff]
        %v1036 = vld [vmem:[%s750 + $0x258] sm:$0xff]
        %v1037 = vld [vmem:[%s750 + $0x260] sm:$0xff]
        %v1038 = vld [vmem:[%s750 + $0x268] sm:$0xff]
        %v1039 = vld [vmem:[%s750 + $0x270] sm:$0xff]
        %v1040 = vld [vmem:[%s750 + $0x278] sm:$0xff]
        %v1041 = vld [vmem:[%s750 + $0x280] sm:$0xff]
        %v1042 = vld [vmem:[%s750 + $0x288] sm:$0xff]
        %v1043 = vld [vmem:[%s750 + $0x290] sm:$0xff]
        %v1044 = vld [vmem:[%s750 + $0x298] sm:$0xff]
        %v1045 = vld [vmem:[%s750 + $0x2a0] sm:$0xff]
        %v1046 = vld [vmem:[%s750 + $0x2a8] sm:$0xff]
        %v1047 = vld [vmem:[%s750 + $0x2b0] sm:$0xff]
        %v1048 = vld [vmem:[%s750 + $0x2b8] sm:$0xff]
        %v1049 = vld [vmem:[%s750 + $0x2c0] sm:$0xff]
        %v1050 = vld [vmem:[%s750 + $0x2c8] sm:$0xff]
        %v1051 = vld [vmem:[%s750 + $0x2d0] sm:$0xff]
        %v1052 = vld [vmem:[%s750 + $0x2d8] sm:$0xff]
        %v1053 = vld [vmem:[%s750 + $0x2e0] sm:$0xff]
        %v1054 = vld [vmem:[%s750 + $0x2e8] sm:$0xff]
        %v1055 = vld [vmem:[%s750 + $0x2f0] sm:$0xff]
        %v1056 = vld [vmem:[%s750 + $0x2f8] sm:$0xff]
        %v1057 = vld [vmem:[%s750 + $0x300] sm:$0xff]
        %v1058 = vld [vmem:[%s750 + $0x308] sm:$0xff]
        %v1059 = vld [vmem:[%s750 + $0x310] sm:$0xff]
        %v1060 = vld [vmem:[%s750 + $0x318] sm:$0xff]
        %v1061 = vld [vmem:[%s750 + $0x320] sm:$0xff]
        %v1062 = vld [vmem:[%s750 + $0x328] sm:$0xff]
        %v1063 = vld [vmem:[%s750 + $0x330] sm:$0xff]
        %v1064 = vld [vmem:[%s750 + $0x338] sm:$0xff]
        %v1065 = vld [vmem:[%s750 + $0x340] sm:$0xff]
        %v1066 = vld [vmem:[%s750 + $0x348] sm:$0xff]
        %v1067 = vld [vmem:[%s750 + $0x350] sm:$0xff]
        %v1068 = vld [vmem:[%s750 + $0x358] sm:$0xff]
        %v1069 = vld [vmem:[%s750 + $0x360] sm:$0xff]
        %v1070 = vld [vmem:[%s750 + $0x368] sm:$0xff]
        %v1071 = vld [vmem:[%s750 + $0x370] sm:$0xff]
        %v1072 = vld [vmem:[%s750 + $0x378] sm:$0xff]
        %v1073 = vld [vmem:[%s750 + $0x380] sm:$0xff]
        %v1074 = vld [vmem:[%s750 + $0x388] sm:$0xff]
        %v1075 = vld [vmem:[%s750 + $0x390] sm:$0xff]
        %v1076 = vld [vmem:[%s750 + $0x398] sm:$0xff]
        %v1077 = vld [vmem:[%s750 + $0x3a0] sm:$0xff]
        %v1078 = vld [vmem:[%s750 + $0x3a8] sm:$0xff]
        %v1079 = vld [vmem:[%s750 + $0x3b0] sm:$0xff]
        %v1080 = vld [vmem:[%s750 + $0x3b8] sm:$0xff]
        %v1081 = vld [vmem:[%s750 + $0x3c0] sm:$0xff]
        %v1082 = vld [vmem:[%s750 + $0x3c8] sm:$0xff]
        %v1083 = vld [vmem:[%s750 + $0x3d0] sm:$0xff]
        %v1084 = vld [vmem:[%s750 + $0x3d8] sm:$0xff]
        %v1085 = vld [vmem:[%s750 + $0x3e0] sm:$0xff]
        %v1086 = vld [vmem:[%s750 + $0x3e8] sm:$0xff]
        %v1087 = vld [vmem:[%s750 + $0x3f0] sm:$0xff]
        %v1088 = vld [vmem:[%s750 + $0x3f8] sm:$0xff]
        %v1089 = vld [vmem:[%s760] sm:$0x3]
        %v1091 = vperm.slane %v1089, 0
        %v1092 = vperm.slane %v1089, 1
        %v1103 = vunpack.c.l.b16 %v953
        %v1104 = vunpack.c.h.b16 %v953
        %v1105 = vunpack.c.l.b16 %v954
        %v1106 = vunpack.c.h.b16 %v954
        %v1107 = vunpack.c.l.b16 %v955
        %v1108 = vunpack.c.h.b16 %v955
        %v1109 = vunpack.c.l.b16 %v956
        %v1110 = vunpack.c.h.b16 %v956
        %v1111 = vunpack.c.l.b16 %v957
        %v1112 = vunpack.c.h.b16 %v957
        %v1113 = vunpack.c.l.b16 %v958
        %v1114 = vunpack.c.h.b16 %v958
        %v1115 = vunpack.c.l.b16 %v959
        %v1116 = vunpack.c.h.b16 %v959
        %v1117 = vunpack.c.l.b16 %v960
        %v1118 = vunpack.c.h.b16 %v960
        %v1119 = vpack.c.b16 %v1111, %v1103
        %v1120 = vpack.c.b16 %v1112, %v1104
        %v1121 = vpack.c.b16 %v1113, %v1105
        %v1122 = vpack.c.b16 %v1114, %v1106
        %v1123 = vpack.c.b16 %v1115, %v1107
        %v1124 = vpack.c.b16 %v1116, %v1108
        %v1125 = vpack.c.b16 %v1117, %v1109
        %v1126 = vpack.c.b16 %v1118, %v1110
        %v1263 = vunpack.c.l.b16 %v961
        %v1264 = vunpack.c.h.b16 %v961
        %v1265 = vunpack.c.l.b16 %v962
        %v1266 = vunpack.c.h.b16 %v962
        %v1267 = vunpack.c.l.b16 %v963
        %v1268 = vunpack.c.h.b16 %v963
        %v1269 = vunpack.c.l.b16 %v964
        %v1270 = vunpack.c.h.b16 %v964
        %v1271 = vunpack.c.l.b16 %v965
        %v1272 = vunpack.c.h.b16 %v965
        %v1273 = vunpack.c.l.b16 %v966
        %v1274 = vunpack.c.h.b16 %v966
        %v1275 = vunpack.c.l.b16 %v967
        %v1276 = vunpack.c.h.b16 %v967
        %v1277 = vunpack.c.l.b16 %v968
        %v1278 = vunpack.c.h.b16 %v968
        %v1279 = vunpack.c.l.b16 %v969
        %v1280 = vunpack.c.h.b16 %v969
        %v1281 = vunpack.c.l.b16 %v970
        %v1282 = vunpack.c.h.b16 %v970
        %v1283 = vunpack.c.l.b16 %v971
        %v1284 = vunpack.c.h.b16 %v971
        %v1285 = vunpack.c.l.b16 %v972
        %v1286 = vunpack.c.h.b16 %v972
        %v1287 = vunpack.c.l.b16 %v973
        %v1288 = vunpack.c.h.b16 %v973
        %v1289 = vunpack.c.l.b16 %v974
        %v1290 = vunpack.c.h.b16 %v974
        %v1291 = vunpack.c.l.b16 %v975
        %v1292 = vunpack.c.h.b16 %v975
        %v1293 = vunpack.c.l.b16 %v976
        %v1294 = vunpack.c.h.b16 %v976
        %v1295 = vunpack.c.l.b16 %v977
        %v1296 = vunpack.c.h.b16 %v977
        %v1297 = vunpack.c.l.b16 %v978
        %v1298 = vunpack.c.h.b16 %v978
        %v1299 = vunpack.c.l.b16 %v979
        %v1300 = vunpack.c.h.b16 %v979
        %v1301 = vunpack.c.l.b16 %v980
        %v1302 = vunpack.c.h.b16 %v980
        %v1303 = vunpack.c.l.b16 %v981
        %v1304 = vunpack.c.h.b16 %v981
        %v1305 = vunpack.c.l.b16 %v982
        %v1306 = vunpack.c.h.b16 %v982
        %v1307 = vunpack.c.l.b16 %v983
        %v1308 = vunpack.c.h.b16 %v983
        %v1309 = vunpack.c.l.b16 %v984
        %v1310 = vunpack.c.h.b16 %v984
        %v1311 = vunpack.c.l.b16 %v985
        %v1312 = vunpack.c.h.b16 %v985
        %v1313 = vunpack.c.l.b16 %v986
        %v1314 = vunpack.c.h.b16 %v986
        %v1315 = vunpack.c.l.b16 %v987
        %v1316 = vunpack.c.h.b16 %v987
        %v1317 = vunpack.c.l.b16 %v988
        %v1318 = vunpack.c.h.b16 %v988
        %v1319 = vunpack.c.l.b16 %v989
        %v1320 = vunpack.c.h.b16 %v989
        %v1321 = vunpack.c.l.b16 %v990
        %v1322 = vunpack.c.h.b16 %v990
        %v1323 = vunpack.c.l.b16 %v991
        %v1324 = vunpack.c.h.b16 %v991
        %v1325 = vunpack.c.l.b16 %v992
        %v1326 = vunpack.c.h.b16 %v992
        %v1327 = vunpack.c.l.b16 %v993
        %v1328 = vunpack.c.h.b16 %v993
        %v1329 = vunpack.c.l.b16 %v994
        %v1330 = vunpack.c.h.b16 %v994
        %v1331 = vunpack.c.l.b16 %v995
        %v1332 = vunpack.c.h.b16 %v995
        %v1333 = vunpack.c.l.b16 %v996
        %v1334 = vunpack.c.h.b16 %v996
        %v1335 = vunpack.c.l.b16 %v997
        %v1336 = vunpack.c.h.b16 %v997
        %v1337 = vunpack.c.l.b16 %v998
        %v1338 = vunpack.c.h.b16 %v998
        %v1339 = vunpack.c.l.b16 %v999
        %v1340 = vunpack.c.h.b16 %v999
        %v1341 = vunpack.c.l.b16 %v1000
        %v1342 = vunpack.c.h.b16 %v1000
        %v1343 = vunpack.c.l.b16 %v1001
        %v1344 = vunpack.c.h.b16 %v1001
        %v1345 = vunpack.c.l.b16 %v1002
        %v1346 = vunpack.c.h.b16 %v1002
        %v1347 = vunpack.c.l.b16 %v1003
        %v1348 = vunpack.c.h.b16 %v1003
        %v1349 = vunpack.c.l.b16 %v1004
        %v1350 = vunpack.c.h.b16 %v1004
        %v1351 = vunpack.c.l.b16 %v1005
        %v1352 = vunpack.c.h.b16 %v1005
        %v1353 = vunpack.c.l.b16 %v1006
        %v1354 = vunpack.c.h.b16 %v1006
        %v1355 = vunpack.c.l.b16 %v1007
        %v1356 = vunpack.c.h.b16 %v1007
        %v1357 = vunpack.c.l.b16 %v1008
        %v1358 = vunpack.c.h.b16 %v1008
        %v1359 = vunpack.c.l.b16 %v1009
        %v1360 = vunpack.c.h.b16 %v1009
        %v1361 = vunpack.c.l.b16 %v1010
        %v1362 = vunpack.c.h.b16 %v1010
        %v1363 = vunpack.c.l.b16 %v1011
        %v1364 = vunpack.c.h.b16 %v1011
        %v1365 = vunpack.c.l.b16 %v1012
        %v1366 = vunpack.c.h.b16 %v1012
        %v1367 = vunpack.c.l.b16 %v1013
        %v1368 = vunpack.c.h.b16 %v1013
        %v1369 = vunpack.c.l.b16 %v1014
        %v1370 = vunpack.c.h.b16 %v1014
        %v1371 = vunpack.c.l.b16 %v1015
        %v1372 = vunpack.c.h.b16 %v1015
        %v1373 = vunpack.c.l.b16 %v1016
        %v1374 = vunpack.c.h.b16 %v1016
        %v1375 = vunpack.c.l.b16 %v1017
        %v1376 = vunpack.c.h.b16 %v1017
        %v1377 = vunpack.c.l.b16 %v1018
        %v1378 = vunpack.c.h.b16 %v1018
        %v1379 = vunpack.c.l.b16 %v1019
        %v1380 = vunpack.c.h.b16 %v1019
        %v1381 = vunpack.c.l.b16 %v1020
        %v1382 = vunpack.c.h.b16 %v1020
        %v1383 = vunpack.c.l.b16 %v1021
        %v1384 = vunpack.c.h.b16 %v1021
        %v1385 = vunpack.c.l.b16 %v1022
        %v1386 = vunpack.c.h.b16 %v1022
        %v1387 = vunpack.c.l.b16 %v1023
        %v1388 = vunpack.c.h.b16 %v1023
        %v1389 = vunpack.c.l.b16 %v1024
        %v1390 = vunpack.c.h.b16 %v1024
        %v1391 = vunpack.c.l.b16 %v1025
        %v1392 = vunpack.c.h.b16 %v1025
        %v1393 = vunpack.c.l.b16 %v1026
        %v1394 = vunpack.c.h.b16 %v1026
        %v1395 = vunpack.c.l.b16 %v1027
        %v1396 = vunpack.c.h.b16 %v1027
        %v1397 = vunpack.c.l.b16 %v1028
        %v1398 = vunpack.c.h.b16 %v1028
        %v1399 = vunpack.c.l.b16 %v1029
        %v1400 = vunpack.c.h.b16 %v1029
        %v1401 = vunpack.c.l.b16 %v1030
        %v1402 = vunpack.c.h.b16 %v1030
        %v1403 = vunpack.c.l.b16 %v1031
        %v1404 = vunpack.c.h.b16 %v1031
        %v1405 = vunpack.c.l.b16 %v1032
        %v1406 = vunpack.c.h.b16 %v1032
        %v1407 = vunpack.c.l.b16 %v1033
        %v1408 = vunpack.c.h.b16 %v1033
        %v1409 = vunpack.c.l.b16 %v1034
        %v1410 = vunpack.c.h.b16 %v1034
        %v1411 = vunpack.c.l.b16 %v1035
        %v1412 = vunpack.c.h.b16 %v1035
        %v1413 = vunpack.c.l.b16 %v1036
        %v1414 = vunpack.c.h.b16 %v1036
        %v1415 = vunpack.c.l.b16 %v1037
        %v1416 = vunpack.c.h.b16 %v1037
        %v1417 = vunpack.c.l.b16 %v1038
        %v1418 = vunpack.c.h.b16 %v1038
        %v1419 = vunpack.c.l.b16 %v1039
        %v1420 = vunpack.c.h.b16 %v1039
        %v1421 = vunpack.c.l.b16 %v1040
        %v1422 = vunpack.c.h.b16 %v1040
        %v1423 = vunpack.c.l.b16 %v1041
        %v1424 = vunpack.c.h.b16 %v1041
        %v1425 = vunpack.c.l.b16 %v1042
        %v1426 = vunpack.c.h.b16 %v1042
        %v1427 = vunpack.c.l.b16 %v1043
        %v1428 = vunpack.c.h.b16 %v1043
        %v1429 = vunpack.c.l.b16 %v1044
        %v1430 = vunpack.c.h.b16 %v1044
        %v1431 = vunpack.c.l.b16 %v1045
        %v1432 = vunpack.c.h.b16 %v1045
        %v1433 = vunpack.c.l.b16 %v1046
        %v1434 = vunpack.c.h.b16 %v1046
        %v1435 = vunpack.c.l.b16 %v1047
        %v1436 = vunpack.c.h.b16 %v1047
        %v1437 = vunpack.c.l.b16 %v1048
        %v1438 = vunpack.c.h.b16 %v1048
        %v1439 = vunpack.c.l.b16 %v1049
        %v1440 = vunpack.c.h.b16 %v1049
        %v1441 = vunpack.c.l.b16 %v1050
        %v1442 = vunpack.c.h.b16 %v1050
        %v1443 = vunpack.c.l.b16 %v1051
        %v1444 = vunpack.c.h.b16 %v1051
        %v1445 = vunpack.c.l.b16 %v1052
        %v1446 = vunpack.c.h.b16 %v1052
        %v1447 = vunpack.c.l.b16 %v1053
        %v1448 = vunpack.c.h.b16 %v1053
        %v1449 = vunpack.c.l.b16 %v1054
        %v1450 = vunpack.c.h.b16 %v1054
        %v1451 = vunpack.c.l.b16 %v1055
        %v1452 = vunpack.c.h.b16 %v1055
        %v1453 = vunpack.c.l.b16 %v1056
        %v1454 = vunpack.c.h.b16 %v1056
        %v1455 = vunpack.c.l.b16 %v1057
        %v1456 = vunpack.c.h.b16 %v1057
        %v1457 = vunpack.c.l.b16 %v1058
        %v1458 = vunpack.c.h.b16 %v1058
        %v1459 = vunpack.c.l.b16 %v1059
        %v1460 = vunpack.c.h.b16 %v1059
        %v1461 = vunpack.c.l.b16 %v1060
        %v1462 = vunpack.c.h.b16 %v1060
        %v1463 = vunpack.c.l.b16 %v1061
        %v1464 = vunpack.c.h.b16 %v1061
        %v1465 = vunpack.c.l.b16 %v1062
        %v1466 = vunpack.c.h.b16 %v1062
        %v1467 = vunpack.c.l.b16 %v1063
        %v1468 = vunpack.c.h.b16 %v1063
        %v1469 = vunpack.c.l.b16 %v1064
        %v1470 = vunpack.c.h.b16 %v1064
        %v1471 = vunpack.c.l.b16 %v1065
        %v1472 = vunpack.c.h.b16 %v1065
        %v1473 = vunpack.c.l.b16 %v1066
        %v1474 = vunpack.c.h.b16 %v1066
        %v1475 = vunpack.c.l.b16 %v1067
        %v1476 = vunpack.c.h.b16 %v1067
        %v1477 = vunpack.c.l.b16 %v1068
        %v1478 = vunpack.c.h.b16 %v1068
        %v1479 = vunpack.c.l.b16 %v1069
        %v1480 = vunpack.c.h.b16 %v1069
        %v1481 = vunpack.c.l.b16 %v1070
        %v1482 = vunpack.c.h.b16 %v1070
        %v1483 = vunpack.c.l.b16 %v1071
        %v1484 = vunpack.c.h.b16 %v1071
        %v1485 = vunpack.c.l.b16 %v1072
        %v1486 = vunpack.c.h.b16 %v1072
        %v1487 = vunpack.c.l.b16 %v1073
        %v1488 = vunpack.c.h.b16 %v1073
        %v1489 = vunpack.c.l.b16 %v1074
        %v1490 = vunpack.c.h.b16 %v1074
        %v1491 = vunpack.c.l.b16 %v1075
        %v1492 = vunpack.c.h.b16 %v1075
        %v1493 = vunpack.c.l.b16 %v1076
        %v1494 = vunpack.c.h.b16 %v1076
        %v1495 = vunpack.c.l.b16 %v1077
        %v1496 = vunpack.c.h.b16 %v1077
        %v1497 = vunpack.c.l.b16 %v1078
        %v1498 = vunpack.c.h.b16 %v1078
        %v1499 = vunpack.c.l.b16 %v1079
        %v1500 = vunpack.c.h.b16 %v1079
        %v1501 = vunpack.c.l.b16 %v1080
        %v1502 = vunpack.c.h.b16 %v1080
        %v1503 = vunpack.c.l.b16 %v1081
        %v1504 = vunpack.c.h.b16 %v1081
        %v1505 = vunpack.c.l.b16 %v1082
        %v1506 = vunpack.c.h.b16 %v1082
        %v1507 = vunpack.c.l.b16 %v1083
        %v1508 = vunpack.c.h.b16 %v1083
        %v1509 = vunpack.c.l.b16 %v1084
        %v1510 = vunpack.c.h.b16 %v1084
        %v1511 = vunpack.c.l.b16 %v1085
        %v1512 = vunpack.c.h.b16 %v1085
        %v1513 = vunpack.c.l.b16 %v1086
        %v1514 = vunpack.c.h.b16 %v1086
        %v1515 = vunpack.c.l.b16 %v1087
        %v1516 = vunpack.c.h.b16 %v1087
        %v1517 = vunpack.c.l.b16 %v1088
        %v1518 = vunpack.c.h.b16 %v1088
        %v1519 = vpack.c.b16 %v1265, %v1263
        %v1520 = vpack.c.b16 %v1266, %v1264
        %v1521 = vpack.c.b16 %v1269, %v1267
        %v1522 = vpack.c.b16 %v1270, %v1268
        %v1523 = vpack.c.b16 %v1273, %v1271
        %v1524 = vpack.c.b16 %v1274, %v1272
        %v1525 = vpack.c.b16 %v1277, %v1275
        %v1526 = vpack.c.b16 %v1278, %v1276
        %v1527 = vpack.c.b16 %v1281, %v1279
        %v1528 = vpack.c.b16 %v1282, %v1280
        %v1529 = vpack.c.b16 %v1285, %v1283
        %v1530 = vpack.c.b16 %v1286, %v1284
        %v1531 = vpack.c.b16 %v1289, %v1287
        %v1532 = vpack.c.b16 %v1290, %v1288
        %v1533 = vpack.c.b16 %v1293, %v1291
        %v1534 = vpack.c.b16 %v1294, %v1292
        %v1535 = vpack.c.b16 %v1297, %v1295
        %v1536 = vpack.c.b16 %v1298, %v1296
        %v1537 = vpack.c.b16 %v1301, %v1299
        %v1538 = vpack.c.b16 %v1302, %v1300
        %v1539 = vpack.c.b16 %v1305, %v1303
        %v1540 = vpack.c.b16 %v1306, %v1304
        %v1541 = vpack.c.b16 %v1309, %v1307
        %v1542 = vpack.c.b16 %v1310, %v1308
        %v1543 = vpack.c.b16 %v1313, %v1311
        %v1544 = vpack.c.b16 %v1314, %v1312
        %v1545 = vpack.c.b16 %v1317, %v1315
        %v1546 = vpack.c.b16 %v1318, %v1316
        %v1547 = vpack.c.b16 %v1321, %v1319
        %v1548 = vpack.c.b16 %v1322, %v1320
        %v1549 = vpack.c.b16 %v1325, %v1323
        %v1550 = vpack.c.b16 %v1326, %v1324
        %v1551 = vpack.c.b16 %v1329, %v1327
        %v1552 = vpack.c.b16 %v1330, %v1328
        %v1553 = vpack.c.b16 %v1333, %v1331
        %v1554 = vpack.c.b16 %v1334, %v1332
        %v1555 = vpack.c.b16 %v1337, %v1335
        %v1556 = vpack.c.b16 %v1338, %v1336
        %v1557 = vpack.c.b16 %v1341, %v1339
        %v1558 = vpack.c.b16 %v1342, %v1340
        %v1559 = vpack.c.b16 %v1345, %v1343
        %v1560 = vpack.c.b16 %v1346, %v1344
        %v1561 = vpack.c.b16 %v1349, %v1347
        %v1562 = vpack.c.b16 %v1350, %v1348
        %v1563 = vpack.c.b16 %v1353, %v1351
        %v1564 = vpack.c.b16 %v1354, %v1352
        %v1565 = vpack.c.b16 %v1357, %v1355
        %v1566 = vpack.c.b16 %v1358, %v1356
        %v1567 = vpack.c.b16 %v1361, %v1359
        %v1568 = vpack.c.b16 %v1362, %v1360
        %v1569 = vpack.c.b16 %v1365, %v1363
        %v1570 = vpack.c.b16 %v1366, %v1364
        %v1571 = vpack.c.b16 %v1369, %v1367
        %v1572 = vpack.c.b16 %v1370, %v1368
        %v1573 = vpack.c.b16 %v1373, %v1371
        %v1574 = vpack.c.b16 %v1374, %v1372
        %v1575 = vpack.c.b16 %v1377, %v1375
        %v1576 = vpack.c.b16 %v1378, %v1376
        %v1577 = vpack.c.b16 %v1381, %v1379
        %v1578 = vpack.c.b16 %v1382, %v1380
        %v1579 = vpack.c.b16 %v1385, %v1383
        %v1580 = vpack.c.b16 %v1386, %v1384
        %v1581 = vpack.c.b16 %v1389, %v1387
        %v1582 = vpack.c.b16 %v1390, %v1388
        %v1583 = vpack.c.b16 %v1393, %v1391
        %v1584 = vpack.c.b16 %v1394, %v1392
        %v1585 = vpack.c.b16 %v1397, %v1395
        %v1586 = vpack.c.b16 %v1398, %v1396
        %v1587 = vpack.c.b16 %v1401, %v1399
        %v1588 = vpack.c.b16 %v1402, %v1400
        %v1589 = vpack.c.b16 %v1405, %v1403
        %v1590 = vpack.c.b16 %v1406, %v1404
        %v1591 = vpack.c.b16 %v1409, %v1407
        %v1592 = vpack.c.b16 %v1410, %v1408
        %v1593 = vpack.c.b16 %v1413, %v1411
        %v1594 = vpack.c.b16 %v1414, %v1412
        %v1595 = vpack.c.b16 %v1417, %v1415
        %v1596 = vpack.c.b16 %v1418, %v1416
        %v1597 = vpack.c.b16 %v1421, %v1419
        %v1598 = vpack.c.b16 %v1422, %v1420
        %v1599 = vpack.c.b16 %v1425, %v1423
        %v1600 = vpack.c.b16 %v1426, %v1424
        %v1601 = vpack.c.b16 %v1429, %v1427
        %v1602 = vpack.c.b16 %v1430, %v1428
        %v1603 = vpack.c.b16 %v1433, %v1431
        %v1604 = vpack.c.b16 %v1434, %v1432
        %v1605 = vpack.c.b16 %v1437, %v1435
        %v1606 = vpack.c.b16 %v1438, %v1436
        %v1607 = vpack.c.b16 %v1441, %v1439
        %v1608 = vpack.c.b16 %v1442, %v1440
        %v1609 = vpack.c.b16 %v1445, %v1443
        %v1610 = vpack.c.b16 %v1446, %v1444
        %v1611 = vpack.c.b16 %v1449, %v1447
        %v1612 = vpack.c.b16 %v1450, %v1448
        %v1613 = vpack.c.b16 %v1453, %v1451
        %v1614 = vpack.c.b16 %v1454, %v1452
        %v1615 = vpack.c.b16 %v1457, %v1455
        %v1616 = vpack.c.b16 %v1458, %v1456
        %v1617 = vpack.c.b16 %v1461, %v1459
        %v1618 = vpack.c.b16 %v1462, %v1460
        %v1619 = vpack.c.b16 %v1465, %v1463
        %v1620 = vpack.c.b16 %v1466, %v1464
        %v1621 = vpack.c.b16 %v1469, %v1467
        %v1622 = vpack.c.b16 %v1470, %v1468
        %v1623 = vpack.c.b16 %v1473, %v1471
        %v1624 = vpack.c.b16 %v1474, %v1472
        %v1625 = vpack.c.b16 %v1477, %v1475
        %v1626 = vpack.c.b16 %v1478, %v1476
        %v1627 = vpack.c.b16 %v1481, %v1479
        %v1628 = vpack.c.b16 %v1482, %v1480
        %v1629 = vpack.c.b16 %v1485, %v1483
        %v1630 = vpack.c.b16 %v1486, %v1484
        %v1631 = vpack.c.b16 %v1489, %v1487
        %v1632 = vpack.c.b16 %v1490, %v1488
        %v1633 = vpack.c.b16 %v1493, %v1491
        %v1634 = vpack.c.b16 %v1494, %v1492
        %v1635 = vpack.c.b16 %v1497, %v1495
        %v1636 = vpack.c.b16 %v1498, %v1496
        %v1637 = vpack.c.b16 %v1501, %v1499
        %v1638 = vpack.c.b16 %v1502, %v1500
        %v1639 = vpack.c.b16 %v1505, %v1503
        %v1640 = vpack.c.b16 %v1506, %v1504
        %v1641 = vpack.c.b16 %v1509, %v1507
        %v1642 = vpack.c.b16 %v1510, %v1508
        %v1643 = vpack.c.b16 %v1513, %v1511
        %v1644 = vpack.c.b16 %v1514, %v1512
        %v1645 = vpack.c.b16 %v1517, %v1515
        %v1646 = vpack.c.b16 %v1518, %v1516
        %1775 = vmatpush.bf16.msra.mxu0 %v1533
        %1776 = vmatpush.bf16.msra.mxu0 %v1531
        %1777 = vmatpush.bf16.msra.mxu0 %v1529
        %1778 = vmatpush.bf16.msra.mxu0 %v1527
        %1779 = vmatpush.bf16.msra.mxu0 %v1525
        %1780 = vmatpush.bf16.msra.mxu0 %v1523
        %1781 = vmatpush.bf16.msra.mxu0 %v1521
        %1782 = vmatpush.bf16.msra.mxu0 %v1519
        %1783 = vmatmul.bf16.gmra.mxu0 %v1119
        %v1784 = vpop.f32.mrf.mxu0
        %v1785 = vadd.f32 %v1091, %v1784
        %v1786 = vpop.f32.mrf.mxu0
        %v1787 = vadd.f32 %v1091, %v1786
        %1788 = vdwg.mxu0
        %1789 = vmatpush.bf16.msra.mxu0 %v1549
        %1790 = vmatpush.bf16.msra.mxu0 %v1547
        %1791 = vmatpush.bf16.msra.mxu0 %v1545
        %1792 = vmatpush.bf16.msra.mxu0 %v1543
        %1793 = vmatpush.bf16.msra.mxu0 %v1541
        %1794 = vmatpush.bf16.msra.mxu0 %v1539
        %1795 = vmatpush.bf16.msra.mxu0 %v1537
        %1796 = vmatpush.bf16.msra.mxu0 %v1535
        %1797 = vmatmul.bf16.gmra.mxu0 %v1120
        %v1798 = vpop.f32.mrf.mxu0
        %v1799 = vadd.f32 %v1785, %v1798
        %v1800 = vpop.f32.mrf.mxu0
        %v1801 = vadd.f32 %v1787, %v1800
        %1802 = vdwg.mxu0
        %1803 = vmatpush.bf16.msra.mxu0 %v1565
        %1804 = vmatpush.bf16.msra.mxu0 %v1563
        %1805 = vmatpush.bf16.msra.mxu0 %v1561
        %1806 = vmatpush.bf16.msra.mxu0 %v1559
        %1807 = vmatpush.bf16.msra.mxu0 %v1557
        %1808 = vmatpush.bf16.msra.mxu0 %v1555
        %1809 = vmatpush.bf16.msra.mxu0 %v1553
        %1810 = vmatpush.bf16.msra.mxu0 %v1551
        %1811 = vmatmul.bf16.gmra.mxu0 %v1121
        %v1812 = vpop.f32.mrf.mxu0
        %v1813 = vadd.f32 %v1799, %v1812
        %v1814 = vpop.f32.mrf.mxu0
        %v1815 = vadd.f32 %v1801, %v1814
        %1816 = vdwg.mxu0
        %1817 = vmatpush.bf16.msra.mxu0 %v1581
        %1818 = vmatpush.bf16.msra.mxu0 %v1579
        %1819 = vmatpush.bf16.msra.mxu0 %v1577
        %1820 = vmatpush.bf16.msra.mxu0 %v1575
        %1821 = vmatpush.bf16.msra.mxu0 %v1573
        %1822 = vmatpush.bf16.msra.mxu0 %v1571
        %1823 = vmatpush.bf16.msra.mxu0 %v1569
        %1824 = vmatpush.bf16.msra.mxu0 %v1567
        %1825 = vmatmul.bf16.gmra.mxu0 %v1122
        %v1826 = vpop.f32.mrf.mxu0
        %v1827 = vadd.f32 %v1813, %v1826
        %v1828 = vpop.f32.mrf.mxu0
        %v1829 = vadd.f32 %v1815, %v1828
        %1830 = vdwg.mxu0
        %1831 = vmatpush.bf16.msra.mxu0 %v1597
        %1832 = vmatpush.bf16.msra.mxu0 %v1595
        %1833 = vmatpush.bf16.msra.mxu0 %v1593
        %1834 = vmatpush.bf16.msra.mxu0 %v1591
        %1835 = vmatpush.bf16.msra.mxu0 %v1589
        %1836 = vmatpush.bf16.msra.mxu0 %v1587
        %1837 = vmatpush.bf16.msra.mxu0 %v1585
        %1838 = vmatpush.bf16.msra.mxu0 %v1583
        %1839 = vmatmul.bf16.gmra.mxu0 %v1123
        %v1840 = vpop.f32.mrf.mxu0
        %v1841 = vadd.f32 %v1827, %v1840
        %v1842 = vpop.f32.mrf.mxu0
        %v1843 = vadd.f32 %v1829, %v1842
        %1844 = vdwg.mxu0
        %1845 = vmatpush.bf16.msra.mxu0 %v1613
        %1846 = vmatpush.bf16.msra.mxu0 %v1611
        %1847 = vmatpush.bf16.msra.mxu0 %v1609
        %1848 = vmatpush.bf16.msra.mxu0 %v1607
        %1849 = vmatpush.bf16.msra.mxu0 %v1605
        %1850 = vmatpush.bf16.msra.mxu0 %v1603
        %1851 = vmatpush.bf16.msra.mxu0 %v1601
        %1852 = vmatpush.bf16.msra.mxu0 %v1599
        %1853 = vmatmul.bf16.gmra.mxu0 %v1124
        %v1854 = vpop.f32.mrf.mxu0
        %v1855 = vadd.f32 %v1841, %v1854
        %v1856 = vpop.f32.mrf.mxu0
        %v1857 = vadd.f32 %v1843, %v1856
        %1858 = vdwg.mxu0
        %1859 = vmatpush.bf16.msra.mxu0 %v1629
        %1860 = vmatpush.bf16.msra.mxu0 %v1627
        %1861 = vmatpush.bf16.msra.mxu0 %v1625
        %1862 = vmatpush.bf16.msra.mxu0 %v1623
        %1863 = vmatpush.bf16.msra.mxu0 %v1621
        %1864 = vmatpush.bf16.msra.mxu0 %v1619
        %1865 = vmatpush.bf16.msra.mxu0 %v1617
        %1866 = vmatpush.bf16.msra.mxu0 %v1615
        %1867 = vmatmul.bf16.gmra.mxu0 %v1125
        %v1868 = vpop.f32.mrf.mxu0
        %v1869 = vadd.f32 %v1855, %v1868
        %v1870 = vpop.f32.mrf.mxu0
        %v1871 = vadd.f32 %v1857, %v1870
        %1872 = vdwg.mxu0
        %1873 = vmatpush.bf16.msra.mxu0 %v1645
        %1874 = vmatpush.bf16.msra.mxu0 %v1643
        %1875 = vmatpush.bf16.msra.mxu0 %v1641
        %1876 = vmatpush.bf16.msra.mxu0 %v1639
        %1877 = vmatpush.bf16.msra.mxu0 %v1637
        %1878 = vmatpush.bf16.msra.mxu0 %v1635
        %1879 = vmatpush.bf16.msra.mxu0 %v1633
        %1880 = vmatpush.bf16.msra.mxu0 %v1631
        %1881 = vmatmul.bf16.gmra.mxu0 %v1126
        %v1882 = vpop.f32.mrf.mxu0
        %v1883 = vadd.f32 %v1869, %v1882
        %v1884 = vpop.f32.mrf.mxu0
        %v1885 = vadd.f32 %v1871, %v1884
        %1886 = vdwg.mxu0
        %1887 = vmatpush.bf16.msra.mxu0 %v1534
        %1888 = vmatpush.bf16.msra.mxu0 %v1532
        %1889 = vmatpush.bf16.msra.mxu0 %v1530
        %1890 = vmatpush.bf16.msra.mxu0 %v1528
        %1891 = vmatpush.bf16.msra.mxu0 %v1526
        %1892 = vmatpush.bf16.msra.mxu0 %v1524
        %1893 = vmatpush.bf16.msra.mxu0 %v1522
        %1894 = vmatpush.bf16.msra.mxu0 %v1520
        %1895 = vmatmul.bf16.gmra.mxu0 %v1119
        %v1896 = vpop.f32.mrf.mxu0
        %v1897 = vadd.f32 %v1092, %v1896
        %v1898 = vpop.f32.mrf.mxu0
        %v1899 = vadd.f32 %v1092, %v1898
        %1900 = vdwg.mxu0
        %1901 = vmatpush.bf16.msra.mxu0 %v1550
        %1902 = vmatpush.bf16.msra.mxu0 %v1548
        %1903 = vmatpush.bf16.msra.mxu0 %v1546
        %1904 = vmatpush.bf16.msra.mxu0 %v1544
        %1905 = vmatpush.bf16.msra.mxu0 %v1542
        %1906 = vmatpush.bf16.msra.mxu0 %v1540
        %1907 = vmatpush.bf16.msra.mxu0 %v1538
        %1908 = vmatpush.bf16.msra.mxu0 %v1536
        %1909 = vmatmul.bf16.gmra.mxu0 %v1120
        %v1910 = vpop.f32.mrf.mxu0
        %v1911 = vadd.f32 %v1897, %v1910
        %v1912 = vpop.f32.mrf.mxu0
        %v1913 = vadd.f32 %v1899, %v1912
        %1914 = vdwg.mxu0
        %1915 = vmatpush.bf16.msra.mxu0 %v1566
        %1916 = vmatpush.bf16.msra.mxu0 %v1564
        %1917 = vmatpush.bf16.msra.mxu0 %v1562
        %1918 = vmatpush.bf16.msra.mxu0 %v1560
        %1919 = vmatpush.bf16.msra.mxu0 %v1558
        %1920 = vmatpush.bf16.msra.mxu0 %v1556
        %1921 = vmatpush.bf16.msra.mxu0 %v1554
        %1922 = vmatpush.bf16.msra.mxu0 %v1552
        %1923 = vmatmul.bf16.gmra.mxu0 %v1121
        %v1924 = vpop.f32.mrf.mxu0
        %v1925 = vadd.f32 %v1911, %v1924
        %v1926 = vpop.f32.mrf.mxu0
        %v1927 = vadd.f32 %v1913, %v1926
        %1928 = vdwg.mxu0
        %1929 = vmatpush.bf16.msra.mxu0 %v1582
        %1930 = vmatpush.bf16.msra.mxu0 %v1580
        %1931 = vmatpush.bf16.msra.mxu0 %v1578
        %1932 = vmatpush.bf16.msra.mxu0 %v1576
        %1933 = vmatpush.bf16.msra.mxu0 %v1574
        %1934 = vmatpush.bf16.msra.mxu0 %v1572
        %1935 = vmatpush.bf16.msra.mxu0 %v1570
        %1936 = vmatpush.bf16.msra.mxu0 %v1568
        %1937 = vmatmul.bf16.gmra.mxu0 %v1122
        %v1938 = vpop.f32.mrf.mxu0
        %v1939 = vadd.f32 %v1925, %v1938
        %v1940 = vpop.f32.mrf.mxu0
        %v1941 = vadd.f32 %v1927, %v1940
        %1942 = vdwg.mxu0
        %1943 = vmatpush.bf16.msra.mxu0 %v1598
        %1944 = vmatpush.bf16.msra.mxu0 %v1596
        %1945 = vmatpush.bf16.msra.mxu0 %v1594
        %1946 = vmatpush.bf16.msra.mxu0 %v1592
        %1947 = vmatpush.bf16.msra.mxu0 %v1590
        %1948 = vmatpush.bf16.msra.mxu0 %v1588
        %1949 = vmatpush.bf16.msra.mxu0 %v1586
        %1950 = vmatpush.bf16.msra.mxu0 %v1584
        %1951 = vmatmul.bf16.gmra.mxu0 %v1123
        %v1952 = vpop.f32.mrf.mxu0
        %v1953 = vadd.f32 %v1939, %v1952
        %v1954 = vpop.f32.mrf.mxu0
        %v1955 = vadd.f32 %v1941, %v1954
        %1956 = vdwg.mxu0
        %1957 = vmatpush.bf16.msra.mxu0 %v1614
        %1958 = vmatpush.bf16.msra.mxu0 %v1612
        %1959 = vmatpush.bf16.msra.mxu0 %v1610
        %1960 = vmatpush.bf16.msra.mxu0 %v1608
        %1961 = vmatpush.bf16.msra.mxu0 %v1606
        %1962 = vmatpush.bf16.msra.mxu0 %v1604
        %1963 = vmatpush.bf16.msra.mxu0 %v1602
        %1964 = vmatpush.bf16.msra.mxu0 %v1600
        %1965 = vmatmul.bf16.gmra.mxu0 %v1124
        %v1966 = vpop.f32.mrf.mxu0
        %v1967 = vadd.f32 %v1953, %v1966
        %v1968 = vpop.f32.mrf.mxu0
        %v1969 = vadd.f32 %v1955, %v1968
        %1970 = vdwg.mxu0
        %1971 = vmatpush.bf16.msra.mxu0 %v1630
        %1972 = vmatpush.bf16.msra.mxu0 %v1628
        %1973 = vmatpush.bf16.msra.mxu0 %v1626
        %1974 = vmatpush.bf16.msra.mxu0 %v1624
        %1975 = vmatpush.bf16.msra.mxu0 %v1622
        %1976 = vmatpush.bf16.msra.mxu0 %v1620
        %1977 = vmatpush.bf16.msra.mxu0 %v1618
        %1978 = vmatpush.bf16.msra.mxu0 %v1616
        %1979 = vmatmul.bf16.gmra.mxu0 %v1125
        %v1980 = vpop.f32.mrf.mxu0
        %v1981 = vadd.f32 %v1967, %v1980
        %v1982 = vpop.f32.mrf.mxu0
        %v1983 = vadd.f32 %v1969, %v1982
        %1984 = vdwg.mxu0
        %1985 = vmatpush.bf16.msra.mxu0 %v1646
        %1986 = vmatpush.bf16.msra.mxu0 %v1644
        %1987 = vmatpush.bf16.msra.mxu0 %v1642
        %1988 = vmatpush.bf16.msra.mxu0 %v1640
        %1989 = vmatpush.bf16.msra.mxu0 %v1638
        %1990 = vmatpush.bf16.msra.mxu0 %v1636
        %1991 = vmatpush.bf16.msra.mxu0 %v1634
        %1992 = vmatpush.bf16.msra.mxu0 %v1632
        %1993 = vmatmul.bf16.gmra.mxu0 %v1126
        %v1994 = vpop.f32.mrf.mxu0
        %v1995 = vadd.f32 %v1981, %v1994
        %v1996 = vpop.f32.mrf.mxu0
        %v1997 = vadd.f32 %v1983, %v1996
        %1998 = vdwg.mxu0
        %v1999 = vmax.f32 %v1883, 0.0
        %v2000 = vmax.f32 %v1995, 0.0
        %v2001 = vmax.f32 %v1885, 0.0
        %v2002 = vmax.f32 %v1997, 0.0
        %v2003 = vld [vmem:[%s790] sm:$0x3]
        %v2005 = vperm.slane %v2003, 0
        %v2006 = vperm.slane %v2003, 1
        %v2009 = vmul.f32 %v1999, %v2005
        %v2010 = vmul.f32 %v2000, %v2006
        %v2011 = vmul.f32 %v2001, %v2005
        %v2012 = vmul.f32 %v2002, %v2006
        %v2013 = vld [vmem:[%s800] sm:$0x3]
        %v2015 = vperm.slane %v2013, 0
        %v2016 = vperm.slane %v2013, 1
        %v2019 = vadd.f32 %v2009, %v2015
        %v2020 = vadd.f32 %v2010, %v2016
        %v2021 = vadd.f32 %v2011, %v2015
        %v2022 = vadd.f32 %v2012, %v2016
        %s2023 = scalar_lea.vmem %s790, 2 [#allocation12]
        %v2024 = vld [vmem:[%s2023] sm:$0x3]
        %v2026 = vperm.slane %v2024, 0
        %v2027 = vperm.slane %v2024, 1
        %v2030 = vmul.f32 %v1999, %v2026
        %v2031 = vmul.f32 %v2000, %v2027
        %v2032 = vmul.f32 %v2001, %v2026
        %v2033 = vmul.f32 %v2002, %v2027
        %s2034 = scalar_lea.vmem %s800, 2 [#allocation14]
        %v2035 = vld [vmem:[%s2034] sm:$0x3]
        %v2037 = vperm.slane %v2035, 0
        %v2038 = vperm.slane %v2035, 1
        %v2041 = vadd.f32 %v2030, %v2037
        %v2042 = vadd.f32 %v2031, %v2038
        %v2043 = vadd.f32 %v2032, %v2037
        %v2044 = vadd.f32 %v2033, %v2038
        %v2045 = vld [vmem:[#allocation2] sm:$0xff]
        %v2046 = vld [vmem:[#allocation2 + $0x8] sm:$0xff]
        %v2047 = vld [vmem:[#allocation2 + $0x10] sm:$0xff]
        %v2048 = vld [vmem:[#allocation2 + $0x18] sm:$0xff]
        %v2049 = vld [vmem:[#allocation2 + $0x20] sm:$0xff]
        %v2050 = vld [vmem:[#allocation2 + $0x28] sm:$0xff]
        %v2051 = vld [vmem:[#allocation2 + $0x30] sm:$0xff]
        %v2052 = vld [vmem:[#allocation2 + $0x38] sm:$0xff]
        %v2053 = vld [vmem:[#allocation2 + $0x40] sm:$0xff]
        %v2054 = vld [vmem:[#allocation2 + $0x48] sm:$0xff]
        %v2055 = vld [vmem:[#allocation2 + $0x50] sm:$0xff]
        %v2056 = vld [vmem:[#allocation2 + $0x58] sm:$0xff]
        %v2057 = vld [vmem:[#allocation2 + $0x60] sm:$0xff]
        %v2058 = vld [vmem:[#allocation2 + $0x68] sm:$0xff]
        %v2059 = vld [vmem:[#allocation2 + $0x70] sm:$0xff]
        %v2060 = vld [vmem:[#allocation2 + $0x78] sm:$0xff]
        %v2061 = vpack.c.bf16 %v2021, %v2019
        %v2062 = vpack.c.bf16 %v2022, %v2020
        %v2063 = vpack.c.bf16 %v2043, %v2041
        %v2064 = vpack.c.bf16 %v2044, %v2042
        %v2065 = vld [vmem:[%s770] sm:$0xff]
        %v2066 = vld [vmem:[%s770 + $0x8] sm:$0xff]
        %v2067 = vld [vmem:[%s770 + $0x10] sm:$0xff]
        %v2068 = vld [vmem:[%s770 + $0x18] sm:$0xff]
        %v2069 = vld [vmem:[%s770 + $0x20] sm:$0xff]
        %v2070 = vld [vmem:[%s770 + $0x28] sm:$0xff]
        %v2071 = vld [vmem:[%s770 + $0x30] sm:$0xff]
        %v2072 = vld [vmem:[%s770 + $0x38] sm:$0xff]
        %v2073 = vld [vmem:[%s770 + $0x40] sm:$0xff]
        %v2074 = vld [vmem:[%s770 + $0x48] sm:$0xff]
        %v2075 = vld [vmem:[%s770 + $0x50] sm:$0xff]
        %v2076 = vld [vmem:[%s770 + $0x58] sm:$0xff]
        %v2077 = vld [vmem:[%s770 + $0x60] sm:$0xff]
        %v2078 = vld [vmem:[%s770 + $0x68] sm:$0xff]
        %v2079 = vld [vmem:[%s770 + $0x70] sm:$0xff]
        %v2080 = vld [vmem:[%s770 + $0x78] sm:$0xff]
        %v2081 = vld [vmem:[%s770 + $0x80] sm:$0xff]
        %v2082 = vld [vmem:[%s770 + $0x88] sm:$0xff]
        %v2083 = vld [vmem:[%s770 + $0x90] sm:$0xff]
        %v2084 = vld [vmem:[%s770 + $0x98] sm:$0xff]
        %v2085 = vld [vmem:[%s770 + $0xa0] sm:$0xff]
        %v2086 = vld [vmem:[%s770 + $0xa8] sm:$0xff]
        %v2087 = vld [vmem:[%s770 + $0xb0] sm:$0xff]
        %v2088 = vld [vmem:[%s770 + $0xb8] sm:$0xff]
        %v2089 = vld [vmem:[%s770 + $0xc0] sm:$0xff]
        %v2090 = vld [vmem:[%s770 + $0xc8] sm:$0xff]
        %v2091 = vld [vmem:[%s770 + $0xd0] sm:$0xff]
        %v2092 = vld [vmem:[%s770 + $0xd8] sm:$0xff]
        %v2093 = vld [vmem:[%s770 + $0xe0] sm:$0xff]
        %v2094 = vld [vmem:[%s770 + $0xe8] sm:$0xff]
        %v2095 = vld [vmem:[%s770 + $0xf0] sm:$0xff]
        %v2096 = vld [vmem:[%s770 + $0xf8] sm:$0xff]
        %v2097 = vld [vmem:[%s770 + $0x100] sm:$0xff]
        %v2098 = vld [vmem:[%s770 + $0x108] sm:$0xff]
        %v2099 = vld [vmem:[%s770 + $0x110] sm:$0xff]
        %v2100 = vld [vmem:[%s770 + $0x118] sm:$0xff]
        %v2101 = vld [vmem:[%s770 + $0x120] sm:$0xff]
        %v2102 = vld [vmem:[%s770 + $0x128] sm:$0xff]
        %v2103 = vld [vmem:[%s770 + $0x130] sm:$0xff]
        %v2104 = vld [vmem:[%s770 + $0x138] sm:$0xff]
        %v2105 = vld [vmem:[%s770 + $0x140] sm:$0xff]
        %v2106 = vld [vmem:[%s770 + $0x148] sm:$0xff]
        %v2107 = vld [vmem:[%s770 + $0x150] sm:$0xff]
        %v2108 = vld [vmem:[%s770 + $0x158] sm:$0xff]
        %v2109 = vld [vmem:[%s770 + $0x160] sm:$0xff]
        %v2110 = vld [vmem:[%s770 + $0x168] sm:$0xff]
        %v2111 = vld [vmem:[%s770 + $0x170] sm:$0xff]
        %v2112 = vld [vmem:[%s770 + $0x178] sm:$0xff]
        %v2113 = vld [vmem:[%s770 + $0x180] sm:$0xff]
        %v2114 = vld [vmem:[%s770 + $0x188] sm:$0xff]
        %v2115 = vld [vmem:[%s770 + $0x190] sm:$0xff]
        %v2116 = vld [vmem:[%s770 + $0x198] sm:$0xff]
        %v2117 = vld [vmem:[%s770 + $0x1a0] sm:$0xff]
        %v2118 = vld [vmem:[%s770 + $0x1a8] sm:$0xff]
        %v2119 = vld [vmem:[%s770 + $0x1b0] sm:$0xff]
        %v2120 = vld [vmem:[%s770 + $0x1b8] sm:$0xff]
        %v2121 = vld [vmem:[%s770 + $0x1c0] sm:$0xff]
        %v2122 = vld [vmem:[%s770 + $0x1c8] sm:$0xff]
        %v2123 = vld [vmem:[%s770 + $0x1d0] sm:$0xff]
        %v2124 = vld [vmem:[%s770 + $0x1d8] sm:$0xff]
        %v2125 = vld [vmem:[%s770 + $0x1e0] sm:$0xff]
        %v2126 = vld [vmem:[%s770 + $0x1e8] sm:$0xff]
        %v2127 = vld [vmem:[%s770 + $0x1f0] sm:$0xff]
        %v2128 = vld [vmem:[%s770 + $0x1f8] sm:$0xff]
        %v2193 = vunpack.c.l.b16 %v2065
        %v2194 = vunpack.c.h.b16 %v2065
        %v2195 = vunpack.c.l.b16 %v2066
        %v2196 = vunpack.c.h.b16 %v2066
        %v2197 = vunpack.c.l.b16 %v2067
        %v2198 = vunpack.c.h.b16 %v2067
        %v2199 = vunpack.c.l.b16 %v2068
        %v2200 = vunpack.c.h.b16 %v2068
        %v2201 = vunpack.c.l.b16 %v2069
        %v2202 = vunpack.c.h.b16 %v2069
        %v2203 = vunpack.c.l.b16 %v2070
        %v2204 = vunpack.c.h.b16 %v2070
        %v2205 = vunpack.c.l.b16 %v2071
        %v2206 = vunpack.c.h.b16 %v2071
        %v2207 = vunpack.c.l.b16 %v2072
        %v2208 = vunpack.c.h.b16 %v2072
        %v2209 = vunpack.c.l.b16 %v2073
        %v2210 = vunpack.c.h.b16 %v2073
        %v2211 = vunpack.c.l.b16 %v2074
        %v2212 = vunpack.c.h.b16 %v2074
        %v2213 = vunpack.c.l.b16 %v2075
        %v2214 = vunpack.c.h.b16 %v2075
        %v2215 = vunpack.c.l.b16 %v2076
        %v2216 = vunpack.c.h.b16 %v2076
        %v2217 = vunpack.c.l.b16 %v2077
        %v2218 = vunpack.c.h.b16 %v2077
        %v2219 = vunpack.c.l.b16 %v2078
        %v2220 = vunpack.c.h.b16 %v2078
        %v2221 = vunpack.c.l.b16 %v2079
        %v2222 = vunpack.c.h.b16 %v2079
        %v2223 = vunpack.c.l.b16 %v2080
        %v2224 = vunpack.c.h.b16 %v2080
        %v2225 = vunpack.c.l.b16 %v2081
        %v2226 = vunpack.c.h.b16 %v2081
        %v2227 = vunpack.c.l.b16 %v2082
        %v2228 = vunpack.c.h.b16 %v2082
        %v2229 = vunpack.c.l.b16 %v2083
        %v2230 = vunpack.c.h.b16 %v2083
        %v2231 = vunpack.c.l.b16 %v2084
        %v2232 = vunpack.c.h.b16 %v2084
        %v2233 = vunpack.c.l.b16 %v2085
        %v2234 = vunpack.c.h.b16 %v2085
        %v2235 = vunpack.c.l.b16 %v2086
        %v2236 = vunpack.c.h.b16 %v2086
        %v2237 = vunpack.c.l.b16 %v2087
        %v2238 = vunpack.c.h.b16 %v2087
        %v2239 = vunpack.c.l.b16 %v2088
        %v2240 = vunpack.c.h.b16 %v2088
        %v2241 = vunpack.c.l.b16 %v2089
        %v2242 = vunpack.c.h.b16 %v2089
        %v2243 = vunpack.c.l.b16 %v2090
        %v2244 = vunpack.c.h.b16 %v2090
        %v2245 = vunpack.c.l.b16 %v2091
        %v2246 = vunpack.c.h.b16 %v2091
        %v2247 = vunpack.c.l.b16 %v2092
        %v2248 = vunpack.c.h.b16 %v2092
        %v2249 = vunpack.c.l.b16 %v2093
        %v2250 = vunpack.c.h.b16 %v2093
        %v2251 = vunpack.c.l.b16 %v2094
        %v2252 = vunpack.c.h.b16 %v2094
        %v2253 = vunpack.c.l.b16 %v2095
        %v2254 = vunpack.c.h.b16 %v2095
        %v2255 = vunpack.c.l.b16 %v2096
        %v2256 = vunpack.c.h.b16 %v2096
        %v2257 = vunpack.c.l.b16 %v2097
        %v2258 = vunpack.c.h.b16 %v2097
        %v2259 = vunpack.c.l.b16 %v2098
        %v2260 = vunpack.c.h.b16 %v2098
        %v2261 = vunpack.c.l.b16 %v2099
        %v2262 = vunpack.c.h.b16 %v2099
        %v2263 = vunpack.c.l.b16 %v2100
        %v2264 = vunpack.c.h.b16 %v2100
        %v2265 = vunpack.c.l.b16 %v2101
        %v2266 = vunpack.c.h.b16 %v2101
        %v2267 = vunpack.c.l.b16 %v2102
        %v2268 = vunpack.c.h.b16 %v2102
        %v2269 = vunpack.c.l.b16 %v2103
        %v2270 = vunpack.c.h.b16 %v2103
        %v2271 = vunpack.c.l.b16 %v2104
        %v2272 = vunpack.c.h.b16 %v2104
        %v2273 = vunpack.c.l.b16 %v2105
        %v2274 = vunpack.c.h.b16 %v2105
        %v2275 = vunpack.c.l.b16 %v2106
        %v2276 = vunpack.c.h.b16 %v2106
        %v2277 = vunpack.c.l.b16 %v2107
        %v2278 = vunpack.c.h.b16 %v2107
        %v2279 = vunpack.c.l.b16 %v2108
        %v2280 = vunpack.c.h.b16 %v2108
        %v2281 = vunpack.c.l.b16 %v2109
        %v2282 = vunpack.c.h.b16 %v2109
        %v2283 = vunpack.c.l.b16 %v2110
        %v2284 = vunpack.c.h.b16 %v2110
        %v2285 = vunpack.c.l.b16 %v2111
        %v2286 = vunpack.c.h.b16 %v2111
        %v2287 = vunpack.c.l.b16 %v2112
        %v2288 = vunpack.c.h.b16 %v2112
        %v2289 = vunpack.c.l.b16 %v2113
        %v2290 = vunpack.c.h.b16 %v2113
        %v2291 = vunpack.c.l.b16 %v2114
        %v2292 = vunpack.c.h.b16 %v2114
        %v2293 = vunpack.c.l.b16 %v2115
        %v2294 = vunpack.c.h.b16 %v2115
        %v2295 = vunpack.c.l.b16 %v2116
        %v2296 = vunpack.c.h.b16 %v2116
        %v2297 = vunpack.c.l.b16 %v2117
        %v2298 = vunpack.c.h.b16 %v2117
        %v2299 = vunpack.c.l.b16 %v2118
        %v2300 = vunpack.c.h.b16 %v2118
        %v2301 = vunpack.c.l.b16 %v2119
        %v2302 = vunpack.c.h.b16 %v2119
        %v2303 = vunpack.c.l.b16 %v2120
        %v2304 = vunpack.c.h.b16 %v2120
        %v2305 = vunpack.c.l.b16 %v2121
        %v2306 = vunpack.c.h.b16 %v2121
        %v2307 = vunpack.c.l.b16 %v2122
        %v2308 = vunpack.c.h.b16 %v2122
        %v2309 = vunpack.c.l.b16 %v2123
        %v2310 = vunpack.c.h.b16 %v2123
        %v2311 = vunpack.c.l.b16 %v2124
        %v2312 = vunpack.c.h.b16 %v2124
        %v2313 = vunpack.c.l.b16 %v2125
        %v2314 = vunpack.c.h.b16 %v2125
        %v2315 = vunpack.c.l.b16 %v2126
        %v2316 = vunpack.c.h.b16 %v2126
        %v2317 = vunpack.c.l.b16 %v2127
        %v2318 = vunpack.c.h.b16 %v2127
        %v2319 = vunpack.c.l.b16 %v2128
        %v2320 = vunpack.c.h.b16 %v2128
        %v2321 = vpack.c.b16 %v2197, %v2193
        %v2322 = vpack.c.b16 %v2198, %v2194
        %v2323 = vpack.c.b16 %v2199, %v2195
        %v2324 = vpack.c.b16 %v2200, %v2196
        %v2325 = vpack.c.b16 %v2205, %v2201
        %v2326 = vpack.c.b16 %v2206, %v2202
        %v2327 = vpack.c.b16 %v2207, %v2203
        %v2328 = vpack.c.b16 %v2208, %v2204
        %v2329 = vpack.c.b16 %v2213, %v2209
        %v2330 = vpack.c.b16 %v2214, %v2210
        %v2331 = vpack.c.b16 %v2215, %v2211
        %v2332 = vpack.c.b16 %v2216, %v2212
        %v2333 = vpack.c.b16 %v2221, %v2217
        %v2334 = vpack.c.b16 %v2222, %v2218
        %v2335 = vpack.c.b16 %v2223, %v2219
        %v2336 = vpack.c.b16 %v2224, %v2220
        %v2337 = vpack.c.b16 %v2229, %v2225
        %v2338 = vpack.c.b16 %v2230, %v2226
        %v2339 = vpack.c.b16 %v2231, %v2227
        %v2340 = vpack.c.b16 %v2232, %v2228
        %v2341 = vpack.c.b16 %v2237, %v2233
        %v2342 = vpack.c.b16 %v2238, %v2234
        %v2343 = vpack.c.b16 %v2239, %v2235
        %v2344 = vpack.c.b16 %v2240, %v2236
        %v2345 = vpack.c.b16 %v2245, %v2241
        %v2346 = vpack.c.b16 %v2246, %v2242
        %v2347 = vpack.c.b16 %v2247, %v2243
        %v2348 = vpack.c.b16 %v2248, %v2244
        %v2349 = vpack.c.b16 %v2253, %v2249
        %v2350 = vpack.c.b16 %v2254, %v2250
        %v2351 = vpack.c.b16 %v2255, %v2251
        %v2352 = vpack.c.b16 %v2256, %v2252
        %v2353 = vpack.c.b16 %v2261, %v2257
        %v2354 = vpack.c.b16 %v2262, %v2258
        %v2355 = vpack.c.b16 %v2263, %v2259
        %v2356 = vpack.c.b16 %v2264, %v2260
        %v2357 = vpack.c.b16 %v2269, %v2265
        %v2358 = vpack.c.b16 %v2270, %v2266
        %v2359 = vpack.c.b16 %v2271, %v2267
        %v2360 = vpack.c.b16 %v2272, %v2268
        %v2361 = vpack.c.b16 %v2277, %v2273
        %v2362 = vpack.c.b16 %v2278, %v2274
        %v2363 = vpack.c.b16 %v2279, %v2275
        %v2364 = vpack.c.b16 %v2280, %v2276
        %v2365 = vpack.c.b16 %v2285, %v2281
        %v2366 = vpack.c.b16 %v2286, %v2282
        %v2367 = vpack.c.b16 %v2287, %v2283
        %v2368 = vpack.c.b16 %v2288, %v2284
        %v2369 = vpack.c.b16 %v2293, %v2289
        %v2370 = vpack.c.b16 %v2294, %v2290
        %v2371 = vpack.c.b16 %v2295, %v2291
        %v2372 = vpack.c.b16 %v2296, %v2292
        %v2373 = vpack.c.b16 %v2301, %v2297
        %v2374 = vpack.c.b16 %v2302, %v2298
        %v2375 = vpack.c.b16 %v2303, %v2299
        %v2376 = vpack.c.b16 %v2304, %v2300
        %v2377 = vpack.c.b16 %v2309, %v2305
        %v2378 = vpack.c.b16 %v2310, %v2306
        %v2379 = vpack.c.b16 %v2311, %v2307
        %v2380 = vpack.c.b16 %v2312, %v2308
        %v2381 = vpack.c.b16 %v2317, %v2313
        %v2382 = vpack.c.b16 %v2318, %v2314
        %v2383 = vpack.c.b16 %v2319, %v2315
        %v2384 = vpack.c.b16 %v2320, %v2316
        %2449 = vmatpush.bf16.msra.mxu0 %v2349
        %2450 = vmatpush.bf16.msra.mxu0 %v2345
        %2451 = vmatpush.bf16.msra.mxu0 %v2341
        %2452 = vmatpush.bf16.msra.mxu0 %v2337
        %2453 = vmatpush.bf16.msra.mxu0 %v2333
        %2454 = vmatpush.bf16.msra.mxu0 %v2329
        %2455 = vmatpush.bf16.msra.mxu0 %v2325
        %2456 = vmatpush.bf16.msra.mxu0 %v2321
        %2457 = vmatmul.bf16.gmra.mxu0 %v2061
        %v2458 = vpop.f32.mrf.mxu0
        %v2459 = vadd.f32 0.0, %v2458
        %v2460 = vpop.f32.mrf.mxu0
        %v2461 = vadd.f32 0.0, %v2460
        %2462 = vmatmul.bf16.gmra.mxu0 %v2063
        %v2463 = vpop.f32.mrf.mxu0
        %v2464 = vadd.f32 0.0, %v2463
        %v2465 = vpop.f32.mrf.mxu0
        %v2466 = vadd.f32 0.0, %v2465
        %2467 = vdwg.mxu0
        %2468 = vmatpush.bf16.msra.mxu0 %v2381
        %2469 = vmatpush.bf16.msra.mxu0 %v2377
        %2470 = vmatpush.bf16.msra.mxu0 %v2373
        %2471 = vmatpush.bf16.msra.mxu0 %v2369
        %2472 = vmatpush.bf16.msra.mxu0 %v2365
        %2473 = vmatpush.bf16.msra.mxu0 %v2361
        %2474 = vmatpush.bf16.msra.mxu0 %v2357
        %2475 = vmatpush.bf16.msra.mxu0 %v2353
        %2476 = vmatmul.bf16.gmra.mxu0 %v2062
        %v2477 = vpop.f32.mrf.mxu0
        %v2478 = vadd.f32 %v2459, %v2477
        %v2479 = vpop.f32.mrf.mxu0
        %v2480 = vadd.f32 %v2461, %v2479
        %2481 = vmatmul.bf16.gmra.mxu0 %v2064
        %v2482 = vpop.f32.mrf.mxu0
        %v2483 = vadd.f32 %v2464, %v2482
        %v2484 = vpop.f32.mrf.mxu0
        %v2485 = vadd.f32 %v2466, %v2484
        %2486 = vdwg.mxu0
        %2487 = vmatpush.bf16.msra.mxu0 %v2350
        %2488 = vmatpush.bf16.msra.mxu0 %v2346
        %2489 = vmatpush.bf16.msra.mxu0 %v2342
        %2490 = vmatpush.bf16.msra.mxu0 %v2338
        %2491 = vmatpush.bf16.msra.mxu0 %v2334
        %2492 = vmatpush.bf16.msra.mxu0 %v2330
        %2493 = vmatpush.bf16.msra.mxu0 %v2326
        %2494 = vmatpush.bf16.msra.mxu0 %v2322
        %2495 = vmatmul.bf16.gmra.mxu0 %v2061
        %v2496 = vpop.f32.mrf.mxu0
        %v2497 = vadd.f32 0.0, %v2496
        %v2498 = vpop.f32.mrf.mxu0
        %v2499 = vadd.f32 0.0, %v2498
        %2500 = vmatmul.bf16.gmra.mxu0 %v2063
        %v2501 = vpop.f32.mrf.mxu0
        %v2502 = vadd.f32 0.0, %v2501
        %v2503 = vpop.f32.mrf.mxu0
        %v2504 = vadd.f32 0.0, %v2503
        %2505 = vdwg.mxu0
        %2506 = vmatpush.bf16.msra.mxu0 %v2382
        %2507 = vmatpush.bf16.msra.mxu0 %v2378
        %2508 = vmatpush.bf16.msra.mxu0 %v2374
        %2509 = vmatpush.bf16.msra.mxu0 %v2370
        %2510 = vmatpush.bf16.msra.mxu0 %v2366
        %2511 = vmatpush.bf16.msra.mxu0 %v2362
        %2512 = vmatpush.bf16.msra.mxu0 %v2358
        %2513 = vmatpush.bf16.msra.mxu0 %v2354
        %2514 = vmatmul.bf16.gmra.mxu0 %v2062
        %v2515 = vpop.f32.mrf.mxu0
        %v2516 = vadd.f32 %v2497, %v2515
        %v2517 = vpop.f32.mrf.mxu0
        %v2518 = vadd.f32 %v2499, %v2517
        %2519 = vmatmul.bf16.gmra.mxu0 %v2064
        %v2520 = vpop.f32.mrf.mxu0
        %v2521 = vadd.f32 %v2502, %v2520
        %v2522 = vpop.f32.mrf.mxu0
        %v2523 = vadd.f32 %v2504, %v2522
        %2524 = vdwg.mxu0
        %2525 = vmatpush.bf16.msra.mxu0 %v2351
        %2526 = vmatpush.bf16.msra.mxu0 %v2347
        %2527 = vmatpush.bf16.msra.mxu0 %v2343
        %2528 = vmatpush.bf16.msra.mxu0 %v2339
        %2529 = vmatpush.bf16.msra.mxu0 %v2335
        %2530 = vmatpush.bf16.msra.mxu0 %v2331
        %2531 = vmatpush.bf16.msra.mxu0 %v2327
        %2532 = vmatpush.bf16.msra.mxu0 %v2323
        %2533 = vmatmul.bf16.gmra.mxu0 %v2061
        %v2534 = vpop.f32.mrf.mxu0
        %v2535 = vadd.f32 0.0, %v2534
        %v2536 = vpop.f32.mrf.mxu0
        %v2537 = vadd.f32 0.0, %v2536
        %2538 = vmatmul.bf16.gmra.mxu0 %v2063
        %v2539 = vpop.f32.mrf.mxu0
        %v2540 = vadd.f32 0.0, %v2539
        %v2541 = vpop.f32.mrf.mxu0
        %v2542 = vadd.f32 0.0, %v2541
        %2543 = vdwg.mxu0
        %2544 = vmatpush.bf16.msra.mxu0 %v2383
        %2545 = vmatpush.bf16.msra.mxu0 %v2379
        %2546 = vmatpush.bf16.msra.mxu0 %v2375
        %2547 = vmatpush.bf16.msra.mxu0 %v2371
        %2548 = vmatpush.bf16.msra.mxu0 %v2367
        %2549 = vmatpush.bf16.msra.mxu0 %v2363
        %2550 = vmatpush.bf16.msra.mxu0 %v2359
        %2551 = vmatpush.bf16.msra.mxu0 %v2355
        %2552 = vmatmul.bf16.gmra.mxu0 %v2062
        %v2553 = vpop.f32.mrf.mxu0
        %v2554 = vadd.f32 %v2535, %v2553
        %v2555 = vpop.f32.mrf.mxu0
        %v2556 = vadd.f32 %v2537, %v2555
        %2557 = vmatmul.bf16.gmra.mxu0 %v2064
        %v2558 = vpop.f32.mrf.mxu0
        %v2559 = vadd.f32 %v2540, %v2558
        %v2560 = vpop.f32.mrf.mxu0
        %v2561 = vadd.f32 %v2542, %v2560
        %2562 = vdwg.mxu0
        %2563 = vmatpush.bf16.msra.mxu0 %v2352
        %2564 = vmatpush.bf16.msra.mxu0 %v2348
        %2565 = vmatpush.bf16.msra.mxu0 %v2344
        %2566 = vmatpush.bf16.msra.mxu0 %v2340
        %2567 = vmatpush.bf16.msra.mxu0 %v2336
        %2568 = vmatpush.bf16.msra.mxu0 %v2332
        %2569 = vmatpush.bf16.msra.mxu0 %v2328
        %2570 = vmatpush.bf16.msra.mxu0 %v2324
        %2571 = vmatmul.bf16.gmra.mxu0 %v2061
        %v2572 = vpop.f32.mrf.mxu0
        %v2573 = vadd.f32 0.0, %v2572
        %v2574 = vpop.f32.mrf.mxu0
        %v2575 = vadd.f32 0.0, %v2574
        %2576 = vmatmul.bf16.gmra.mxu0 %v2063
        %v2577 = vpop.f32.mrf.mxu0
        %v2578 = vadd.f32 0.0, %v2577
        %v2579 = vpop.f32.mrf.mxu0
        %v2580 = vadd.f32 0.0, %v2579
        %2581 = vdwg.mxu0
        %2582 = vmatpush.bf16.msra.mxu0 %v2384
        %2583 = vmatpush.bf16.msra.mxu0 %v2380
        %2584 = vmatpush.bf16.msra.mxu0 %v2376
        %2585 = vmatpush.bf16.msra.mxu0 %v2372
        %2586 = vmatpush.bf16.msra.mxu0 %v2368
        %2587 = vmatpush.bf16.msra.mxu0 %v2364
        %2588 = vmatpush.bf16.msra.mxu0 %v2360
        %2589 = vmatpush.bf16.msra.mxu0 %v2356
        %2590 = vmatmul.bf16.gmra.mxu0 %v2062
        %v2591 = vpop.f32.mrf.mxu0
        %v2592 = vadd.f32 %v2573, %v2591
        %v2593 = vpop.f32.mrf.mxu0
        %v2594 = vadd.f32 %v2575, %v2593
        %2595 = vmatmul.bf16.gmra.mxu0 %v2064
        %v2596 = vpop.f32.mrf.mxu0
        %v2597 = vadd.f32 %v2578, %v2596
        %v2598 = vpop.f32.mrf.mxu0
        %v2599 = vadd.f32 %v2580, %v2598
        %2600 = vdwg.mxu0
        %v2601 = vadd.f32 %v2045, %v2478
        %v2602 = vadd.f32 %v2046, %v2516
        %v2603 = vadd.f32 %v2047, %v2554
        %v2604 = vadd.f32 %v2048, %v2592
        %v2605 = vadd.f32 %v2049, %v2480
        %v2606 = vadd.f32 %v2050, %v2518
        %v2607 = vadd.f32 %v2051, %v2556
        %v2608 = vadd.f32 %v2052, %v2594
        %v2609 = vadd.f32 %v2053, %v2483
        %v2610 = vadd.f32 %v2054, %v2521
        %v2611 = vadd.f32 %v2055, %v2559
        %v2612 = vadd.f32 %v2056, %v2597
        %v2613 = vadd.f32 %v2057, %v2485
        %v2614 = vadd.f32 %v2058, %v2523
        %v2615 = vadd.f32 %v2059, %v2561
        %v2616 = vadd.f32 %v2060, %v2599
        %2617 = vst [vmem:[#allocation2] sm:$0xff] %v2601
        %2618 = vst [vmem:[#allocation2 + $0x8] sm:$0xff] %v2602
        %2619 = vst [vmem:[#allocation2 + $0x10] sm:$0xff] %v2603
        %2620 = vst [vmem:[#allocation2 + $0x18] sm:$0xff] %v2604
        %2621 = vst [vmem:[#allocation2 + $0x20] sm:$0xff] %v2605
        %2622 = vst [vmem:[#allocation2 + $0x28] sm:$0xff] %v2606
        %2623 = vst [vmem:[#allocation2 + $0x30] sm:$0xff] %v2607
        %2624 = vst [vmem:[#allocation2 + $0x38] sm:$0xff] %v2608
        %2625 = vst [vmem:[#allocation2 + $0x40] sm:$0xff] %v2609
        %2626 = vst [vmem:[#allocation2 + $0x48] sm:$0xff] %v2610
        %2627 = vst [vmem:[#allocation2 + $0x50] sm:$0xff] %v2611
        %2628 = vst [vmem:[#allocation2 + $0x58] sm:$0xff] %v2612
        %2629 = vst [vmem:[#allocation2 + $0x60] sm:$0xff] %v2613
        %2630 = vst [vmem:[#allocation2 + $0x68] sm:$0xff] %v2614
        %2631 = vst [vmem:[#allocation2 + $0x70] sm:$0xff] %v2615
        %2632 = vst [vmem:[#allocation2 + $0x78] sm:$0xff] %v2616
        %p2633 = scmp.eq.s32.totalorder %s52, 3
        // Predicated region
        $region137: #{tpu_custom_call.1} parent=75 // pred_check
          %p2634 = pneg %p2633
        $region138: #{tpu_custom_call.1} parent=75 // pred_check_branch
          %2636 = sbr.rel (%p2634) target = $region140
        $region139: #{tpu_custom_call.1} parent=75 // pred_region
          %v2637 = vld [vmem:[#allocation2] sm:$0xff]
          %v2638 = vld [vmem:[#allocation2 + $0x8] sm:$0xff]
          %v2639 = vld [vmem:[#allocation2 + $0x10] sm:$0xff]
          %v2640 = vld [vmem:[#allocation2 + $0x18] sm:$0xff]
          %v2641 = vld [vmem:[#allocation2 + $0x20] sm:$0xff]
          %v2642 = vld [vmem:[#allocation2 + $0x28] sm:$0xff]
          %v2643 = vld [vmem:[#allocation2 + $0x30] sm:$0xff]
          %v2644 = vld [vmem:[#allocation2 + $0x38] sm:$0xff]
          %v2645 = vld [vmem:[#allocation2 + $0x40] sm:$0xff]
          %v2646 = vld [vmem:[#allocation2 + $0x48] sm:$0xff]
          %v2647 = vld [vmem:[#allocation2 + $0x50] sm:$0xff]
          %v2648 = vld [vmem:[#allocation2 + $0x58] sm:$0xff]
          %v2649 = vld [vmem:[#allocation2 + $0x60] sm:$0xff]
          %v2650 = vld [vmem:[#allocation2 + $0x68] sm:$0xff]
          %v2651 = vld [vmem:[#allocation2 + $0x70] sm:$0xff]
          %v2652 = vld [vmem:[#allocation2 + $0x78] sm:$0xff]
          %v2653 = vld [vmem:[%s780] sm:$0xf]
          %v2655 = vperm.slane %v2653, 0
          %v2656 = vperm.slane %v2653, 1
          %v2657 = vperm.slane %v2653, 2
          %v2658 = vperm.slane %v2653, 3
          %v2663 = vadd.f32 %v2637, %v2655
          %v2664 = vadd.f32 %v2638, %v2656
          %v2665 = vadd.f32 %v2639, %v2657
          %v2666 = vadd.f32 %v2640, %v2658
          %v2667 = vadd.f32 %v2641, %v2655
          %v2668 = vadd.f32 %v2642, %v2656
          %v2669 = vadd.f32 %v2643, %v2657
          %v2670 = vadd.f32 %v2644, %v2658
          %v2671 = vadd.f32 %v2645, %v2655
          %v2672 = vadd.f32 %v2646, %v2656
          %v2673 = vadd.f32 %v2647, %v2657
          %v2674 = vadd.f32 %v2648, %v2658
          %v2675 = vadd.f32 %v2649, %v2655
          %v2676 = vadd.f32 %v2650, %v2656
          %v2677 = vadd.f32 %v2651, %v2657
          %v2678 = vadd.f32 %v2652, %v2658
          %v2679 = vmax.f32 %v2663, 0.0
          %v2680 = vmax.f32 %v2664, 0.0
          %v2681 = vmax.f32 %v2665, 0.0
          %v2682 = vmax.f32 %v2666, 0.0
          %v2683 = vmax.f32 %v2667, 0.0
          %v2684 = vmax.f32 %v2668, 0.0
          %v2685 = vmax.f32 %v2669, 0.0
          %v2686 = vmax.f32 %v2670, 0.0
          %v2687 = vmax.f32 %v2671, 0.0
          %v2688 = vmax.f32 %v2672, 0.0
          %v2689 = vmax.f32 %v2673, 0.0
          %v2690 = vmax.f32 %v2674, 0.0
          %v2691 = vmax.f32 %v2675, 0.0
          %v2692 = vmax.f32 %v2676, 0.0
          %v2693 = vmax.f32 %v2677, 0.0
          %v2694 = vmax.f32 %v2678, 0.0
          %v2695 = vld [vmem:[%s810] sm:$0xf]
          %v2696 = vld [vmem:[%s810 + $0x4] sm:$0xf]
          %v2699 = vperm.slane %v2695, 0
          %v2700 = vperm.slane %v2695, 1
          %v2701 = vperm.slane %v2695, 2
          %v2702 = vperm.slane %v2695, 3
          %v2703 = vperm.slane %v2696, 0
          %v2704 = vperm.slane %v2696, 1
          %v2705 = vperm.slane %v2696, 2
          %v2706 = vperm.slane %v2696, 3
          %v2715 = vmul.f32 %v2679, %v2699
          %v2716 = vmul.f32 %v2680, %v2700
          %v2717 = vmul.f32 %v2681, %v2701
          %v2718 = vmul.f32 %v2682, %v2702
          %v2719 = vmul.f32 %v2683, %v2699
          %v2720 = vmul.f32 %v2684, %v2700
          %v2721 = vmul.f32 %v2685, %v2701
          %v2722 = vmul.f32 %v2686, %v2702
          %v2723 = vmul.f32 %v2687, %v2703
          %v2724 = vmul.f32 %v2688, %v2704
          %v2725 = vmul.f32 %v2689, %v2705
          %v2726 = vmul.f32 %v2690, %v2706
          %v2727 = vmul.f32 %v2691, %v2703
          %v2728 = vmul.f32 %v2692, %v2704
          %v2729 = vmul.f32 %v2693, %v2705
          %v2730 = vmul.f32 %v2694, %v2706
          %v2731 = vld [vmem:[%s820] sm:$0xf]
          %v2732 = vld [vmem:[%s820 + $0x4] sm:$0xf]
          %v2735 = vperm.slane %v2731, 0
          %v2736 = vperm.slane %v2731, 1
          %v2737 = vperm.slane %v2731, 2
          %v2738 = vperm.slane %v2731, 3
          %v2739 = vperm.slane %v2732, 0
          %v2740 = vperm.slane %v2732, 1
          %v2741 = vperm.slane %v2732, 2
          %v2742 = vperm.slane %v2732, 3
          %v2751 = vadd.f32 %v2715, %v2735
          %v2752 = vadd.f32 %v2716, %v2736
          %v2753 = vadd.f32 %v2717, %v2737
          %v2754 = vadd.f32 %v2718, %v2738
          %v2755 = vadd.f32 %v2719, %v2735
          %v2756 = vadd.f32 %v2720, %v2736
          %v2757 = vadd.f32 %v2721, %v2737
          %v2758 = vadd.f32 %v2722, %v2738
          %v2759 = vadd.f32 %v2723, %v2739
          %v2760 = vadd.f32 %v2724, %v2740
          %v2761 = vadd.f32 %v2725, %v2741
          %v2762 = vadd.f32 %v2726, %v2742
          %v2763 = vadd.f32 %v2727, %v2739
          %v2764 = vadd.f32 %v2728, %v2740
          %v2765 = vadd.f32 %v2729, %v2741
          %v2766 = vadd.f32 %v2730, %v2742
          %s2767 = smul.u32 %s51, 16
          %s2768 = smul.addr %s2767, 8
          %s2769 = scalar_lea.vmem [#allocation26], %s2768
          %2770 = vst [vmem:[%s2769] sm:$0xff] %v2751
          %2771 = vst [vmem:[%s2769 + $0x8] sm:$0xff] %v2752
          %2772 = vst [vmem:[%s2769 + $0x10] sm:$0xff] %v2753
          %2773 = vst [vmem:[%s2769 + $0x18] sm:$0xff] %v2754
          %2774 = vst [vmem:[%s2769 + $0x20] sm:$0xff] %v2755
          %2775 = vst [vmem:[%s2769 + $0x28] sm:$0xff] %v2756
          %2776 = vst [vmem:[%s2769 + $0x30] sm:$0xff] %v2757
          %2777 = vst [vmem:[%s2769 + $0x38] sm:$0xff] %v2758
          %2778 = vst [vmem:[%s2769 + $0x40] sm:$0xff] %v2759
          %2779 = vst [vmem:[%s2769 + $0x48] sm:$0xff] %v2760
          %2780 = vst [vmem:[%s2769 + $0x50] sm:$0xff] %v2761
          %2781 = vst [vmem:[%s2769 + $0x58] sm:$0xff] %v2762
          %2782 = vst [vmem:[%s2769 + $0x60] sm:$0xff] %v2763
          %2783 = vst [vmem:[%s2769 + $0x68] sm:$0xff] %v2764
          %2784 = vst [vmem:[%s2769 + $0x70] sm:$0xff] %v2765
          %2785 = vst [vmem:[%s2769 + $0x78] sm:$0xff] %v2766
        $region140: #{tpu_custom_call.1} parent=75 // pred_fallthru
          _
        %p2786 = scmp.eq.s32.totalorder %s51, 1
        %p2787 = pnand %p2786, %p2633
        %p2788 = pneg %p2787
        // Predicated region
        $region141: #{tpu_custom_call.1} parent=75 // pred_check
          _
        $region142: #{tpu_custom_call.1} parent=75 // pred_check_branch
          %2790 = sbr.rel (%p2787) target = $region144
        $region143: #{tpu_custom_call.1} parent=75 // pred_region
          %v2791 = vld [vmem:[#allocation26] sm:$0xff]
          %v2792 = vld [vmem:[#allocation26 + $0x8] sm:$0xff]
          %v2793 = vld [vmem:[#allocation26 + $0x10] sm:$0xff]
          %v2794 = vld [vmem:[#allocation26 + $0x18] sm:$0xff]
          %v2795 = vld [vmem:[#allocation26 + $0x20] sm:$0xff]
          %v2796 = vld [vmem:[#allocation26 + $0x28] sm:$0xff]
          %v2797 = vld [vmem:[#allocation26 + $0x30] sm:$0xff]
          %v2798 = vld [vmem:[#allocation26 + $0x38] sm:$0xff]
          %v2799 = vld [vmem:[#allocation26 + $0x40] sm:$0xff]
          %v2800 = vld [vmem:[#allocation26 + $0x48] sm:$0xff]
          %v2801 = vld [vmem:[#allocation26 + $0x50] sm:$0xff]
          %v2802 = vld [vmem:[#allocation26 + $0x58] sm:$0xff]
          %v2803 = vld [vmem:[#allocation26 + $0x60] sm:$0xff]
          %v2804 = vld [vmem:[#allocation26 + $0x68] sm:$0xff]
          %v2805 = vld [vmem:[#allocation26 + $0x70] sm:$0xff]
          %v2806 = vld [vmem:[#allocation26 + $0x78] sm:$0xff]
          %v2807 = vpack.c.bf16 %v2795, %v2791
          %v2808 = vpack.c.bf16 %v2796, %v2792
          %v2809 = vpack.c.bf16 %v2797, %v2793
          %v2810 = vpack.c.bf16 %v2798, %v2794
          %v2811 = vpack.c.bf16 %v2803, %v2799
          %v2812 = vpack.c.bf16 %v2804, %v2800
          %v2813 = vpack.c.bf16 %v2805, %v2801
          %v2814 = vpack.c.bf16 %v2806, %v2802
          %s2815 = scalar_lea.vmem [#allocation26], 128
          %v2816 = vld [vmem:[%s2815] sm:$0xff]
          %v2817 = vld [vmem:[%s2815 + $0x8] sm:$0xff]
          %v2818 = vld [vmem:[%s2815 + $0x10] sm:$0xff]
          %v2819 = vld [vmem:[%s2815 + $0x18] sm:$0xff]
          %v2820 = vld [vmem:[%s2815 + $0x20] sm:$0xff]
          %v2821 = vld [vmem:[%s2815 + $0x28] sm:$0xff]
          %v2822 = vld [vmem:[%s2815 + $0x30] sm:$0xff]
          %v2823 = vld [vmem:[%s2815 + $0x38] sm:$0xff]
          %v2824 = vld [vmem:[%s2815 + $0x40] sm:$0xff]
          %v2825 = vld [vmem:[%s2815 + $0x48] sm:$0xff]
          %v2826 = vld [vmem:[%s2815 + $0x50] sm:$0xff]
          %v2827 = vld [vmem:[%s2815 + $0x58] sm:$0xff]
          %v2828 = vld [vmem:[%s2815 + $0x60] sm:$0xff]
          %v2829 = vld [vmem:[%s2815 + $0x68] sm:$0xff]
          %v2830 = vld [vmem:[%s2815 + $0x70] sm:$0xff]
          %v2831 = vld [vmem:[%s2815 + $0x78] sm:$0xff]
          %v2832 = vpack.c.bf16 %v2820, %v2816
          %v2833 = vpack.c.bf16 %v2821, %v2817
          %v2834 = vpack.c.bf16 %v2822, %v2818
          %v2835 = vpack.c.bf16 %v2823, %v2819
          %v2836 = vpack.c.bf16 %v2828, %v2824
          %v2837 = vpack.c.bf16 %v2829, %v2825
          %v2838 = vpack.c.bf16 %v2830, %v2826
          %v2839 = vpack.c.bf16 %v2831, %v2827
          %v2840 = vld [vmem:[#allocation18] sm:$0xf]
          %v2841 = vld [vmem:[#allocation18 + $0x4] sm:$0xf]
          %v2842 = vld [vmem:[#allocation18 + $0x8] sm:$0xf]
          %v2843 = vld [vmem:[#allocation18 + $0xc] sm:$0xf]
          %v2844 = vld [vmem:[#allocation18 + $0x10] sm:$0xf]
          %v2845 = vld [vmem:[#allocation18 + $0x14] sm:$0xf]
          %v2846 = vld [vmem:[#allocation18 + $0x18] sm:$0xf]
          %v2847 = vld [vmem:[#allocation18 + $0x1c] sm:$0xf]
          %v2848 = vld [vmem:[#allocation18 + $0x20] sm:$0xf]
          %v2849 = vld [vmem:[#allocation18 + $0x24] sm:$0xf]
          %v2850 = vld [vmem:[#allocation18 + $0x28] sm:$0xf]
          %v2851 = vld [vmem:[#allocation18 + $0x2c] sm:$0xf]
          %v2852 = vld [vmem:[#allocation18 + $0x30] sm:$0xf]
          %v2853 = vld [vmem:[#allocation18 + $0x34] sm:$0xf]
          %v2854 = vld [vmem:[#allocation18 + $0x38] sm:$0xf]
          %v2855 = vld [vmem:[#allocation18 + $0x3c] sm:$0xf]
          %v2856 = vld [vmem:[#allocation18 + $0x40] sm:$0xf]
          %v2857 = vld [vmem:[#allocation18 + $0x44] sm:$0xf]
          %v2858 = vld [vmem:[#allocation18 + $0x48] sm:$0xf]
          %v2859 = vld [vmem:[#allocation18 + $0x4c] sm:$0xf]
          %v2860 = vld [vmem:[#allocation18 + $0x50] sm:$0xf]
          %v2861 = vld [vmem:[#allocation18 + $0x54] sm:$0xf]
          %v2862 = vld [vmem:[#allocation18 + $0x58] sm:$0xf]
          %v2863 = vld [vmem:[#allocation18 + $0x5c] sm:$0xf]
          %v2864 = vld [vmem:[#allocation18 + $0x60] sm:$0xf]
          %v2865 = vld [vmem:[#allocation18 + $0x64] sm:$0xf]
          %v2866 = vld [vmem:[#allocation18 + $0x68] sm:$0xf]
          %v2867 = vld [vmem:[#allocation18 + $0x6c] sm:$0xf]
          %v2868 = vld [vmem:[#allocation18 + $0x70] sm:$0xf]
          %v2869 = vld [vmem:[#allocation18 + $0x74] sm:$0xf]
          %v2870 = vld [vmem:[#allocation18 + $0x78] sm:$0xf]
          %v2871 = vld [vmem:[#allocation18 + $0x7c] sm:$0xf]
          %v2872 = vld [vmem:[#allocation18 + $0x80] sm:$0xf]
          %v2873 = vld [vmem:[#allocation18 + $0x84] sm:$0xf]
          %v2874 = vld [vmem:[#allocation18 + $0x88] sm:$0xf]
          %v2875 = vld [vmem:[#allocation18 + $0x8c] sm:$0xf]
          %v2876 = vld [vmem:[#allocation18 + $0x90] sm:$0xf]
          %v2877 = vld [vmem:[#allocation18 + $0x94] sm:$0xf]
          %v2878 = vld [vmem:[#allocation18 + $0x98] sm:$0xf]
          %v2879 = vld [vmem:[#allocation18 + $0x9c] sm:$0xf]
          %v2880 = vld [vmem:[#allocation18 + $0xa0] sm:$0xf]
          %v2881 = vld [vmem:[#allocation18 + $0xa4] sm:$0xf]
          %v2882 = vld [vmem:[#allocation18 + $0xa8] sm:$0xf]
          %v2883 = vld [vmem:[#allocation18 + $0xac] sm:$0xf]
          %v2884 = vld [vmem:[#allocation18 + $0xb0] sm:$0xf]
          %v2885 = vld [vmem:[#allocation18 + $0xb4] sm:$0xf]
          %v2886 = vld [vmem:[#allocation18 + $0xb8] sm:$0xf]
          %v2887 = vld [vmem:[#allocation18 + $0xbc] sm:$0xf]
          %v2888 = vld [vmem:[#allocation18 + $0xc0] sm:$0xf]
          %v2889 = vld [vmem:[#allocation18 + $0xc4] sm:$0xf]
          %v2890 = vld [vmem:[#allocation18 + $0xc8] sm:$0xf]
          %v2891 = vld [vmem:[#allocation18 + $0xcc] sm:$0xf]
          %v2892 = vld [vmem:[#allocation18 + $0xd0] sm:$0xf]
          %v2893 = vld [vmem:[#allocation18 + $0xd4] sm:$0xf]
          %v2894 = vld [vmem:[#allocation18 + $0xd8] sm:$0xf]
          %v2895 = vld [vmem:[#allocation18 + $0xdc] sm:$0xf]
          %v2896 = vld [vmem:[#allocation18 + $0xe0] sm:$0xf]
          %v2897 = vld [vmem:[#allocation18 + $0xe4] sm:$0xf]
          %v2898 = vld [vmem:[#allocation18 + $0xe8] sm:$0xf]
          %v2899 = vld [vmem:[#allocation18 + $0xec] sm:$0xf]
          %v2900 = vld [vmem:[#allocation18 + $0xf0] sm:$0xf]
          %v2901 = vld [vmem:[#allocation18 + $0xf4] sm:$0xf]
          %v2902 = vld [vmem:[#allocation18 + $0xf8] sm:$0xf]
          %v2903 = vld [vmem:[#allocation18 + $0xfc] sm:$0xf]
          %s2904 = scalar_lea.vmem [#allocation18], 256
          %v2905 = vld [vmem:[%s2904] sm:$0xf]
          %v2906 = vld [vmem:[%s2904 + $0x4] sm:$0xf]
          %v2907 = vld [vmem:[%s2904 + $0x8] sm:$0xf]
          %v2908 = vld [vmem:[%s2904 + $0xc] sm:$0xf]
          %v2909 = vld [vmem:[%s2904 + $0x10] sm:$0xf]
          %v2910 = vld [vmem:[%s2904 + $0x14] sm:$0xf]
          %v2911 = vld [vmem:[%s2904 + $0x18] sm:$0xf]
          %v2912 = vld [vmem:[%s2904 + $0x1c] sm:$0xf]
          %v2913 = vld [vmem:[%s2904 + $0x20] sm:$0xf]
          %v2914 = vld [vmem:[%s2904 + $0x24] sm:$0xf]
          %v2915 = vld [vmem:[%s2904 + $0x28] sm:$0xf]
          %v2916 = vld [vmem:[%s2904 + $0x2c] sm:$0xf]
          %v2917 = vld [vmem:[%s2904 + $0x30] sm:$0xf]
          %v2918 = vld [vmem:[%s2904 + $0x34] sm:$0xf]
          %v2919 = vld [vmem:[%s2904 + $0x38] sm:$0xf]
          %v2920 = vld [vmem:[%s2904 + $0x3c] sm:$0xf]
          %v2921 = vld [vmem:[%s2904 + $0x40] sm:$0xf]
          %v2922 = vld [vmem:[%s2904 + $0x44] sm:$0xf]
          %v2923 = vld [vmem:[%s2904 + $0x48] sm:$0xf]
          %v2924 = vld [vmem:[%s2904 + $0x4c] sm:$0xf]
          %v2925 = vld [vmem:[%s2904 + $0x50] sm:$0xf]
          %v2926 = vld [vmem:[%s2904 + $0x54] sm:$0xf]
          %v2927 = vld [vmem:[%s2904 + $0x58] sm:$0xf]
          %v2928 = vld [vmem:[%s2904 + $0x5c] sm:$0xf]
          %v2929 = vld [vmem:[%s2904 + $0x60] sm:$0xf]
          %v2930 = vld [vmem:[%s2904 + $0x64] sm:$0xf]
          %v2931 = vld [vmem:[%s2904 + $0x68] sm:$0xf]
          %v2932 = vld [vmem:[%s2904 + $0x6c] sm:$0xf]
          %v2933 = vld [vmem:[%s2904 + $0x70] sm:$0xf]
          %v2934 = vld [vmem:[%s2904 + $0x74] sm:$0xf]
          %v2935 = vld [vmem:[%s2904 + $0x78] sm:$0xf]
          %v2936 = vld [vmem:[%s2904 + $0x7c] sm:$0xf]
          %v2937 = vld [vmem:[%s2904 + $0x80] sm:$0xf]
          %v2938 = vld [vmem:[%s2904 + $0x84] sm:$0xf]
          %v2939 = vld [vmem:[%s2904 + $0x88] sm:$0xf]
          %v2940 = vld [vmem:[%s2904 + $0x8c] sm:$0xf]
          %v2941 = vld [vmem:[%s2904 + $0x90] sm:$0xf]
          %v2942 = vld [vmem:[%s2904 + $0x94] sm:$0xf]
          %v2943 = vld [vmem:[%s2904 + $0x98] sm:$0xf]
          %v2944 = vld [vmem:[%s2904 + $0x9c] sm:$0xf]
          %v2945 = vld [vmem:[%s2904 + $0xa0] sm:$0xf]
          %v2946 = vld [vmem:[%s2904 + $0xa4] sm:$0xf]
          %v2947 = vld [vmem:[%s2904 + $0xa8] sm:$0xf]
          %v2948 = vld [vmem:[%s2904 + $0xac] sm:$0xf]
          %v2949 = vld [vmem:[%s2904 + $0xb0] sm:$0xf]
          %v2950 = vld [vmem:[%s2904 + $0xb4] sm:$0xf]
          %v2951 = vld [vmem:[%s2904 + $0xb8] sm:$0xf]
          %v2952 = vld [vmem:[%s2904 + $0xbc] sm:$0xf]
          %v2953 = vld [vmem:[%s2904 + $0xc0] sm:$0xf]
          %v2954 = vld [vmem:[%s2904 + $0xc4] sm:$0xf]
          %v2955 = vld [vmem:[%s2904 + $0xc8] sm:$0xf]
          %v2956 = vld [vmem:[%s2904 + $0xcc] sm:$0xf]
          %v2957 = vld [vmem:[%s2904 + $0xd0] sm:$0xf]
          %v2958 = vld [vmem:[%s2904 + $0xd4] sm:$0xf]
          %v2959 = vld [vmem:[%s2904 + $0xd8] sm:$0xf]
          %v2960 = vld [vmem:[%s2904 + $0xdc] sm:$0xf]
          %v2961 = vld [vmem:[%s2904 + $0xe0] sm:$0xf]
          %v2962 = vld [vmem:[%s2904 + $0xe4] sm:$0xf]
          %v2963 = vld [vmem:[%s2904 + $0xe8] sm:$0xf]
          %v2964 = vld [vmem:[%s2904 + $0xec] sm:$0xf]
          %v2965 = vld [vmem:[%s2904 + $0xf0] sm:$0xf]
          %v2966 = vld [vmem:[%s2904 + $0xf4] sm:$0xf]
          %v2967 = vld [vmem:[%s2904 + $0xf8] sm:$0xf]
          %v2968 = vld [vmem:[%s2904 + $0xfc] sm:$0xf]
          %v3033 = vunpack.c.l.b16 %v2905
          %v3034 = vunpack.c.l.b16 %v2906
          %v3035 = vunpack.c.l.b16 %v2907
          %v3036 = vunpack.c.l.b16 %v2908
          %v3037 = vunpack.c.l.b16 %v2909
          %v3038 = vunpack.c.l.b16 %v2910
          %v3039 = vunpack.c.l.b16 %v2911
          %v3040 = vunpack.c.l.b16 %v2912
          %v3041 = vunpack.c.l.b16 %v2913
          %v3042 = vunpack.c.l.b16 %v2914
          %v3043 = vunpack.c.l.b16 %v2915
          %v3044 = vunpack.c.l.b16 %v2916
          %v3045 = vunpack.c.l.b16 %v2917
          %v3046 = vunpack.c.l.b16 %v2918
          %v3047 = vunpack.c.l.b16 %v2919
          %v3048 = vunpack.c.l.b16 %v2920
          %v3049 = vunpack.c.l.b16 %v2921
          %v3050 = vunpack.c.l.b16 %v2922
          %v3051 = vunpack.c.l.b16 %v2923
          %v3052 = vunpack.c.l.b16 %v2924
          %v3053 = vunpack.c.l.b16 %v2925
          %v3054 = vunpack.c.l.b16 %v2926
          %v3055 = vunpack.c.l.b16 %v2927
          %v3056 = vunpack.c.l.b16 %v2928
          %v3057 = vunpack.c.l.b16 %v2929
          %v3058 = vunpack.c.l.b16 %v2930
          %v3059 = vunpack.c.l.b16 %v2931
          %v3060 = vunpack.c.l.b16 %v2932
          %v3061 = vunpack.c.l.b16 %v2933
          %v3062 = vunpack.c.l.b16 %v2934
          %v3063 = vunpack.c.l.b16 %v2935
          %v3064 = vunpack.c.l.b16 %v2936
          %v3065 = vunpack.c.l.b16 %v2937
          %v3066 = vunpack.c.l.b16 %v2938
          %v3067 = vunpack.c.l.b16 %v2939
          %v3068 = vunpack.c.l.b16 %v2940
          %v3069 = vunpack.c.l.b16 %v2941
          %v3070 = vunpack.c.l.b16 %v2942
          %v3071 = vunpack.c.l.b16 %v2943
          %v3072 = vunpack.c.l.b16 %v2944
          %v3073 = vunpack.c.l.b16 %v2945
          %v3074 = vunpack.c.l.b16 %v2946
          %v3075 = vunpack.c.l.b16 %v2947
          %v3076 = vunpack.c.l.b16 %v2948
          %v3077 = vunpack.c.l.b16 %v2949
          %v3078 = vunpack.c.l.b16 %v2950
          %v3079 = vunpack.c.l.b16 %v2951
          %v3080 = vunpack.c.l.b16 %v2952
          %v3081 = vunpack.c.l.b16 %v2953
          %v3082 = vunpack.c.l.b16 %v2954
          %v3083 = vunpack.c.l.b16 %v2955
          %v3084 = vunpack.c.l.b16 %v2956
          %v3085 = vunpack.c.l.b16 %v2957
          %v3086 = vunpack.c.l.b16 %v2958
          %v3087 = vunpack.c.l.b16 %v2959
          %v3088 = vunpack.c.l.b16 %v2960
          %v3089 = vunpack.c.l.b16 %v2961
          %v3090 = vunpack.c.l.b16 %v2962
          %v3091 = vunpack.c.l.b16 %v2963
          %v3092 = vunpack.c.l.b16 %v2964
          %v3093 = vunpack.c.l.b16 %v2965
          %v3094 = vunpack.c.l.b16 %v2966
          %v3095 = vunpack.c.l.b16 %v2967
          %v3096 = vunpack.c.l.b16 %v2968
          %v3097 = vpack.c.b16 %v3034, %v3033
          %v3098 = vpack.c.b16 %v3036, %v3035
          %v3099 = vpack.c.b16 %v3038, %v3037
          %v3100 = vpack.c.b16 %v3040, %v3039
          %v3101 = vpack.c.b16 %v3042, %v3041
          %v3102 = vpack.c.b16 %v3044, %v3043
          %v3103 = vpack.c.b16 %v3046, %v3045
          %v3104 = vpack.c.b16 %v3048, %v3047
          %v3105 = vpack.c.b16 %v3050, %v3049
          %v3106 = vpack.c.b16 %v3052, %v3051
          %v3107 = vpack.c.b16 %v3054, %v3053
          %v3108 = vpack.c.b16 %v3056, %v3055
          %v3109 = vpack.c.b16 %v3058, %v3057
          %v3110 = vpack.c.b16 %v3060, %v3059
          %v3111 = vpack.c.b16 %v3062, %v3061
          %v3112 = vpack.c.b16 %v3064, %v3063
          %v3113 = vpack.c.b16 %v3066, %v3065
          %v3114 = vpack.c.b16 %v3068, %v3067
          %v3115 = vpack.c.b16 %v3070, %v3069
          %v3116 = vpack.c.b16 %v3072, %v3071
          %v3117 = vpack.c.b16 %v3074, %v3073
          %v3118 = vpack.c.b16 %v3076, %v3075
          %v3119 = vpack.c.b16 %v3078, %v3077
          %v3120 = vpack.c.b16 %v3080, %v3079
          %v3121 = vpack.c.b16 %v3082, %v3081
          %v3122 = vpack.c.b16 %v3084, %v3083
          %v3123 = vpack.c.b16 %v3086, %v3085
          %v3124 = vpack.c.b16 %v3088, %v3087
          %v3125 = vpack.c.b16 %v3090, %v3089
          %v3126 = vpack.c.b16 %v3092, %v3091
          %v3127 = vpack.c.b16 %v3094, %v3093
          %v3128 = vpack.c.b16 %v3096, %v3095
          %3161 = vmatpush.bf16.msra.mxu0 %v3104
          %3162 = vmatpush.bf16.msra.mxu0 %v3103
          %3163 = vmatpush.bf16.msra.mxu0 %v3102
          %3164 = vmatpush.bf16.msra.mxu0 %v3101
          %3165 = vmatpush.bf16.msra.mxu0 %v3100
          %3166 = vmatpush.bf16.msra.mxu0 %v3099
          %3167 = vmatpush.bf16.msra.mxu0 %v3098
          %3168 = vmatpush.bf16.msra.mxu0 %v3097
          %3169 = vmatmul.bf16.gmra.mxu0 %v2832
          %v3170 = vpop.f32.mrf.mxu0
          %v3171 = vadd.f32 0.0, %v3170
          %v3172 = vpop.f32.mrf.mxu0
          %v3173 = vadd.f32 0.0, %v3172
          %3174 = vmatmul.bf16.gmra.mxu0 %v2836
          %v3175 = vpop.f32.mrf.mxu0
          %v3176 = vadd.f32 0.0, %v3175
          %v3177 = vpop.f32.mrf.mxu0
          %v3178 = vadd.f32 0.0, %v3177
          %3179 = vdwg.mxu0
          %3180 = vmatpush.bf16.msra.mxu0 %v3112
          %3181 = vmatpush.bf16.msra.mxu0 %v3111
          %3182 = vmatpush.bf16.msra.mxu0 %v3110
          %3183 = vmatpush.bf16.msra.mxu0 %v3109
          %3184 = vmatpush.bf16.msra.mxu0 %v3108
          %3185 = vmatpush.bf16.msra.mxu0 %v3107
          %3186 = vmatpush.bf16.msra.mxu0 %v3106
          %3187 = vmatpush.bf16.msra.mxu0 %v3105
          %3188 = vmatmul.bf16.gmra.mxu0 %v2833
          %v3189 = vpop.f32.mrf.mxu0
          %v3190 = vadd.f32 %v3171, %v3189
          %v3191 = vpop.f32.mrf.mxu0
          %v3192 = vadd.f32 %v3173, %v3191
          %3193 = vmatmul.bf16.gmra.mxu0 %v2837
          %v3194 = vpop.f32.mrf.mxu0
          %v3195 = vadd.f32 %v3176, %v3194
          %v3196 = vpop.f32.mrf.mxu0
          %v3197 = vadd.f32 %v3178, %v3196
          %3198 = vdwg.mxu0
          %3199 = vmatpush.bf16.msra.mxu0 %v3120
          %3200 = vmatpush.bf16.msra.mxu0 %v3119
          %3201 = vmatpush.bf16.msra.mxu0 %v3118
          %3202 = vmatpush.bf16.msra.mxu0 %v3117
          %3203 = vmatpush.bf16.msra.mxu0 %v3116
          %3204 = vmatpush.bf16.msra.mxu0 %v3115
          %3205 = vmatpush.bf16.msra.mxu0 %v3114
          %3206 = vmatpush.bf16.msra.mxu0 %v3113
          %3207 = vmatmul.bf16.gmra.mxu0 %v2834
          %v3208 = vpop.f32.mrf.mxu0
          %v3209 = vadd.f32 %v3190, %v3208
          %v3210 = vpop.f32.mrf.mxu0
          %v3211 = vadd.f32 %v3192, %v3210
          %3212 = vmatmul.bf16.gmra.mxu0 %v2838
          %v3213 = vpop.f32.mrf.mxu0
          %v3214 = vadd.f32 %v3195, %v3213
          %v3215 = vpop.f32.mrf.mxu0
          %v3216 = vadd.f32 %v3197, %v3215
          %3217 = vdwg.mxu0
          %3218 = vmatpush.bf16.msra.mxu0 %v3128
          %3219 = vmatpush.bf16.msra.mxu0 %v3127
          %3220 = vmatpush.bf16.msra.mxu0 %v3126
          %3221 = vmatpush.bf16.msra.mxu0 %v3125
          %3222 = vmatpush.bf16.msra.mxu0 %v3124
          %3223 = vmatpush.bf16.msra.mxu0 %v3123
          %3224 = vmatpush.bf16.msra.mxu0 %v3122
          %3225 = vmatpush.bf16.msra.mxu0 %v3121
          %3226 = vmatmul.bf16.gmra.mxu0 %v2835
          %v3227 = vpop.f32.mrf.mxu0
          %v3228 = vadd.f32 %v3209, %v3227
          %v3229 = vpop.f32.mrf.mxu0
          %v3230 = vadd.f32 %v3211, %v3229
          %3231 = vmatmul.bf16.gmra.mxu0 %v2839
          %v3232 = vpop.f32.mrf.mxu0
          %v3233 = vadd.f32 %v3214, %v3232
          %v3234 = vpop.f32.mrf.mxu0
          %v3235 = vadd.f32 %v3216, %v3234
          %3236 = vdwg.mxu0
          %v3301 = vunpack.c.l.b16 %v2840
          %v3302 = vunpack.c.l.b16 %v2841
          %v3303 = vunpack.c.l.b16 %v2842
          %v3304 = vunpack.c.l.b16 %v2843
          %v3305 = vunpack.c.l.b16 %v2844
          %v3306 = vunpack.c.l.b16 %v2845
          %v3307 = vunpack.c.l.b16 %v2846
          %v3308 = vunpack.c.l.b16 %v2847
          %v3309 = vunpack.c.l.b16 %v2848
          %v3310 = vunpack.c.l.b16 %v2849
          %v3311 = vunpack.c.l.b16 %v2850
          %v3312 = vunpack.c.l.b16 %v2851
          %v3313 = vunpack.c.l.b16 %v2852
          %v3314 = vunpack.c.l.b16 %v2853
          %v3315 = vunpack.c.l.b16 %v2854
          %v3316 = vunpack.c.l.b16 %v2855
          %v3317 = vunpack.c.l.b16 %v2856
          %v3318 = vunpack.c.l.b16 %v2857
          %v3319 = vunpack.c.l.b16 %v2858
          %v3320 = vunpack.c.l.b16 %v2859
          %v3321 = vunpack.c.l.b16 %v2860
          %v3322 = vunpack.c.l.b16 %v2861
          %v3323 = vunpack.c.l.b16 %v2862
          %v3324 = vunpack.c.l.b16 %v2863
          %v3325 = vunpack.c.l.b16 %v2864
          %v3326 = vunpack.c.l.b16 %v2865
          %v3327 = vunpack.c.l.b16 %v2866
          %v3328 = vunpack.c.l.b16 %v2867
          %v3329 = vunpack.c.l.b16 %v2868
          %v3330 = vunpack.c.l.b16 %v2869
          %v3331 = vunpack.c.l.b16 %v2870
          %v3332 = vunpack.c.l.b16 %v2871
          %v3333 = vunpack.c.l.b16 %v2872
          %v3334 = vunpack.c.l.b16 %v2873
          %v3335 = vunpack.c.l.b16 %v2874
          %v3336 = vunpack.c.l.b16 %v2875
          %v3337 = vunpack.c.l.b16 %v2876
          %v3338 = vunpack.c.l.b16 %v2877
          %v3339 = vunpack.c.l.b16 %v2878
          %v3340 = vunpack.c.l.b16 %v2879
          %v3341 = vunpack.c.l.b16 %v2880
          %v3342 = vunpack.c.l.b16 %v2881
          %v3343 = vunpack.c.l.b16 %v2882
          %v3344 = vunpack.c.l.b16 %v2883
          %v3345 = vunpack.c.l.b16 %v2884
          %v3346 = vunpack.c.l.b16 %v2885
          %v3347 = vunpack.c.l.b16 %v2886
          %v3348 = vunpack.c.l.b16 %v2887
          %v3349 = vunpack.c.l.b16 %v2888
          %v3350 = vunpack.c.l.b16 %v2889
          %v3351 = vunpack.c.l.b16 %v2890
          %v3352 = vunpack.c.l.b16 %v2891
          %v3353 = vunpack.c.l.b16 %v2892
          %v3354 = vunpack.c.l.b16 %v2893
          %v3355 = vunpack.c.l.b16 %v2894
          %v3356 = vunpack.c.l.b16 %v2895
          %v3357 = vunpack.c.l.b16 %v2896
          %v3358 = vunpack.c.l.b16 %v2897
          %v3359 = vunpack.c.l.b16 %v2898
          %v3360 = vunpack.c.l.b16 %v2899
          %v3361 = vunpack.c.l.b16 %v2900
          %v3362 = vunpack.c.l.b16 %v2901
          %v3363 = vunpack.c.l.b16 %v2902
          %v3364 = vunpack.c.l.b16 %v2903
          %v3365 = vpack.c.b16 %v3302, %v3301
          %v3366 = vpack.c.b16 %v3304, %v3303
          %v3367 = vpack.c.b16 %v3306, %v3305
          %v3368 = vpack.c.b16 %v3308, %v3307
          %v3369 = vpack.c.b16 %v3310, %v3309
          %v3370 = vpack.c.b16 %v3312, %v3311
          %v3371 = vpack.c.b16 %v3314, %v3313
          %v3372 = vpack.c.b16 %v3316, %v3315
          %v3373 = vpack.c.b16 %v3318, %v3317
          %v3374 = vpack.c.b16 %v3320, %v3319
          %v3375 = vpack.c.b16 %v3322, %v3321
          %v3376 = vpack.c.b16 %v3324, %v3323
          %v3377 = vpack.c.b16 %v3326, %v3325
          %v3378 = vpack.c.b16 %v3328, %v3327
          %v3379 = vpack.c.b16 %v3330, %v3329
          %v3380 = vpack.c.b16 %v3332, %v3331
          %v3381 = vpack.c.b16 %v3334, %v3333
          %v3382 = vpack.c.b16 %v3336, %v3335
          %v3383 = vpack.c.b16 %v3338, %v3337
          %v3384 = vpack.c.b16 %v3340, %v3339
          %v3385 = vpack.c.b16 %v3342, %v3341
          %v3386 = vpack.c.b16 %v3344, %v3343
          %v3387 = vpack.c.b16 %v3346, %v3345
          %v3388 = vpack.c.b16 %v3348, %v3347
          %v3389 = vpack.c.b16 %v3350, %v3349
          %v3390 = vpack.c.b16 %v3352, %v3351
          %v3391 = vpack.c.b16 %v3354, %v3353
          %v3392 = vpack.c.b16 %v3356, %v3355
          %v3393 = vpack.c.b16 %v3358, %v3357
          %v3394 = vpack.c.b16 %v3360, %v3359
          %v3395 = vpack.c.b16 %v3362, %v3361
          %v3396 = vpack.c.b16 %v3364, %v3363
          %3429 = vmatpush.bf16.msra.mxu0 %v3372
          %3430 = vmatpush.bf16.msra.mxu0 %v3371
          %3431 = vmatpush.bf16.msra.mxu0 %v3370
          %3432 = vmatpush.bf16.msra.mxu0 %v3369
          %3433 = vmatpush.bf16.msra.mxu0 %v3368
          %3434 = vmatpush.bf16.msra.mxu0 %v3367
          %3435 = vmatpush.bf16.msra.mxu0 %v3366
          %3436 = vmatpush.bf16.msra.mxu0 %v3365
          %3437 = vmatmul.bf16.gmra.mxu0 %v2807
          %v3438 = vpop.f32.mrf.mxu0
          %v3439 = vadd.f32 %v3228, %v3438
          %v3440 = vpop.f32.mrf.mxu0
          %v3441 = vadd.f32 %v3230, %v3440
          %3442 = vmatmul.bf16.gmra.mxu0 %v2811
          %v3443 = vpop.f32.mrf.mxu0
          %v3444 = vadd.f32 %v3233, %v3443
          %v3445 = vpop.f32.mrf.mxu0
          %v3446 = vadd.f32 %v3235, %v3445
          %3447 = vdwg.mxu0
          %3448 = vmatpush.bf16.msra.mxu0 %v3380
          %3449 = vmatpush.bf16.msra.mxu0 %v3379
          %3450 = vmatpush.bf16.msra.mxu0 %v3378
          %3451 = vmatpush.bf16.msra.mxu0 %v3377
          %3452 = vmatpush.bf16.msra.mxu0 %v3376
          %3453 = vmatpush.bf16.msra.mxu0 %v3375
          %3454 = vmatpush.bf16.msra.mxu0 %v3374
          %3455 = vmatpush.bf16.msra.mxu0 %v3373
          %3456 = vmatmul.bf16.gmra.mxu0 %v2808
          %v3457 = vpop.f32.mrf.mxu0
          %v3458 = vadd.f32 %v3439, %v3457
          %v3459 = vpop.f32.mrf.mxu0
          %v3460 = vadd.f32 %v3441, %v3459
          %3461 = vmatmul.bf16.gmra.mxu0 %v2812
          %v3462 = vpop.f32.mrf.mxu0
          %v3463 = vadd.f32 %v3444, %v3462
          %v3464 = vpop.f32.mrf.mxu0
          %v3465 = vadd.f32 %v3446, %v3464
          %3466 = vdwg.mxu0
          %3467 = vmatpush.bf16.msra.mxu0 %v3388
          %3468 = vmatpush.bf16.msra.mxu0 %v3387
          %3469 = vmatpush.bf16.msra.mxu0 %v3386
          %3470 = vmatpush.bf16.msra.mxu0 %v3385
          %3471 = vmatpush.bf16.msra.mxu0 %v3384
          %3472 = vmatpush.bf16.msra.mxu0 %v3383
          %3473 = vmatpush.bf16.msra.mxu0 %v3382
          %3474 = vmatpush.bf16.msra.mxu0 %v3381
          %3475 = vmatmul.bf16.gmra.mxu0 %v2809
          %v3476 = vpop.f32.mrf.mxu0
          %v3477 = vadd.f32 %v3458, %v3476
          %v3478 = vpop.f32.mrf.mxu0
          %v3479 = vadd.f32 %v3460, %v3478
          %3480 = vmatmul.bf16.gmra.mxu0 %v2813
          %v3481 = vpop.f32.mrf.mxu0
          %v3482 = vadd.f32 %v3463, %v3481
          %v3483 = vpop.f32.mrf.mxu0
          %v3484 = vadd.f32 %v3465, %v3483
          %3485 = vdwg.mxu0
          %3486 = vmatpush.bf16.msra.mxu0 %v3396
          %3487 = vmatpush.bf16.msra.mxu0 %v3395
          %3488 = vmatpush.bf16.msra.mxu0 %v3394
          %3489 = vmatpush.bf16.msra.mxu0 %v3393
          %3490 = vmatpush.bf16.msra.mxu0 %v3392
          %3491 = vmatpush.bf16.msra.mxu0 %v3391
          %3492 = vmatpush.bf16.msra.mxu0 %v3390
          %3493 = vmatpush.bf16.msra.mxu0 %v3389
          %3494 = vmatmul.bf16.gmra.mxu0 %v2810
          %v3495 = vpop.f32.mrf.mxu0
          %v3496 = vadd.f32 %v3477, %v3495
          %v3497 = vpop.f32.mrf.mxu0
          %v3498 = vadd.f32 %v3479, %v3497
          %3499 = vmatmul.bf16.gmra.mxu0 %v2814
          %v3500 = vpop.f32.mrf.mxu0
          %v3501 = vadd.f32 %v3482, %v3500
          %v3502 = vpop.f32.mrf.mxu0
          %v3503 = vadd.f32 %v3484, %v3502
          %3504 = vdwg.mxu0
          %v3505 = vld [vmem:[#allocation20] sm:$0x1]
          %v3507 = vperm.slane %v3505, 0
          %v3509 = vadd.f32 %v3496, %v3507
          %v3510 = vadd.f32 %v3498, %v3507
          %v3511 = vadd.f32 %v3501, %v3507
          %v3512 = vadd.f32 %v3503, %v3507
          %v3513 = vmax.f32 %v3509, 0.0
          %v3514 = vmax.f32 %v3510, 0.0
          %v3515 = vmax.f32 %v3511, 0.0
          %v3516 = vmax.f32 %v3512, 0.0
          %v3517 = vpack.c.bf16 %v3514, %v3513
          %v3518 = vpack.c.bf16 %v3516, %v3515
          %v3519 = vld [vmem:[#allocation21] sm:$0xf]
          %v3520 = vld [vmem:[#allocation21 + $0x4] sm:$0xf]
          %v3521 = vld [vmem:[#allocation21 + $0x8] sm:$0xf]
          %v3522 = vld [vmem:[#allocation21 + $0xc] sm:$0xf]
          %v3523 = vld [vmem:[#allocation21 + $0x10] sm:$0xf]
          %v3524 = vld [vmem:[#allocation21 + $0x14] sm:$0xf]
          %v3525 = vld [vmem:[#allocation21 + $0x18] sm:$0xf]
          %v3526 = vld [vmem:[#allocation21 + $0x1c] sm:$0xf]
          %v3527 = vld [vmem:[#allocation21 + $0x20] sm:$0xf]
          %v3528 = vld [vmem:[#allocation21 + $0x24] sm:$0xf]
          %v3529 = vld [vmem:[#allocation21 + $0x28] sm:$0xf]
          %v3530 = vld [vmem:[#allocation21 + $0x2c] sm:$0xf]
          %v3531 = vld [vmem:[#allocation21 + $0x30] sm:$0xf]
          %v3532 = vld [vmem:[#allocation21 + $0x34] sm:$0xf]
          %v3533 = vld [vmem:[#allocation21 + $0x38] sm:$0xf]
          %v3534 = vld [vmem:[#allocation21 + $0x3c] sm:$0xf]
          %v3535 = vld [vmem:[#allocation23] sm:$0xf]
          %v3536 = vld [vmem:[#allocation23 + $0x4] sm:$0xf]
          %v3537 = vld [vmem:[#allocation23 + $0x8] sm:$0xf]
          %v3538 = vld [vmem:[#allocation23 + $0xc] sm:$0xf]
          %v3539 = vld [vmem:[#allocation23 + $0x10] sm:$0xf]
          %v3540 = vld [vmem:[#allocation23 + $0x14] sm:$0xf]
          %v3541 = vld [vmem:[#allocation23 + $0x18] sm:$0xf]
          %v3542 = vld [vmem:[#allocation23 + $0x1c] sm:$0xf]
          %v3543 = vld [vmem:[#allocation23 + $0x20] sm:$0xf]
          %v3544 = vld [vmem:[#allocation23 + $0x24] sm:$0xf]
          %v3545 = vld [vmem:[#allocation23 + $0x28] sm:$0xf]
          %v3546 = vld [vmem:[#allocation23 + $0x2c] sm:$0xf]
          %v3547 = vld [vmem:[#allocation23 + $0x30] sm:$0xf]
          %v3548 = vld [vmem:[#allocation23 + $0x34] sm:$0xf]
          %v3549 = vld [vmem:[#allocation23 + $0x38] sm:$0xf]
          %v3550 = vld [vmem:[#allocation23 + $0x3c] sm:$0xf]
          %v3551 = vld [vmem:[#allocation23 + $0x40] sm:$0xf]
          %v3552 = vld [vmem:[#allocation23 + $0x44] sm:$0xf]
          %v3553 = vld [vmem:[#allocation23 + $0x48] sm:$0xf]
          %v3554 = vld [vmem:[#allocation23 + $0x4c] sm:$0xf]
          %v3555 = vld [vmem:[#allocation23 + $0x50] sm:$0xf]
          %v3556 = vld [vmem:[#allocation23 + $0x54] sm:$0xf]
          %v3557 = vld [vmem:[#allocation23 + $0x58] sm:$0xf]
          %v3558 = vld [vmem:[#allocation23 + $0x5c] sm:$0xf]
          %v3559 = vld [vmem:[#allocation23 + $0x60] sm:$0xf]
          %v3560 = vld [vmem:[#allocation23 + $0x64] sm:$0xf]
          %v3561 = vld [vmem:[#allocation23 + $0x68] sm:$0xf]
          %v3562 = vld [vmem:[#allocation23 + $0x6c] sm:$0xf]
          %v3563 = vld [vmem:[#allocation23 + $0x70] sm:$0xf]
          %v3564 = vld [vmem:[#allocation23 + $0x74] sm:$0xf]
          %v3565 = vld [vmem:[#allocation23 + $0x78] sm:$0xf]
          %v3566 = vld [vmem:[#allocation23 + $0x7c] sm:$0xf]
          %v3567 = vld [vmem:[#allocation23 + $0x80] sm:$0xf]
          %v3568 = vld [vmem:[#allocation23 + $0x84] sm:$0xf]
          %v3569 = vld [vmem:[#allocation23 + $0x88] sm:$0xf]
          %v3570 = vld [vmem:[#allocation23 + $0x8c] sm:$0xf]
          %v3571 = vld [vmem:[#allocation23 + $0x90] sm:$0xf]
          %v3572 = vld [vmem:[#allocation23 + $0x94] sm:$0xf]
          %v3573 = vld [vmem:[#allocation23 + $0x98] sm:$0xf]
          %v3574 = vld [vmem:[#allocation23 + $0x9c] sm:$0xf]
          %v3575 = vld [vmem:[#allocation23 + $0xa0] sm:$0xf]
          %v3576 = vld [vmem:[#allocation23 + $0xa4] sm:$0xf]
          %v3577 = vld [vmem:[#allocation23 + $0xa8] sm:$0xf]
          %v3578 = vld [vmem:[#allocation23 + $0xac] sm:$0xf]
          %v3579 = vld [vmem:[#allocation23 + $0xb0] sm:$0xf]
          %v3580 = vld [vmem:[#allocation23 + $0xb4] sm:$0xf]
          %v3581 = vld [vmem:[#allocation23 + $0xb8] sm:$0xf]
          %v3582 = vld [vmem:[#allocation23 + $0xbc] sm:$0xf]
          %v3583 = vld [vmem:[#allocation23 + $0xc0] sm:$0xf]
          %v3584 = vld [vmem:[#allocation23 + $0xc4] sm:$0xf]
          %v3585 = vld [vmem:[#allocation23 + $0xc8] sm:$0xf]
          %v3586 = vld [vmem:[#allocation23 + $0xcc] sm:$0xf]
          %v3587 = vld [vmem:[#allocation23 + $0xd0] sm:$0xf]
          %v3588 = vld [vmem:[#allocation23 + $0xd4] sm:$0xf]
          %v3589 = vld [vmem:[#allocation23 + $0xd8] sm:$0xf]
          %v3590 = vld [vmem:[#allocation23 + $0xdc] sm:$0xf]
          %v3591 = vld [vmem:[#allocation23 + $0xe0] sm:$0xf]
          %v3592 = vld [vmem:[#allocation23 + $0xe4] sm:$0xf]
          %v3593 = vld [vmem:[#allocation23 + $0xe8] sm:$0xf]
          %v3594 = vld [vmem:[#allocation23 + $0xec] sm:$0xf]
          %v3595 = vld [vmem:[#allocation23 + $0xf0] sm:$0xf]
          %v3596 = vld [vmem:[#allocation23 + $0xf4] sm:$0xf]
          %v3597 = vld [vmem:[#allocation23 + $0xf8] sm:$0xf]
          %v3598 = vld [vmem:[#allocation23 + $0xfc] sm:$0xf]
          %v3663 = vunpack.c.l.b16 %v3535
          %v3664 = vunpack.c.l.b16 %v3536
          %v3665 = vunpack.c.l.b16 %v3537
          %v3666 = vunpack.c.l.b16 %v3538
          %v3667 = vunpack.c.l.b16 %v3539
          %v3668 = vunpack.c.l.b16 %v3540
          %v3669 = vunpack.c.l.b16 %v3541
          %v3670 = vunpack.c.l.b16 %v3542
          %v3671 = vunpack.c.l.b16 %v3543
          %v3672 = vunpack.c.l.b16 %v3544
          %v3673 = vunpack.c.l.b16 %v3545
          %v3674 = vunpack.c.l.b16 %v3546
          %v3675 = vunpack.c.l.b16 %v3547
          %v3676 = vunpack.c.l.b16 %v3548
          %v3677 = vunpack.c.l.b16 %v3549
          %v3678 = vunpack.c.l.b16 %v3550
          %v3679 = vunpack.c.l.b16 %v3551
          %v3680 = vunpack.c.l.b16 %v3552
          %v3681 = vunpack.c.l.b16 %v3553
          %v3682 = vunpack.c.l.b16 %v3554
          %v3683 = vunpack.c.l.b16 %v3555
          %v3684 = vunpack.c.l.b16 %v3556
          %v3685 = vunpack.c.l.b16 %v3557
          %v3686 = vunpack.c.l.b16 %v3558
          %v3687 = vunpack.c.l.b16 %v3559
          %v3688 = vunpack.c.l.b16 %v3560
          %v3689 = vunpack.c.l.b16 %v3561
          %v3690 = vunpack.c.l.b16 %v3562
          %v3691 = vunpack.c.l.b16 %v3563
          %v3692 = vunpack.c.l.b16 %v3564
          %v3693 = vunpack.c.l.b16 %v3565
          %v3694 = vunpack.c.l.b16 %v3566
          %v3695 = vunpack.c.l.b16 %v3567
          %v3696 = vunpack.c.l.b16 %v3568
          %v3697 = vunpack.c.l.b16 %v3569
          %v3698 = vunpack.c.l.b16 %v3570
          %v3699 = vunpack.c.l.b16 %v3571
          %v3700 = vunpack.c.l.b16 %v3572
          %v3701 = vunpack.c.l.b16 %v3573
          %v3702 = vunpack.c.l.b16 %v3574
          %v3703 = vunpack.c.l.b16 %v3575
          %v3704 = vunpack.c.l.b16 %v3576
          %v3705 = vunpack.c.l.b16 %v3577
          %v3706 = vunpack.c.l.b16 %v3578
          %v3707 = vunpack.c.l.b16 %v3579
          %v3708 = vunpack.c.l.b16 %v3580
          %v3709 = vunpack.c.l.b16 %v3581
          %v3710 = vunpack.c.l.b16 %v3582
          %v3711 = vunpack.c.l.b16 %v3583
          %v3712 = vunpack.c.l.b16 %v3584
          %v3713 = vunpack.c.l.b16 %v3585
          %v3714 = vunpack.c.l.b16 %v3586
          %v3715 = vunpack.c.l.b16 %v3587
          %v3716 = vunpack.c.l.b16 %v3588
          %v3717 = vunpack.c.l.b16 %v3589
          %v3718 = vunpack.c.l.b16 %v3590
          %v3719 = vunpack.c.l.b16 %v3591
          %v3720 = vunpack.c.l.b16 %v3592
          %v3721 = vunpack.c.l.b16 %v3593
          %v3722 = vunpack.c.l.b16 %v3594
          %v3723 = vunpack.c.l.b16 %v3595
          %v3724 = vunpack.c.l.b16 %v3596
          %v3725 = vunpack.c.l.b16 %v3597
          %v3726 = vunpack.c.l.b16 %v3598
          %v3727 = vpack.c.b16 %v3664, %v3663
          %v3728 = vpack.c.b16 %v3666, %v3665
          %v3729 = vpack.c.b16 %v3668, %v3667
          %v3730 = vpack.c.b16 %v3670, %v3669
          %v3731 = vpack.c.b16 %v3672, %v3671
          %v3732 = vpack.c.b16 %v3674, %v3673
          %v3733 = vpack.c.b16 %v3676, %v3675
          %v3734 = vpack.c.b16 %v3678, %v3677
          %v3735 = vpack.c.b16 %v3680, %v3679
          %v3736 = vpack.c.b16 %v3682, %v3681
          %v3737 = vpack.c.b16 %v3684, %v3683
          %v3738 = vpack.c.b16 %v3686, %v3685
          %v3739 = vpack.c.b16 %v3688, %v3687
          %v3740 = vpack.c.b16 %v3690, %v3689
          %v3741 = vpack.c.b16 %v3692, %v3691
          %v3742 = vpack.c.b16 %v3694, %v3693
          %v3743 = vpack.c.b16 %v3696, %v3695
          %v3744 = vpack.c.b16 %v3698, %v3697
          %v3745 = vpack.c.b16 %v3700, %v3699
          %v3746 = vpack.c.b16 %v3702, %v3701
          %v3747 = vpack.c.b16 %v3704, %v3703
          %v3748 = vpack.c.b16 %v3706, %v3705
          %v3749 = vpack.c.b16 %v3708, %v3707
          %v3750 = vpack.c.b16 %v3710, %v3709
          %v3751 = vpack.c.b16 %v3712, %v3711
          %v3752 = vpack.c.b16 %v3714, %v3713
          %v3753 = vpack.c.b16 %v3716, %v3715
          %v3754 = vpack.c.b16 %v3718, %v3717
          %v3755 = vpack.c.b16 %v3720, %v3719
          %v3756 = vpack.c.b16 %v3722, %v3721
          %v3757 = vpack.c.b16 %v3724, %v3723
          %v3758 = vpack.c.b16 %v3726, %v3725
          %3791 = vmatpush.bf16.msra.mxu0 %v3734
          %3792 = vmatpush.bf16.msra.mxu0 %v3733
          %3793 = vmatpush.bf16.msra.mxu0 %v3732
          %3794 = vmatpush.bf16.msra.mxu0 %v3731
          %3795 = vmatpush.bf16.msra.mxu0 %v3730
          %3796 = vmatpush.bf16.msra.mxu0 %v3729
          %3797 = vmatpush.bf16.msra.mxu0 %v3728
          %3798 = vmatpush.bf16.msra.mxu0 %v3727
          %3799 = vmatmul.bf16.gmra.mxu0 %v2807
          %v3800 = vpop.f32.mrf.mxu0
          %v3801 = vadd.f32 0.0, %v3800
          %v3802 = vpop.f32.mrf.mxu0
          %v3803 = vadd.f32 0.0, %v3802
          %3804 = vmatmul.bf16.gmra.mxu0 %v2811
          %v3805 = vpop.f32.mrf.mxu0
          %v3806 = vadd.f32 0.0, %v3805
          %v3807 = vpop.f32.mrf.mxu0
          %v3808 = vadd.f32 0.0, %v3807
          %3809 = vdwg.mxu0
          %3810 = vmatpush.bf16.msra.mxu0 %v3742
          %3811 = vmatpush.bf16.msra.mxu0 %v3741
          %3812 = vmatpush.bf16.msra.mxu0 %v3740
          %3813 = vmatpush.bf16.msra.mxu0 %v3739
          %3814 = vmatpush.bf16.msra.mxu0 %v3738
          %3815 = vmatpush.bf16.msra.mxu0 %v3737
          %3816 = vmatpush.bf16.msra.mxu0 %v3736
          %3817 = vmatpush.bf16.msra.mxu0 %v3735
          %3818 = vmatmul.bf16.gmra.mxu0 %v2808
          %v3819 = vpop.f32.mrf.mxu0
          %v3820 = vadd.f32 %v3801, %v3819
          %v3821 = vpop.f32.mrf.mxu0
          %v3822 = vadd.f32 %v3803, %v3821
          %3823 = vmatmul.bf16.gmra.mxu0 %v2812
          %v3824 = vpop.f32.mrf.mxu0
          %v3825 = vadd.f32 %v3806, %v3824
          %v3826 = vpop.f32.mrf.mxu0
          %v3827 = vadd.f32 %v3808, %v3826
          %3828 = vdwg.mxu0
          %3829 = vmatpush.bf16.msra.mxu0 %v3750
          %3830 = vmatpush.bf16.msra.mxu0 %v3749
          %3831 = vmatpush.bf16.msra.mxu0 %v3748
          %3832 = vmatpush.bf16.msra.mxu0 %v3747
          %3833 = vmatpush.bf16.msra.mxu0 %v3746
          %3834 = vmatpush.bf16.msra.mxu0 %v3745
          %3835 = vmatpush.bf16.msra.mxu0 %v3744
          %3836 = vmatpush.bf16.msra.mxu0 %v3743
          %3837 = vmatmul.bf16.gmra.mxu0 %v2809
          %v3838 = vpop.f32.mrf.mxu0
          %v3839 = vadd.f32 %v3820, %v3838
          %v3840 = vpop.f32.mrf.mxu0
          %v3841 = vadd.f32 %v3822, %v3840
          %3842 = vmatmul.bf16.gmra.mxu0 %v2813
          %v3843 = vpop.f32.mrf.mxu0
          %v3844 = vadd.f32 %v3825, %v3843
          %v3845 = vpop.f32.mrf.mxu0
          %v3846 = vadd.f32 %v3827, %v3845
          %3847 = vdwg.mxu0
          %3848 = vmatpush.bf16.msra.mxu0 %v3758
          %3849 = vmatpush.bf16.msra.mxu0 %v3757
          %3850 = vmatpush.bf16.msra.mxu0 %v3756
          %3851 = vmatpush.bf16.msra.mxu0 %v3755
          %3852 = vmatpush.bf16.msra.mxu0 %v3754
          %3853 = vmatpush.bf16.msra.mxu0 %v3753
          %3854 = vmatpush.bf16.msra.mxu0 %v3752
          %3855 = vmatpush.bf16.msra.mxu0 %v3751
          %3856 = vmatmul.bf16.gmra.mxu0 %v2810
          %v3857 = vpop.f32.mrf.mxu0
          %v3858 = vadd.f32 %v3839, %v3857
          %v3859 = vpop.f32.mrf.mxu0
          %v3860 = vadd.f32 %v3841, %v3859
          %3861 = vmatmul.bf16.gmra.mxu0 %v2814
          %v3862 = vpop.f32.mrf.mxu0
          %v3863 = vadd.f32 %v3844, %v3862
          %v3864 = vpop.f32.mrf.mxu0
          %v3865 = vadd.f32 %v3846, %v3864
          %3866 = vdwg.mxu0
          %v3883 = vunpack.c.l.b16 %v3519
          %v3884 = vunpack.c.l.b16 %v3520
          %v3885 = vunpack.c.l.b16 %v3521
          %v3886 = vunpack.c.l.b16 %v3522
          %v3887 = vunpack.c.l.b16 %v3523
          %v3888 = vunpack.c.l.b16 %v3524
          %v3889 = vunpack.c.l.b16 %v3525
          %v3890 = vunpack.c.l.b16 %v3526
          %v3891 = vunpack.c.l.b16 %v3527
          %v3892 = vunpack.c.l.b16 %v3528
          %v3893 = vunpack.c.l.b16 %v3529
          %v3894 = vunpack.c.l.b16 %v3530
          %v3895 = vunpack.c.l.b16 %v3531
          %v3896 = vunpack.c.l.b16 %v3532
          %v3897 = vunpack.c.l.b16 %v3533
          %v3898 = vunpack.c.l.b16 %v3534
          %v3899 = vpack.c.b16 %v3884, %v3883
          %v3900 = vpack.c.b16 %v3886, %v3885
          %v3901 = vpack.c.b16 %v3888, %v3887
          %v3902 = vpack.c.b16 %v3890, %v3889
          %v3903 = vpack.c.b16 %v3892, %v3891
          %v3904 = vpack.c.b16 %v3894, %v3893
          %v3905 = vpack.c.b16 %v3896, %v3895
          %v3906 = vpack.c.b16 %v3898, %v3897
          %3915 = vmatpush.bf16.msra.mxu0 %v3906
          %3916 = vmatpush.bf16.msra.mxu0 %v3905
          %3917 = vmatpush.bf16.msra.mxu0 %v3904
          %3918 = vmatpush.bf16.msra.mxu0 %v3903
          %3919 = vmatpush.bf16.msra.mxu0 %v3902
          %3920 = vmatpush.bf16.msra.mxu0 %v3901
          %3921 = vmatpush.bf16.msra.mxu0 %v3900
          %3922 = vmatpush.bf16.msra.mxu0 %v3899
          %3923 = vmatmul.bf16.gmra.mxu0 %v3517
          %v3924 = vpop.f32.mrf.mxu0
          %v3925 = vadd.f32 %v3858, %v3924
          %v3926 = vpop.f32.mrf.mxu0
          %v3927 = vadd.f32 %v3860, %v3926
          %3928 = vmatmul.bf16.gmra.mxu0 %v3518
          %v3929 = vpop.f32.mrf.mxu0
          %v3930 = vadd.f32 %v3863, %v3929
          %v3931 = vpop.f32.mrf.mxu0
          %v3932 = vadd.f32 %v3865, %v3931
          %3933 = vdwg.mxu0
          %s3934 = scalar_lea.vmem [#allocation23], 256
          %v3935 = vld [vmem:[%s3934] sm:$0xf]
          %v3936 = vld [vmem:[%s3934 + $0x4] sm:$0xf]
          %v3937 = vld [vmem:[%s3934 + $0x8] sm:$0xf]
          %v3938 = vld [vmem:[%s3934 + $0xc] sm:$0xf]
          %v3939 = vld [vmem:[%s3934 + $0x10] sm:$0xf]
          %v3940 = vld [vmem:[%s3934 + $0x14] sm:$0xf]
          %v3941 = vld [vmem:[%s3934 + $0x18] sm:$0xf]
          %v3942 = vld [vmem:[%s3934 + $0x1c] sm:$0xf]
          %v3943 = vld [vmem:[%s3934 + $0x20] sm:$0xf]
          %v3944 = vld [vmem:[%s3934 + $0x24] sm:$0xf]
          %v3945 = vld [vmem:[%s3934 + $0x28] sm:$0xf]
          %v3946 = vld [vmem:[%s3934 + $0x2c] sm:$0xf]
          %v3947 = vld [vmem:[%s3934 + $0x30] sm:$0xf]
          %v3948 = vld [vmem:[%s3934 + $0x34] sm:$0xf]
          %v3949 = vld [vmem:[%s3934 + $0x38] sm:$0xf]
          %v3950 = vld [vmem:[%s3934 + $0x3c] sm:$0xf]
          %v3951 = vld [vmem:[%s3934 + $0x40] sm:$0xf]
          %v3952 = vld [vmem:[%s3934 + $0x44] sm:$0xf]
          %v3953 = vld [vmem:[%s3934 + $0x48] sm:$0xf]
          %v3954 = vld [vmem:[%s3934 + $0x4c] sm:$0xf]
          %v3955 = vld [vmem:[%s3934 + $0x50] sm:$0xf]
          %v3956 = vld [vmem:[%s3934 + $0x54] sm:$0xf]
          %v3957 = vld [vmem:[%s3934 + $0x58] sm:$0xf]
          %v3958 = vld [vmem:[%s3934 + $0x5c] sm:$0xf]
          %v3959 = vld [vmem:[%s3934 + $0x60] sm:$0xf]
          %v3960 = vld [vmem:[%s3934 + $0x64] sm:$0xf]
          %v3961 = vld [vmem:[%s3934 + $0x68] sm:$0xf]
          %v3962 = vld [vmem:[%s3934 + $0x6c] sm:$0xf]
          %v3963 = vld [vmem:[%s3934 + $0x70] sm:$0xf]
          %v3964 = vld [vmem:[%s3934 + $0x74] sm:$0xf]
          %v3965 = vld [vmem:[%s3934 + $0x78] sm:$0xf]
          %v3966 = vld [vmem:[%s3934 + $0x7c] sm:$0xf]
          %v3967 = vld [vmem:[%s3934 + $0x80] sm:$0xf]
          %v3968 = vld [vmem:[%s3934 + $0x84] sm:$0xf]
          %v3969 = vld [vmem:[%s3934 + $0x88] sm:$0xf]
          %v3970 = vld [vmem:[%s3934 + $0x8c] sm:$0xf]
          %v3971 = vld [vmem:[%s3934 + $0x90] sm:$0xf]
          %v3972 = vld [vmem:[%s3934 + $0x94] sm:$0xf]
          %v3973 = vld [vmem:[%s3934 + $0x98] sm:$0xf]
          %v3974 = vld [vmem:[%s3934 + $0x9c] sm:$0xf]
          %v3975 = vld [vmem:[%s3934 + $0xa0] sm:$0xf]
          %v3976 = vld [vmem:[%s3934 + $0xa4] sm:$0xf]
          %v3977 = vld [vmem:[%s3934 + $0xa8] sm:$0xf]
          %v3978 = vld [vmem:[%s3934 + $0xac] sm:$0xf]
          %v3979 = vld [vmem:[%s3934 + $0xb0] sm:$0xf]
          %v3980 = vld [vmem:[%s3934 + $0xb4] sm:$0xf]
          %v3981 = vld [vmem:[%s3934 + $0xb8] sm:$0xf]
          %v3982 = vld [vmem:[%s3934 + $0xbc] sm:$0xf]
          %v3983 = vld [vmem:[%s3934 + $0xc0] sm:$0xf]
          %v3984 = vld [vmem:[%s3934 + $0xc4] sm:$0xf]
          %v3985 = vld [vmem:[%s3934 + $0xc8] sm:$0xf]
          %v3986 = vld [vmem:[%s3934 + $0xcc] sm:$0xf]
          %v3987 = vld [vmem:[%s3934 + $0xd0] sm:$0xf]
          %v3988 = vld [vmem:[%s3934 + $0xd4] sm:$0xf]
          %v3989 = vld [vmem:[%s3934 + $0xd8] sm:$0xf]
          %v3990 = vld [vmem:[%s3934 + $0xdc] sm:$0xf]
          %v3991 = vld [vmem:[%s3934 + $0xe0] sm:$0xf]
          %v3992 = vld [vmem:[%s3934 + $0xe4] sm:$0xf]
          %v3993 = vld [vmem:[%s3934 + $0xe8] sm:$0xf]
          %v3994 = vld [vmem:[%s3934 + $0xec] sm:$0xf]
          %v3995 = vld [vmem:[%s3934 + $0xf0] sm:$0xf]
          %v3996 = vld [vmem:[%s3934 + $0xf4] sm:$0xf]
          %v3997 = vld [vmem:[%s3934 + $0xf8] sm:$0xf]
          %v3998 = vld [vmem:[%s3934 + $0xfc] sm:$0xf]
          %v4063 = vunpack.c.l.b16 %v3935
          %v4064 = vunpack.c.l.b16 %v3936
          %v4065 = vunpack.c.l.b16 %v3937
          %v4066 = vunpack.c.l.b16 %v3938
          %v4067 = vunpack.c.l.b16 %v3939
          %v4068 = vunpack.c.l.b16 %v3940
          %v4069 = vunpack.c.l.b16 %v3941
          %v4070 = vunpack.c.l.b16 %v3942
          %v4071 = vunpack.c.l.b16 %v3943
          %v4072 = vunpack.c.l.b16 %v3944
          %v4073 = vunpack.c.l.b16 %v3945
          %v4074 = vunpack.c.l.b16 %v3946
          %v4075 = vunpack.c.l.b16 %v3947
          %v4076 = vunpack.c.l.b16 %v3948
          %v4077 = vunpack.c.l.b16 %v3949
          %v4078 = vunpack.c.l.b16 %v3950
          %v4079 = vunpack.c.l.b16 %v3951
          %v4080 = vunpack.c.l.b16 %v3952
          %v4081 = vunpack.c.l.b16 %v3953
          %v4082 = vunpack.c.l.b16 %v3954
          %v4083 = vunpack.c.l.b16 %v3955
          %v4084 = vunpack.c.l.b16 %v3956
          %v4085 = vunpack.c.l.b16 %v3957
          %v4086 = vunpack.c.l.b16 %v3958
          %v4087 = vunpack.c.l.b16 %v3959
          %v4088 = vunpack.c.l.b16 %v3960
          %v4089 = vunpack.c.l.b16 %v3961
          %v4090 = vunpack.c.l.b16 %v3962
          %v4091 = vunpack.c.l.b16 %v3963
          %v4092 = vunpack.c.l.b16 %v3964
          %v4093 = vunpack.c.l.b16 %v3965
          %v4094 = vunpack.c.l.b16 %v3966
          %v4095 = vunpack.c.l.b16 %v3967
          %v4096 = vunpack.c.l.b16 %v3968
          %v4097 = vunpack.c.l.b16 %v3969
          %v4098 = vunpack.c.l.b16 %v3970
          %v4099 = vunpack.c.l.b16 %v3971
          %v4100 = vunpack.c.l.b16 %v3972
          %v4101 = vunpack.c.l.b16 %v3973
          %v4102 = vunpack.c.l.b16 %v3974
          %v4103 = vunpack.c.l.b16 %v3975
          %v4104 = vunpack.c.l.b16 %v3976
          %v4105 = vunpack.c.l.b16 %v3977
          %v4106 = vunpack.c.l.b16 %v3978
          %v4107 = vunpack.c.l.b16 %v3979
          %v4108 = vunpack.c.l.b16 %v3980
          %v4109 = vunpack.c.l.b16 %v3981
          %v4110 = vunpack.c.l.b16 %v3982
          %v4111 = vunpack.c.l.b16 %v3983
          %v4112 = vunpack.c.l.b16 %v3984
          %v4113 = vunpack.c.l.b16 %v3985
          %v4114 = vunpack.c.l.b16 %v3986
          %v4115 = vunpack.c.l.b16 %v3987
          %v4116 = vunpack.c.l.b16 %v3988
          %v4117 = vunpack.c.l.b16 %v3989
          %v4118 = vunpack.c.l.b16 %v3990
          %v4119 = vunpack.c.l.b16 %v3991
          %v4120 = vunpack.c.l.b16 %v3992
          %v4121 = vunpack.c.l.b16 %v3993
          %v4122 = vunpack.c.l.b16 %v3994
          %v4123 = vunpack.c.l.b16 %v3995
          %v4124 = vunpack.c.l.b16 %v3996
          %v4125 = vunpack.c.l.b16 %v3997
          %v4126 = vunpack.c.l.b16 %v3998
          %v4127 = vpack.c.b16 %v4064, %v4063
          %v4128 = vpack.c.b16 %v4066, %v4065
          %v4129 = vpack.c.b16 %v4068, %v4067
          %v4130 = vpack.c.b16 %v4070, %v4069
          %v4131 = vpack.c.b16 %v4072, %v4071
          %v4132 = vpack.c.b16 %v4074, %v4073
          %v4133 = vpack.c.b16 %v4076, %v4075
          %v4134 = vpack.c.b16 %v4078, %v4077
          %v4135 = vpack.c.b16 %v4080, %v4079
          %v4136 = vpack.c.b16 %v4082, %v4081
          %v4137 = vpack.c.b16 %v4084, %v4083
          %v4138 = vpack.c.b16 %v4086, %v4085
          %v4139 = vpack.c.b16 %v4088, %v4087
          %v4140 = vpack.c.b16 %v4090, %v4089
          %v4141 = vpack.c.b16 %v4092, %v4091
          %v4142 = vpack.c.b16 %v4094, %v4093
          %v4143 = vpack.c.b16 %v4096, %v4095
          %v4144 = vpack.c.b16 %v4098, %v4097
          %v4145 = vpack.c.b16 %v4100, %v4099
          %v4146 = vpack.c.b16 %v4102, %v4101
          %v4147 = vpack.c.b16 %v4104, %v4103
          %v4148 = vpack.c.b16 %v4106, %v4105
          %v4149 = vpack.c.b16 %v4108, %v4107
          %v4150 = vpack.c.b16 %v4110, %v4109
          %v4151 = vpack.c.b16 %v4112, %v4111
          %v4152 = vpack.c.b16 %v4114, %v4113
          %v4153 = vpack.c.b16 %v4116, %v4115
          %v4154 = vpack.c.b16 %v4118, %v4117
          %v4155 = vpack.c.b16 %v4120, %v4119
          %v4156 = vpack.c.b16 %v4122, %v4121
          %v4157 = vpack.c.b16 %v4124, %v4123
          %v4158 = vpack.c.b16 %v4126, %v4125
          %4191 = vmatpush.bf16.msra.mxu0 %v4134
          %4192 = vmatpush.bf16.msra.mxu0 %v4133
          %4193 = vmatpush.bf16.msra.mxu0 %v4132
          %4194 = vmatpush.bf16.msra.mxu0 %v4131
          %4195 = vmatpush.bf16.msra.mxu0 %v4130
          %4196 = vmatpush.bf16.msra.mxu0 %v4129
          %4197 = vmatpush.bf16.msra.mxu0 %v4128
          %4198 = vmatpush.bf16.msra.mxu0 %v4127
          %4199 = vmatmul.bf16.gmra.mxu0 %v2832
          %v4200 = vpop.f32.mrf.mxu0
          %v4201 = vadd.f32 0.0, %v4200
          %v4202 = vpop.f32.mrf.mxu0
          %v4203 = vadd.f32 0.0, %v4202
          %4204 = vmatmul.bf16.gmra.mxu0 %v2836
          %v4205 = vpop.f32.mrf.mxu0
          %v4206 = vadd.f32 0.0, %v4205
          %v4207 = vpop.f32.mrf.mxu0
          %v4208 = vadd.f32 0.0, %v4207
          %4209 = vdwg.mxu0
          %4210 = vmatpush.bf16.msra.mxu0 %v4142
          %4211 = vmatpush.bf16.msra.mxu0 %v4141
          %4212 = vmatpush.bf16.msra.mxu0 %v4140
          %4213 = vmatpush.bf16.msra.mxu0 %v4139
          %4214 = vmatpush.bf16.msra.mxu0 %v4138
          %4215 = vmatpush.bf16.msra.mxu0 %v4137
          %4216 = vmatpush.bf16.msra.mxu0 %v4136
          %4217 = vmatpush.bf16.msra.mxu0 %v4135
          %4218 = vmatmul.bf16.gmra.mxu0 %v2833
          %v4219 = vpop.f32.mrf.mxu0
          %v4220 = vadd.f32 %v4201, %v4219
          %v4221 = vpop.f32.mrf.mxu0
          %v4222 = vadd.f32 %v4203, %v4221
          %4223 = vmatmul.bf16.gmra.mxu0 %v2837
          %v4224 = vpop.f32.mrf.mxu0
          %v4225 = vadd.f32 %v4206, %v4224
          %v4226 = vpop.f32.mrf.mxu0
          %v4227 = vadd.f32 %v4208, %v4226
          %4228 = vdwg.mxu0
          %4229 = vmatpush.bf16.msra.mxu0 %v4150
          %4230 = vmatpush.bf16.msra.mxu0 %v4149
          %4231 = vmatpush.bf16.msra.mxu0 %v4148
          %4232 = vmatpush.bf16.msra.mxu0 %v4147
          %4233 = vmatpush.bf16.msra.mxu0 %v4146
          %4234 = vmatpush.bf16.msra.mxu0 %v4145
          %4235 = vmatpush.bf16.msra.mxu0 %v4144
          %4236 = vmatpush.bf16.msra.mxu0 %v4143
          %4237 = vmatmul.bf16.gmra.mxu0 %v2834
          %v4238 = vpop.f32.mrf.mxu0
          %v4239 = vadd.f32 %v4220, %v4238
          %v4240 = vpop.f32.mrf.mxu0
          %v4241 = vadd.f32 %v4222, %v4240
          %4242 = vmatmul.bf16.gmra.mxu0 %v2838
          %v4243 = vpop.f32.mrf.mxu0
          %v4244 = vadd.f32 %v4225, %v4243
          %v4245 = vpop.f32.mrf.mxu0
          %v4246 = vadd.f32 %v4227, %v4245
          %4247 = vdwg.mxu0
          %4248 = vmatpush.bf16.msra.mxu0 %v4158
          %4249 = vmatpush.bf16.msra.mxu0 %v4157
          %4250 = vmatpush.bf16.msra.mxu0 %v4156
          %4251 = vmatpush.bf16.msra.mxu0 %v4155
          %4252 = vmatpush.bf16.msra.mxu0 %v4154
          %4253 = vmatpush.bf16.msra.mxu0 %v4153
          %4254 = vmatpush.bf16.msra.mxu0 %v4152
          %4255 = vmatpush.bf16.msra.mxu0 %v4151
          %4256 = vmatmul.bf16.gmra.mxu0 %v2835
          %v4257 = vpop.f32.mrf.mxu0
          %v4258 = vadd.f32 %v4239, %v4257
          %v4259 = vpop.f32.mrf.mxu0
          %v4260 = vadd.f32 %v4241, %v4259
          %4261 = vmatmul.bf16.gmra.mxu0 %v2839
          %v4262 = vpop.f32.mrf.mxu0
          %v4263 = vadd.f32 %v4244, %v4262
          %v4264 = vpop.f32.mrf.mxu0
          %v4265 = vadd.f32 %v4246, %v4264
          %4266 = vdwg.mxu0
          %v4267 = vadd.f32 %v3925, %v4258
          %v4268 = vadd.f32 %v3927, %v4260
          %v4269 = vadd.f32 %v3930, %v4263
          %v4270 = vadd.f32 %v3932, %v4265
          %v4271 = vld [vmem:[#allocation24] sm:$0x1]
          %v4273 = vperm.slane %v4271, 0
          %v4275 = vadd.f32 %v4267, %v4273
          %v4276 = vadd.f32 %v4268, %v4273
          %v4277 = vadd.f32 %v4269, %v4273
          %v4278 = vadd.f32 %v4270, %v4273
          %4279 = vst [vmem:[#allocation27] sm:$0xff] %v4275
          %4280 = vst [vmem:[#allocation27 + $0x8] sm:$0xff] %v4276
          %4281 = vst [vmem:[#allocation27 + $0x10] sm:$0xff] %v4277
          %4282 = vst [vmem:[#allocation27 + $0x18] sm:$0xff] %v4278
        $region144: #{tpu_custom_call.1} parent=75 // pred_fallthru
          _
        // Predicated region
        $region145: #{tpu_custom_call.1} parent=75 // pred_check
          %p4283 = pneg %p421
        $region146: #{tpu_custom_call.1} parent=75 // pred_check_branch
          %4285 = sbr.rel (%p4283) target = $region148
        $region147: #{tpu_custom_call.1} parent=75 // pred_region
          %4287 = vsyncadd [#allocation5], 0
          %s4288 = sshll.u32 [#allocation26], 4
          %s4289 = int_to_ptr.vmem [resolvable:$true] %s4288
          %s4290 = sshll.u32 %s14, 4
          %s4291 = int_to_ptr.hbm [resolvable:$true] %s4290
          %4296 = dma.vmem_to_hbm [thread:$0]  %s4289, 4096, %s4291, [#allocation5], 512, 512, 32
        $region148: #{tpu_custom_call.1} parent=75 // pred_fallthru
          _
        // Predicated region
        $region149: #{tpu_custom_call.1} parent=75 // pred_check
          %p4297 = pneg %p442
        $region150: #{tpu_custom_call.1} parent=75 // pred_check_branch
          %4299 = sbr.rel (%p4297) target = $region152
        $region151: #{tpu_custom_call.1} parent=75 // pred_region
          %4301 = vsyncadd [#allocation28], 0
          %s4302 = sshll.u32 [#allocation27], 4
          %s4303 = int_to_ptr.vmem [resolvable:$true] %s4302
          %s4304 = sshll.u32 %s15, 4
          %s4305 = int_to_ptr.hbm [resolvable:$true] %s4304
          %4310 = dma.vmem_to_hbm [thread:$0]  %s4303, 512, %s4305, [#allocation28], 128, 128, 8
        $region152: #{tpu_custom_call.1} parent=75 // pred_fallthru
          _
        // Predicated region
        $region153: #{tpu_custom_call.1} parent=75 // pred_check
          %p4311 = pneg %p421
        $region154: #{tpu_custom_call.1} parent=75 // pred_check_branch
          %4313 = sbr.rel (%p4311) target = $region156
        $region155: #{tpu_custom_call.1} parent=75 // pred_region
          %4315 = dma.done [#allocation5], 4096
        $region156: #{tpu_custom_call.1} parent=75 // pred_fallthru
          _
        // Predicated region
        $region157: #{tpu_custom_call.1} parent=75 // pred_check
          %p4316 = pneg %p442
        $region158: #{tpu_custom_call.1} parent=75 // pred_check_branch
          %4318 = sbr.rel (%p4316) target = $region160
        $region159: #{tpu_custom_call.1} parent=75 // pred_region
          %4320 = dma.done [#allocation28], 512
        $region160: #{tpu_custom_call.1} parent=75 // pred_fallthru
          _
      $region76: #{tpu_custom_call.1} parent=5 // pred_fallthru
        _
      %p4321 = scmp.le.s32.totalorder 2, %s42
      // Predicated region
      $region161: #{tpu_custom_call.1} parent=5 // pred_check
        %p4322 = pneg %p4321
      $region162: #{tpu_custom_call.1} parent=5 // pred_check_branch
        %4324 = sbr.rel (%p4322) target = $region164
      $region163: #{tpu_custom_call.1} parent=5 // pred_region
        %s4325 = ssub.s32 %s42, 2
      $region164: #{tpu_custom_call.1} parent=5 // pred_fallthru
        _
    $region6: #{tpu_custom_call.1} parent=1 // loop_footer
      %s46 = sadd.s32 1, %s42
    $region7: #{tpu_custom_call.1} parent=1 // loop_footer_branch
      %41 = sbr.rel target = $region3
    $region8: #{tpu_custom_call.1} parent=1 // loop_exit
      _
    %4326 = vsyncpa [#allocation4], 1
    %s4327 = scalar_lea.sflag [#allocation4], 1
    %4328 = vsyncpa %s4327, 1
    %4329 = vsyncpa [#allocation7], 1
    %s4330 = scalar_lea.sflag [#allocation7], 1
    %4331 = vsyncpa %s4330, 1
    %4332 = vsyncpa [#allocation10], 1
    %s4333 = scalar_lea.sflag [#allocation10], 1
    %4334 = vsyncpa %s4333, 1
    %4335 = vsyncpa [#allocation13], 1
    %s4336 = scalar_lea.sflag [#allocation13], 1
    %4337 = vsyncpa %s4336, 1
    %4338 = vsyncpa [#allocation16], 1
    %s4339 = scalar_lea.sflag [#allocation16], 1
    %4340 = vsyncpa %s4339, 1
    %4341 = vsyncpa [#allocation19], 1
    %4342 = vsyncpa [#allocation22], 1
    %4343 = vsyncpa [#allocation25], 1
    %4344 = vsyncpa [#allocation5], 1
    %s4345 = scalar_lea.sflag [#allocation5], 1
    %4346 = vsyncpa %s4345, 1
    %4347 = vsyncpa [#allocation28], 1

</llo_original>
